<compile_context>
chip_gen: v6e
topology: v6e:2x2x1
jax: 0.10.0
libtpu: 0.0.40
codegen_flags: <defaults>
</compile_context>

<pallas_src>
import functools

import jax
import jax.numpy as jnp
from jax.experimental import pallas as pl
from jax.experimental.pallas import tpu as pltpu


_SLOPE = 0.02  # negative_slope of the PyTorch module's F.leaky_relu


def _imdecoder_kernel(
    coords_ref,   # (8, tm)     f32  rows: [x; y; 1; 0*5], points on lanes
    skip_ref,     # (736, 8)    f32  per-batch [wc0 wc1 fb 0*5] rows for layers 1..4
    w2h_ref,      # (128, 512)  bf16 hidden->hidden weights
    w3h_ref,      # (64, 128)   bf16
    w4h_ref,      # (32, 64)    bf16
    w5_ref,       # (32, 1)     f32  output_layer weight column
    b5_ref,       # (1, 1)      f32  output_layer bias
    o_ref,        # (1, tm)     f32  lane-dense output block
):
    rhs_aux = coords_ref[...]                       # (8, tm)

    def skip_mm(lo, hi):
        # Coord + hoisted-feature + bias contribution as a tiny K=8 MXU matmul.
        return jnp.dot(skip_ref[lo:hi, :], rhs_aux,
                       preferred_element_type=jnp.float32)

    def act(z):
        return jnp.maximum(z, _SLOPE * z)           # leaky_relu, 2 VALU ops/elem

    # layer1 (z_dim+2 -> 512): entirely the skip matmul (feature part hoisted).
    h = act(skip_mm(0, 512)).astype(jnp.bfloat16)                        # (512, tm)
    # layer2 (512 + z_dim + 2 -> 128)
    h = act(jnp.dot(w2h_ref[...], h, preferred_element_type=jnp.float32)
            + skip_mm(512, 640)).astype(jnp.bfloat16)                    # (128, tm)
    # layer3 (128 + z_dim + 2 -> 64)
    h = act(jnp.dot(w3h_ref[...], h, preferred_element_type=jnp.float32)
            + skip_mm(640, 704)).astype(jnp.bfloat16)                    # (64, tm)
    # layer4 (64 + z_dim + 2 -> 32): keep f32, feeds the VPU reduce (not the MXU).
    h = act(jnp.dot(w4h_ref[...], h, preferred_element_type=jnp.float32)
            + skip_mm(704, 736))                                         # (32, tm)

    # output_layer (32 -> 1): VPU multiply + sublane reduce; lane-dense store.
    logit = jnp.sum(h * w5_ref[...], axis=0, keepdims=True) + b5_ref[...]
    o_ref[...] = jax.nn.sigmoid(logit)


def _choose_tm(N, B, cap=2048):
    """Lane-tile size: multiple of 128, minimal padding, >=2 grid steps if B==1."""
    n128 = -(-N // 128)                  # 128-lane chunks needed to cover N
    if B == 1 and n128 > 1:
        n128 = -(-n128 // 2)             # split the point axis: both v7x TCs get work
    return max(128, min(cap, n128 * 128))


def imdecoder_forward(features, coords, params, *, tm=None):
    """features: (B, z_dim) f32; coords: (B, N, 2) f32 -> (B, N) f32."""
    (W1, b1, W2, b2, W3, b3, W4, b4, W5, b5) = params
    B, z_dim = features.shape
    _, N, _ = coords.shape

    if tm is None:
        tm = _choose_tm(N, B)
    assert tm % 128 == 0
    n_tiles = pl.cdiv(N, tm)
    N_pad = n_tiles * tm

    # Points on lanes; append a ones row (carries bias + hoisted feature term) and
    # zero-pad the sublane axis to 8.  Padded point columns are all-zero and the
    # corresponding garbage sigmoid outputs are sliced off at the end.
    coords_t = jnp.transpose(coords, (0, 2, 1)).astype(jnp.float32)       # (B, 2, N)
    coords_aug = jnp.concatenate(
        [coords_t,
         jnp.ones((B, 1, N), jnp.float32),
         jnp.zeros((B, 5, N), jnp.float32)], axis=1)                      # (B, 8, N)
    if N_pad != N:
        coords_aug = jnp.pad(coords_aug, ((0, 0), (0, 0), (0, N_pad - N)))

    # Per-layer skip LHS [wc0 wc1 (features @ Wf.T + b) 0...] packed per batch;
    # all four layers concatenated into one (B, 736, 8) slab (single DMA).
    def skip_block(W, b, h_dim):
        out = W.shape[0]
        w_f = W[:, h_dim:h_dim + z_dim]                  # (out, z_dim) feature cols
        w_c = W[:, h_dim + z_dim:]                       # (out, 2)     coord cols
        fb = features @ w_f.T + b                        # (B, out) hoisted feat + bias
        return jnp.concatenate(
            [jnp.broadcast_to(w_c, (B, out, 2)),
             fb[..., None],
             jnp.zeros((B, out, 5), jnp.float32)], axis=-1)               # (B, out, 8)

    skip_w = jnp.concatenate(
        [skip_block(W1, b1, 0),       # rows   0:512
         skip_block(W2, b2, 512),     # rows 512:640
         skip_block(W3, b3, 128),     # rows 640:704
         skip_block(W4, b4, 64)],     # rows 704:736
        axis=1).astype(jnp.float32)                                       # (B, 736, 8)

    # Resident bf16 MXU weights (f32 accumulation in-kernel).
    w2h = W2[:, :512].astype(jnp.bfloat16)
    w3h = W3[:, :128].astype(jnp.bfloat16)
    w4h = W4[:, :64].astype(jnp.bfloat16)
    w5_col = W5.T.astype(jnp.float32)                    # (32, 1)
    b5_m = b5.reshape(1, 1).astype(jnp.float32)          # (1, 1)

    full = lambda a: pl.BlockSpec(a.shape, lambda b, i: (0, 0))

    grid = (B, n_tiles)   # both axes parallel; >= 2 steps whenever B >= 2 or N > 128

    out = pl.pallas_call(
        _imdecoder_kernel,
        out_shape=jax.ShapeDtypeStruct((B, 1, N_pad), jnp.float32),
        grid_spec=pltpu.PrefetchScalarGridSpec(
            num_scalar_prefetch=0,
            grid=grid,
            in_specs=[
                pl.BlockSpec((None, 8, tm), lambda b, i: (b, 0, i)),       # coords_aug
                pl.BlockSpec((None,) + skip_w.shape[1:],
                             lambda b, i: (b, 0, 0)),                      # skip slab
                full(w2h), full(w3h), full(w4h), full(w5_col), full(b5_m),
            ],
            out_specs=pl.BlockSpec((None, 1, tm), lambda b, i: (b, 0, i)),
        ),
        compiler_params=pltpu.CompilerParams(
            dimension_semantics=("parallel", "parallel"),
            # Real footprint is a few MiB even at tm=2048; 24 MiB gives headroom
            # while staying well under v7x's 64 MiB physical VMEM.
            vmem_limit_bytes=24 * 1024 * 1024,
        ),
    )(coords_aug, skip_w, w2h, w3h, w4h, w5_col, b5_m)

    return out.reshape(B, N_pad)[:, :N]


def init_params(key, z_dim):
    """PyTorch nn.Linear-style params: per layer W (out, in), b (out,)."""
    zc = z_dim + 2
    dims = [(zc, 512), (512 + zc, 128), (128 + zc, 64), (64 + zc, 32), (32, 1)]
    params = []
    for k, (fan_in, fan_out) in zip(jax.random.split(key, len(dims)), dims):
        kw, kb = jax.random.split(k)
        bound = float(1.0 / (fan_in ** 0.5))
        W = jax.random.uniform(kw, (fan_out, fan_in), jnp.float32, -bound, bound)
        b = jax.random.uniform(kb, (fan_out,), jnp.float32, -bound, bound)
        params += [W, b]
    return tuple(params)


def reference_forward(features, coords, params):
    """Pure-JAX f32 reference of the PyTorch forward (original semantics)."""
    (W1, b1, W2, b2, W3, b3, W4, b4, W5, b5) = params
    B, z_dim = features.shape
    N = coords.shape[1]
    feats = jnp.broadcast_to(features[:, None, :], (B, N, z_dim))
    x = jnp.concatenate([feats, coords], axis=-1)
    lin = lambda h, W, b: h @ W.T + b
    lrelu = lambda v: jnp.where(v > 0, v, _SLOPE * v)
    h = lrelu(lin(x, W1, b1))
    h = lrelu(lin(jnp.concatenate([h, x], -1), W2, b2))
    h = lrelu(lin(jnp.concatenate([h, x], -1), W3, b3))
    h = lrelu(lin(jnp.concatenate([h, x], -1), W4, b4))
    return jax.nn.sigmoid(lin(h, W5, b5)[..., 0])


if __name__ == "__main__":
    key = jax.random.PRNGKey(0)
    k_feat, k_coord, k_param = jax.random.split(key, 3)

    B, z_dim, N = 2, 32, 700
    features = jax.random.normal(k_feat, (B, z_dim), jnp.float32)
    coords = jax.random.uniform(k_coord, (B, N, 2), jnp.float32, -1.0, 1.0)
    params = init_params(k_param, z_dim)

    ref = reference_forward(features, coords, params)

    # Adaptive tile: N=700 -> tm=768, grid (2, 1): minimal padding, 2 grid steps.
    fwd = jax.jit(imdecoder_forward)
    out = jax.block_until_ready(fwd(features, coords, params))
    assert out.shape == (B, N), out.shape
    err = float(jnp.max(jnp.abs(out - ref)))
    # bf16 MXU weights + bf16 hidden activations vs the all-f32 reference.
    assert err < 3e-2, err

    # Multi-tile path: tm=256 -> grid (2, 3); exercises padding + tile index maps.
    fwd_small = jax.jit(functools.partial(imdecoder_forward, tm=256))
    out2 = jax.block_until_ready(fwd_small(features, coords, params))
    err2 = float(jnp.max(jnp.abs(out2 - ref)))
    assert err2 < 3e-2, err2

    print("KERNEL_OK")
</pallas_src>

<mosaic_0001>
module attributes {stable_mosaic.version = 11 : i64} {
  func.func @_imdecoder_kernel(%arg0: i32, %arg1: i32, %arg2: memref<1x8x768xf32, #tpu.memory_space<vmem>>, %arg3: memref<1x736x8xf32, #tpu.memory_space<vmem>>, %arg4: memref<128x512xbf16, #tpu.memory_space<vmem>>, %arg5: memref<64x128xbf16, #tpu.memory_space<vmem>>, %arg6: memref<32x64xbf16, #tpu.memory_space<vmem>>, %arg7: memref<32x1xf32, #tpu.memory_space<vmem>>, %arg8: memref<1x1xf32, #tpu.memory_space<vmem>>, %arg9: memref<1x1x768xf32, #tpu.memory_space<vmem>>) attributes {dimension_semantics = [#tpu.dimension_semantics<parallel>, #tpu.dimension_semantics<parallel>], iteration_bounds = array<i64: 2, 1>, scalar_prefetch = 0 : i64, scratch_operands = 0 : i64, tpu.core_type = #tpu.core_type<tc>, window_params = [{transform_indices = @transform_0, window_bounds = array<i64: 1, 8, 768>}, {transform_indices = @transform_1, window_bounds = array<i64: 1, 736, 8>}, {pipeline_mode = #tpu.pipeline_mode<synchronous>, transform_indices = @transform_2, window_bounds = array<i64: 128, 512>}, {pipeline_mode = #tpu.pipeline_mode<synchronous>, transform_indices = @transform_3, window_bounds = array<i64: 64, 128>}, {pipeline_mode = #tpu.pipeline_mode<synchronous>, transform_indices = @transform_4, window_bounds = array<i64: 32, 64>}, {pipeline_mode = #tpu.pipeline_mode<synchronous>, transform_indices = @transform_5, window_bounds = array<i64: 32, 1>}, {pipeline_mode = #tpu.pipeline_mode<synchronous>, transform_indices = @transform_6, window_bounds = array<i64: 1, 1>}, {transform_indices = @transform_7, window_bounds = array<i64: 1, 1, 768>}]} {
    %c0 = arith.constant 0 : index
    %c0_0 = arith.constant 0 : index
    %c0_1 = arith.constant 0 : index
    %0 = vector.load %arg2[%c0, %c0_0, %c0_1] : memref<1x8x768xf32, #tpu.memory_space<vmem>>, vector<1x8x768xf32>
    %1 = vector.shape_cast %0 : vector<1x8x768xf32> to vector<8x768xf32>
    %c0_2 = arith.constant 0 : index
    %c0_3 = arith.constant 0 : index
    %c0_4 = arith.constant 0 : index
    %2 = vector.load %arg3[%c0_2, %c0_3, %c0_4] : memref<1x736x8xf32, #tpu.memory_space<vmem>>, vector<1x512x8xf32>
    %3 = vector.shape_cast %2 : vector<1x512x8xf32> to vector<512x8xf32>
    %cst = arith.constant dense<0.000000e+00> : vector<512x768xf32>
    %4 = tpu.matmul %3, %1, %cst {dimension_numbers = #tpu.dot_dimension_numbers<[1], [0], [0], [1], [0, 0, 1, 1], [], []>} : vector<512x8xf32>, vector<8x768xf32>, vector<512x768xf32> -> vector<512x768xf32>
    %cst_5 = arith.constant 2.000000e-02 : f32
    %5 = vector.broadcast %cst_5 : f32 to vector<512x768xf32>
    %6 = arith.mulf %5, %4 : vector<512x768xf32>
    %7 = arith.maximumf %4, %6 : vector<512x768xf32>
    %8 = arith.truncf %7 : vector<512x768xf32> to vector<512x768xbf16>
    %c0_6 = arith.constant 0 : index
    %c0_7 = arith.constant 0 : index
    %9 = vector.load %arg4[%c0_6, %c0_7] : memref<128x512xbf16, #tpu.memory_space<vmem>>, vector<128x512xbf16>
    %cst_8 = arith.constant dense<0.000000e+00> : vector<128x768xf32>
    %10 = tpu.matmul %9, %8, %cst_8 {dimension_numbers = #tpu.dot_dimension_numbers<[1], [0], [0], [1], [0, 0, 1, 1], [], []>} : vector<128x512xbf16>, vector<512x768xbf16>, vector<128x768xf32> -> vector<128x768xf32>
    %c0_9 = arith.constant 0 : index
    %c512 = arith.constant 512 : index
    %c0_10 = arith.constant 0 : index
    %11 = vector.load %arg3[%c0_9, %c512, %c0_10] : memref<1x736x8xf32, #tpu.memory_space<vmem>>, vector<1x128x8xf32>
    %12 = vector.shape_cast %11 : vector<1x128x8xf32> to vector<128x8xf32>
    %cst_11 = arith.constant dense<0.000000e+00> : vector<128x768xf32>
    %13 = tpu.matmul %12, %1, %cst_11 {dimension_numbers = #tpu.dot_dimension_numbers<[1], [0], [0], [1], [0, 0, 1, 1], [], []>} : vector<128x8xf32>, vector<8x768xf32>, vector<128x768xf32> -> vector<128x768xf32>
    %14 = arith.addf %10, %13 : vector<128x768xf32>
    %cst_12 = arith.constant 2.000000e-02 : f32
    %15 = vector.broadcast %cst_12 : f32 to vector<128x768xf32>
    %16 = arith.mulf %15, %14 : vector<128x768xf32>
    %17 = arith.maximumf %14, %16 : vector<128x768xf32>
    %18 = arith.truncf %17 : vector<128x768xf32> to vector<128x768xbf16>
    %c0_13 = arith.constant 0 : index
    %c0_14 = arith.constant 0 : index
    %19 = vector.load %arg5[%c0_13, %c0_14] : memref<64x128xbf16, #tpu.memory_space<vmem>>, vector<64x128xbf16>
    %cst_15 = arith.constant dense<0.000000e+00> : vector<64x768xf32>
    %20 = tpu.matmul %19, %18, %cst_15 {dimension_numbers = #tpu.dot_dimension_numbers<[1], [0], [0], [1], [0, 0, 1, 1], [], []>} : vector<64x128xbf16>, vector<128x768xbf16>, vector<64x768xf32> -> vector<64x768xf32>
    %c0_16 = arith.constant 0 : index
    %c640 = arith.constant 640 : index
    %c0_17 = arith.constant 0 : index
    %21 = vector.load %arg3[%c0_16, %c640, %c0_17] : memref<1x736x8xf32, #tpu.memory_space<vmem>>, vector<1x64x8xf32>
    %22 = vector.shape_cast %21 : vector<1x64x8xf32> to vector<64x8xf32>
    %cst_18 = arith.constant dense<0.000000e+00> : vector<64x768xf32>
    %23 = tpu.matmul %22, %1, %cst_18 {dimension_numbers = #tpu.dot_dimension_numbers<[1], [0], [0], [1], [0, 0, 1, 1], [], []>} : vector<64x8xf32>, vector<8x768xf32>, vector<64x768xf32> -> vector<64x768xf32>
    %24 = arith.addf %20, %23 : vector<64x768xf32>
    %cst_19 = arith.constant 2.000000e-02 : f32
    %25 = vector.broadcast %cst_19 : f32 to vector<64x768xf32>
    %26 = arith.mulf %25, %24 : vector<64x768xf32>
    %27 = arith.maximumf %24, %26 : vector<64x768xf32>
    %28 = arith.truncf %27 : vector<64x768xf32> to vector<64x768xbf16>
    %c0_20 = arith.constant 0 : index
    %c0_21 = arith.constant 0 : index
    %29 = vector.load %arg6[%c0_20, %c0_21] : memref<32x64xbf16, #tpu.memory_space<vmem>>, vector<32x64xbf16>
    %cst_22 = arith.constant dense<0.000000e+00> : vector<32x768xf32>
    %30 = tpu.matmul %29, %28, %cst_22 {dimension_numbers = #tpu.dot_dimension_numbers<[1], [0], [0], [1], [0, 0, 1, 1], [], []>} : vector<32x64xbf16>, vector<64x768xbf16>, vector<32x768xf32> -> vector<32x768xf32>
    %c0_23 = arith.constant 0 : index
    %c704 = arith.constant 704 : index
    %c0_24 = arith.constant 0 : index
    %31 = vector.load %arg3[%c0_23, %c704, %c0_24] : memref<1x736x8xf32, #tpu.memory_space<vmem>>, vector<1x32x8xf32>
    %32 = vector.shape_cast %31 : vector<1x32x8xf32> to vector<32x8xf32>
    %cst_25 = arith.constant dense<0.000000e+00> : vector<32x768xf32>
    %33 = tpu.matmul %32, %1, %cst_25 {dimension_numbers = #tpu.dot_dimension_numbers<[1], [0], [0], [1], [0, 0, 1, 1], [], []>} : vector<32x8xf32>, vector<8x768xf32>, vector<32x768xf32> -> vector<32x768xf32>
    %34 = arith.addf %30, %33 : vector<32x768xf32>
    %cst_26 = arith.constant 2.000000e-02 : f32
    %35 = vector.broadcast %cst_26 : f32 to vector<32x768xf32>
    %36 = arith.mulf %35, %34 : vector<32x768xf32>
    %37 = arith.maximumf %34, %36 : vector<32x768xf32>
    %c0_27 = arith.constant 0 : index
    %c0_28 = arith.constant 0 : index
    %38 = vector.load %arg7[%c0_27, %c0_28] : memref<32x1xf32, #tpu.memory_space<vmem>>, vector<32x1xf32>
    %39 = vector.broadcast %38 : vector<32x1xf32> to vector<32x768xf32>
    %40 = arith.mulf %37, %39 : vector<32x768xf32>
    %cst_29 = arith.constant dense<0.000000e+00> : vector<768xf32>
    %41 = vector.multi_reduction <add>, %40, %cst_29 [0] : vector<32x768xf32> to vector<768xf32>
    %42 = vector.shape_cast %41 : vector<768xf32> to vector<1x768xf32>
    %c0_30 = arith.constant 0 : index
    %c0_31 = arith.constant 0 : index
    %43 = vector.load %arg8[%c0_30, %c0_31] : memref<1x1xf32, #tpu.memory_space<vmem>>, vector<1x1xf32>
    %44 = vector.broadcast %43 : vector<1x1xf32> to vector<1x768xf32>
    %45 = arith.addf %42, %44 : vector<1x768xf32>
    %46 = arith.negf %45 : vector<1x768xf32>
    %47 = math.exp %46 : vector<1x768xf32>
    %cst_32 = arith.constant 1.000000e+00 : f32
    %48 = vector.broadcast %cst_32 : f32 to vector<1x768xf32>
    %49 = arith.addf %48, %47 : vector<1x768xf32>
    %50 = arith.divf %48, %49 : vector<1x768xf32>
    %c0_33 = arith.constant 0 : index
    %c0_34 = arith.constant 0 : index
    %c0_35 = arith.constant 0 : index
    %51 = vector.load %arg9[%c0_33, %c0_34, %c0_35] : memref<1x1x768xf32, #tpu.memory_space<vmem>>, vector<1x1x768xf32>
    %52 = vector.shape_cast %51 : vector<1x1x768xf32> to vector<1x768xf32>
    %53 = vector.shape_cast %50 : vector<1x768xf32> to vector<1x1x768xf32>
    tpu.vector_store %arg9[%c0_33, %c0_34, %c0_35], %53 {strides = array<i32>} : memref<1x1x768xf32, #tpu.memory_space<vmem>>, vector<1x1x768xf32>,
    return
  }
  func.func @transform_0(%arg0: i32, %arg1: i32) -> (i32, i32, i32) {
    %c0_i32 = arith.constant 0 : i32
    %c0_i32_0 = arith.constant 0 : i32
    return %arg0, %c0_i32, %arg1 : i32, i32, i32
  }
  func.func @transform_1(%arg0: i32, %arg1: i32) -> (i32, i32, i32) {
    %c0_i32 = arith.constant 0 : i32
    %c0_i32_0 = arith.constant 0 : i32
    %c0_i32_1 = arith.constant 0 : i32
    return %arg0, %c0_i32, %c0_i32_0 : i32, i32, i32
  }
  func.func @transform_2(%arg0: i32, %arg1: i32) -> (i32, i32) {
    %c0_i32 = arith.constant 0 : i32
    %c0_i32_0 = arith.constant 0 : i32
    %c0_i32_1 = arith.constant 0 : i32
    return %c0_i32, %c0_i32_0 : i32, i32
  }
  func.func @transform_3(%arg0: i32, %arg1: i32) -> (i32, i32) {
    %c0_i32 = arith.constant 0 : i32
    %c0_i32_0 = arith.constant 0 : i32
    %c0_i32_1 = arith.constant 0 : i32
    return %c0_i32, %c0_i32_0 : i32, i32
  }
  func.func @transform_4(%arg0: i32, %arg1: i32) -> (i32, i32) {
    %c0_i32 = arith.constant 0 : i32
    %c0_i32_0 = arith.constant 0 : i32
    %c0_i32_1 = arith.constant 0 : i32
    return %c0_i32, %c0_i32_0 : i32, i32
  }
  func.func @transform_5(%arg0: i32, %arg1: i32) -> (i32, i32) {
    %c0_i32 = arith.constant 0 : i32
    %c0_i32_0 = arith.constant 0 : i32
    %c0_i32_1 = arith.constant 0 : i32
    return %c0_i32, %c0_i32_0 : i32, i32
  }
  func.func @transform_6(%arg0: i32, %arg1: i32) -> (i32, i32) {
    %c0_i32 = arith.constant 0 : i32
    %c0_i32_0 = arith.constant 0 : i32
    %c0_i32_1 = arith.constant 0 : i32
    return %c0_i32, %c0_i32_0 : i32, i32
  }
  func.func @transform_7(%arg0: i32, %arg1: i32) -> (i32, i32, i32) {
    %c0_i32 = arith.constant 0 : i32
    %c0_i32_0 = arith.constant 0 : i32
    return %arg0, %c0_i32, %arg1 : i32, i32, i32
  }
}

</mosaic_0001>

<llo_original>
// kernel: imdecoder_forward.1
$region0: #{imdecoder_forward.1}
  #allocation0 [shape = 'u32[]', space=smem, size = 0x4, offset = 0x4, fixed_abs, tag = 'smem constant byte address 0x4 - core index']
  #allocation1 [shape = 'u32[144,128]{1,0:T(1,128)}', space=vmem, size = 0x12000, scoped, tag = 'internal scratch']
  #allocation2 [shape = 'f32[1,1]{1,0:T(1,128)S(1)}', space=vmem, size = 0x200, scoped, tag = 'scoped memory for imdecoder_forward.1']
  %s0 = inlined_call_operand.vmem [shape: f32[2,8,768], index: 0, kind: input, shape index: {}]
  %s1 = inlined_call_operand.vmem [shape: f32[2,736,8], index: 1, kind: input, shape index: {}]
  %s2 = inlined_call_operand.vmem [shape: bf16[128,512], index: 2, kind: input, shape index: {}]
  %s3 = inlined_call_operand.vmem [shape: bf16[64,128], index: 3, kind: input, shape index: {}]
  %s4 = inlined_call_operand.vmem [shape: bf16[32,64], index: 4, kind: input, shape index: {}]
  %s5 = inlined_call_operand.vmem [shape: f32[32,1], index: 5, kind: input, shape index: {}]
  %s6 = inlined_call_operand.<no memory space> [shape: f32[1,1], index: 6, kind: input, shape index: {}]
  %s7 = inlined_call_operand.vmem [shape: f32[2,1,768], index: 7, kind: output, shape index: {}]
  %s8 = sld [smem:[#allocation0]]
  $region61: #{imdecoder_forward.1} parent=0
    _
  %s10 = ssub.s32 1, %s8
  %s11 = scalar_select 0, %s10, %s8
  %v12 = vstv %s6
  %13 = vst [vmem:[#allocation2] sm:$0x1] %v12
  loop: start=0, step=1, limit=4
  $region2: #{imdecoder_forward.1} parent=0 // loop_pre_header
    _
  $region3: #{imdecoder_forward.1} parent=0 // loop_header
    %s15 = sphi 0, %s19
    %p16 = scmp.ge.s32.totalorder %s15, 4
    %s22 = sphi 0, %s34
    %s23 = sphi 0, %s30
    %s24 = sphi 0, %s22
    %s25 = sphi 0, %s23
    %s26 = sphi 0, %s24
    %s27 = sphi 0, %s25
    %s39 = sphi 0, %s41
    %s42 = sphi 0, %s39
    %s43 = sphi 0, %s42
    %s59 = sphi 0, %s43
    %s65 = sphi 0, %s67
    %s68 = sphi 0, %s65
    %s69 = sphi 0, %s68
    %s85 = sphi 0, %s69
    %s89 = sphi 0, %s89
    %s91 = sphi 0, %s89
    %s92 = sphi 0, %s91
    %s106 = sphi 0, %s92
    %s110 = sphi 0, %s110
    %s112 = sphi 0, %s110
    %s113 = sphi 0, %s112
    %s127 = sphi 0, %s113
    %s131 = sphi 0, %s131
    %s133 = sphi 0, %s131
    %s134 = sphi 0, %s133
    %s148 = sphi 0, %s134
    %s152 = sphi 0, %s152
    %s154 = sphi 0, %s152
    %s155 = sphi 0, %s154
    %s169 = sphi 0, %s155
    %s173 = sphi 0, %s173
    %s175 = sphi 0, %s173
    %s176 = sphi 0, %s175
    %s190 = sphi 0, %s176
    %s198 = sphi 0, %s200
    %s201 = sphi 0, %s198
    %s202 = sphi 0, %s201
    %s218 = sphi 0, %s202
  $region4: #{imdecoder_forward.1} parent=0 // loop_header_branch
    %18 = sbr.rel (%p16) target = $region8
  $region5: #{imdecoder_forward.1} parent=0 // loop_body
    %s20 = ssub.s32 %s15, 1
    %s21 = ssub.s32 %s15, 2
    %s28 = sadd.s32 1, %s23
    %p29 = scmp.ge.s32.totalorder %s28, 1
    %s30 = scalar_select %p29, 0, %s28
    %s31 = sadd.s32 1, %s22
    %s32 = scalar_select %p29, %s31, %s22
    %p33 = scmp.ge.s32.totalorder %s32, 2
    %s34 = scalar_select %p33, 0, %s32
    %s35 = ssub.s32 %s22, %s34
    %s36 = ssub.s32 %s23, %s30
    %s37 = sor.u32 %s35, %s36
    %p38 = scmp.eq.s32.totalorder %s37, 0
    %s40 = sadd.s32 %s39, 1
    %s41 = scalar_select %p38, %s39, %s40
    %p44 = pneg %p38
    %p45 = scmp.eq.s32.totalorder %s15, 1
    %p46 = por %p44, %p45
    %p47 = scmp.ne.s32.totalorder %s39, %s42
    %p48 = scmp.eq.s32.totalorder %s15, 0
    %p49 = por %p47, %p48
    %p50 = scmp.ne.s32.totalorder %s39, %s42
    %p51 = scmp.eq.s32.totalorder %s20, 1
    %p52 = por %p50, %p51
    %p53 = scmp.ne.s32.totalorder %s42, %s43
    %p54 = scmp.eq.s32.totalorder %s20, 0
    %p55 = por %p53, %p54
    %p56 = scmp.ne.s32.totalorder %s42, %s43
    %p57 = scmp.eq.s32.totalorder %s21, 1
    %p58 = por %p56, %p57
    %p60 = scmp.ne.s32.totalorder %s43, %s59
    %p61 = scmp.eq.s32.totalorder %s21, 0
    %p62 = por %p60, %p61
    %s63 = ssub.s32 %s22, %s34
    %p64 = scmp.eq.s32.totalorder %s63, 0
    %s66 = sadd.s32 %s65, 1
    %s67 = scalar_select %p64, %s65, %s66
    %p70 = pneg %p64
    %p71 = scmp.eq.s32.totalorder %s15, 1
    %p72 = por %p70, %p71
    %p73 = scmp.ne.s32.totalorder %s65, %s68
    %p74 = scmp.eq.s32.totalorder %s15, 0
    %p75 = por %p73, %p74
    %p76 = scmp.ne.s32.totalorder %s65, %s68
    %p77 = scmp.eq.s32.totalorder %s20, 1
    %p78 = por %p76, %p77
    %p79 = scmp.ne.s32.totalorder %s68, %s69
    %p80 = scmp.eq.s32.totalorder %s20, 0
    %p81 = por %p79, %p80
    %p82 = scmp.ne.s32.totalorder %s68, %s69
    %p83 = scmp.eq.s32.totalorder %s21, 1
    %p84 = por %p82, %p83
    %p86 = scmp.ne.s32.totalorder %s69, %s85
    %p87 = scmp.eq.s32.totalorder %s21, 0
    %p88 = por %p86, %p87
    %s90 = sadd.s32 %s89, 1
    %p93 = scmp.eq.s32.totalorder %s15, 1
    %p94 = scmp.ne.s32.totalorder %s89, %s91
    %p95 = scmp.eq.s32.totalorder %s15, 0
    %p96 = por %p94, %p95
    %p97 = scmp.ne.s32.totalorder %s89, %s91
    %p98 = scmp.eq.s32.totalorder %s20, 1
    %p99 = por %p97, %p98
    %p100 = scmp.ne.s32.totalorder %s91, %s92
    %p101 = scmp.eq.s32.totalorder %s20, 0
    %p102 = por %p100, %p101
    %p103 = scmp.ne.s32.totalorder %s91, %s92
    %p104 = scmp.eq.s32.totalorder %s21, 1
    %p105 = por %p103, %p104
    %p107 = scmp.ne.s32.totalorder %s92, %s106
    %p108 = scmp.eq.s32.totalorder %s21, 0
    %p109 = por %p107, %p108
    %s111 = sadd.s32 %s110, 1
    %p114 = scmp.eq.s32.totalorder %s15, 1
    %p115 = scmp.ne.s32.totalorder %s110, %s112
    %p116 = scmp.eq.s32.totalorder %s15, 0
    %p117 = por %p115, %p116
    %p118 = scmp.ne.s32.totalorder %s110, %s112
    %p119 = scmp.eq.s32.totalorder %s20, 1
    %p120 = por %p118, %p119
    %p121 = scmp.ne.s32.totalorder %s112, %s113
    %p122 = scmp.eq.s32.totalorder %s20, 0
    %p123 = por %p121, %p122
    %p124 = scmp.ne.s32.totalorder %s112, %s113
    %p125 = scmp.eq.s32.totalorder %s21, 1
    %p126 = por %p124, %p125
    %p128 = scmp.ne.s32.totalorder %s113, %s127
    %p129 = scmp.eq.s32.totalorder %s21, 0
    %p130 = por %p128, %p129
    %s132 = sadd.s32 %s131, 1
    %p135 = scmp.eq.s32.totalorder %s15, 1
    %p136 = scmp.ne.s32.totalorder %s131, %s133
    %p137 = scmp.eq.s32.totalorder %s15, 0
    %p138 = por %p136, %p137
    %p139 = scmp.ne.s32.totalorder %s131, %s133
    %p140 = scmp.eq.s32.totalorder %s20, 1
    %p141 = por %p139, %p140
    %p142 = scmp.ne.s32.totalorder %s133, %s134
    %p143 = scmp.eq.s32.totalorder %s20, 0
    %p144 = por %p142, %p143
    %p145 = scmp.ne.s32.totalorder %s133, %s134
    %p146 = scmp.eq.s32.totalorder %s21, 1
    %p147 = por %p145, %p146
    %p149 = scmp.ne.s32.totalorder %s134, %s148
    %p150 = scmp.eq.s32.totalorder %s21, 0
    %p151 = por %p149, %p150
    %s153 = sadd.s32 %s152, 1
    %p156 = scmp.eq.s32.totalorder %s15, 1
    %p157 = scmp.ne.s32.totalorder %s152, %s154
    %p158 = scmp.eq.s32.totalorder %s15, 0
    %p159 = por %p157, %p158
    %p160 = scmp.ne.s32.totalorder %s152, %s154
    %p161 = scmp.eq.s32.totalorder %s20, 1
    %p162 = por %p160, %p161
    %p163 = scmp.ne.s32.totalorder %s154, %s155
    %p164 = scmp.eq.s32.totalorder %s20, 0
    %p165 = por %p163, %p164
    %p166 = scmp.ne.s32.totalorder %s154, %s155
    %p167 = scmp.eq.s32.totalorder %s21, 1
    %p168 = por %p166, %p167
    %p170 = scmp.ne.s32.totalorder %s155, %s169
    %p171 = scmp.eq.s32.totalorder %s21, 0
    %p172 = por %p170, %p171
    %s174 = sadd.s32 %s173, 1
    %p177 = scmp.eq.s32.totalorder %s15, 1
    %p178 = scmp.ne.s32.totalorder %s173, %s175
    %p179 = scmp.eq.s32.totalorder %s15, 0
    %p180 = por %p178, %p179
    %p181 = scmp.ne.s32.totalorder %s173, %s175
    %p182 = scmp.eq.s32.totalorder %s20, 1
    %p183 = por %p181, %p182
    %p184 = scmp.ne.s32.totalorder %s175, %s176
    %p185 = scmp.eq.s32.totalorder %s20, 0
    %p186 = por %p184, %p185
    %p187 = scmp.ne.s32.totalorder %s175, %s176
    %p188 = scmp.eq.s32.totalorder %s21, 1
    %p189 = por %p187, %p188
    %p191 = scmp.ne.s32.totalorder %s176, %s190
    %p192 = scmp.eq.s32.totalorder %s21, 0
    %p193 = por %p191, %p192
    %s194 = ssub.s32 %s22, %s34
    %s195 = ssub.s32 %s23, %s30
    %s196 = sor.u32 %s194, %s195
    %p197 = scmp.eq.s32.totalorder %s196, 0
    %s199 = sadd.s32 %s198, 1
    %s200 = scalar_select %p197, %s198, %s199
    %p203 = pneg %p197
    %p204 = scmp.eq.s32.totalorder %s15, 1
    %p205 = por %p203, %p204
    %p206 = scmp.ne.s32.totalorder %s198, %s201
    %p207 = scmp.eq.s32.totalorder %s15, 0
    %p208 = por %p206, %p207
    %p209 = scmp.ne.s32.totalorder %s198, %s201
    %p210 = scmp.eq.s32.totalorder %s20, 1
    %p211 = por %p209, %p210
    %p212 = scmp.ne.s32.totalorder %s201, %s202
    %p213 = scmp.eq.s32.totalorder %s20, 0
    %p214 = por %p212, %p213
    %p215 = scmp.ne.s32.totalorder %s201, %s202
    %p216 = scmp.eq.s32.totalorder %s21, 1
    %p217 = por %p215, %p216
    %p219 = scmp.ne.s32.totalorder %s202, %s218
    %p220 = scmp.eq.s32.totalorder %s21, 0
    %p221 = por %p219, %p220
    %p222 = scmp.le.s32.totalorder 1, %s15
    %p223 = scmp.lt.s32.totalorder %s15, 3
    %p224 = pnand %p222, %p223
    %p225 = pneg %p224
    // Predicated region
    $region9: #{imdecoder_forward.1} parent=5 // pred_check
      _
    $region10: #{imdecoder_forward.1} parent=5 // pred_check_branch
      %227 = sbr.rel (%p224) target = $region12
    $region11: #{imdecoder_forward.1} parent=5 // pred_region
      %s228 = ssub.s32 %s15, 1
      // Predicated region
      $region13: #{imdecoder_forward.1} parent=11 // pred_check
        %p229 = pneg %p102
      $region14: #{imdecoder_forward.1} parent=11 // pred_check_branch
        %231 = sbr.rel (%p229) target = $region16
      $region15: #{imdecoder_forward.1} parent=11 // pred_region
        _
      $region16: #{imdecoder_forward.1} parent=11 // pred_fallthru
        _
      // Predicated region
      $region17: #{imdecoder_forward.1} parent=11 // pred_check
        %p232 = pneg %p123
      $region18: #{imdecoder_forward.1} parent=11 // pred_check_branch
        %234 = sbr.rel (%p232) target = $region20
      $region19: #{imdecoder_forward.1} parent=11 // pred_region
        _
      $region20: #{imdecoder_forward.1} parent=11 // pred_fallthru
        _
      // Predicated region
      $region21: #{imdecoder_forward.1} parent=11 // pred_check
        %p235 = pneg %p144
      $region22: #{imdecoder_forward.1} parent=11 // pred_check_branch
        %237 = sbr.rel (%p235) target = $region24
      $region23: #{imdecoder_forward.1} parent=11 // pred_region
        _
      $region24: #{imdecoder_forward.1} parent=11 // pred_fallthru
        _
      // Predicated region
      $region25: #{imdecoder_forward.1} parent=11 // pred_check
        %p238 = pneg %p165
      $region26: #{imdecoder_forward.1} parent=11 // pred_check_branch
        %240 = sbr.rel (%p238) target = $region28
      $region27: #{imdecoder_forward.1} parent=11 // pred_region
        _
      $region28: #{imdecoder_forward.1} parent=11 // pred_fallthru
        _
      // Predicated region
      $region29: #{imdecoder_forward.1} parent=11 // pred_check
        %p241 = pneg %p186
      $region30: #{imdecoder_forward.1} parent=11 // pred_check_branch
        %243 = sbr.rel (%p241) target = $region32
      $region31: #{imdecoder_forward.1} parent=11 // pred_region
        _
      $region32: #{imdecoder_forward.1} parent=11 // pred_fallthru
        _
    $region12: #{imdecoder_forward.1} parent=5 // pred_fallthru
      _
    %p244 = scmp.lt.s32.totalorder %s15, 2
    // Predicated region
    $region33: #{imdecoder_forward.1} parent=5 // pred_check
      %p245 = pneg %p244
    $region34: #{imdecoder_forward.1} parent=5 // pred_check_branch
      %247 = sbr.rel (%p245) target = $region36
    $region35: #{imdecoder_forward.1} parent=5 // pred_region
      // Predicated region
      $region37: #{imdecoder_forward.1} parent=35 // pred_check
        %p248 = pneg %p49
      $region38: #{imdecoder_forward.1} parent=35 // pred_check_branch
        %250 = sbr.rel (%p248) target = $region40
      $region39: #{imdecoder_forward.1} parent=35 // pred_region
        %s251 = smul.u32 6, %s23
        %p252 = scmp.lt.s32.totalorder %s22, 1
        %s253 = scalar_select %p252, %s22, 1
        %p254 = scmp.lt.s32.totalorder %s251, 5
        %s255 = scalar_select %p254, %s251, 5
        %s256 = smul.addr %s253, 6
        %s257 = sadd.s32 %s255, %s256
        %s258 = smul.addr %s257, 8
        %s259 = scalar_lea.vmem %s0, %s258
        %s260 = smul.u32 6, %s23
      $region40: #{imdecoder_forward.1} parent=35 // pred_fallthru
        _
      // Predicated region
      $region41: #{imdecoder_forward.1} parent=35 // pred_check
        %p261 = pneg %p75
      $region42: #{imdecoder_forward.1} parent=35 // pred_check_branch
        %263 = sbr.rel (%p261) target = $region44
      $region43: #{imdecoder_forward.1} parent=35 // pred_region
        %p264 = scmp.lt.s32.totalorder %s22, 1
        %s265 = scalar_select %p264, %s22, 1
        %s266 = smul.addr %s265, 92
        %s267 = smul.addr %s266, 8
        %s268 = scalar_lea.vmem %s1, %s267
      $region44: #{imdecoder_forward.1} parent=35 // pred_fallthru
        _
    $region36: #{imdecoder_forward.1} parent=5 // pred_fallthru
      _
    %p269 = scmp.le.s32.totalorder 1, %s15
    %p270 = scmp.lt.s32.totalorder %s15, 3
    %p271 = pnand %p269, %p270
    %p272 = pneg %p271
    // Predicated region
    $region45: #{imdecoder_forward.1} parent=5 // pred_check
      _
    $region46: #{imdecoder_forward.1} parent=5 // pred_check_branch
      %274 = sbr.rel (%p271) target = $region48
    $region47: #{imdecoder_forward.1} parent=5 // pred_region
      %s275 = ssub.s32 %s15, 1
      %s276 = smul.u32 6, %s25
      %p277 = scmp.lt.s32.totalorder %s24, 1
      %s278 = scalar_select %p277, %s24, 1
      %p279 = scmp.lt.s32.totalorder %s276, 5
      %s280 = scalar_select %p279, %s276, 5
      %s281 = smul.addr %s278, 6
      %s282 = sadd.s32 %s280, %s281
      %s283 = smul.addr %s282, 8
      %s284 = scalar_lea.vmem %s0, %s283
      %p285 = pneg %p55
      %p286 = pneg %p52
      %p287 = scmp.lt.s32.totalorder %s24, 1
      %s288 = scalar_select %p287, %s24, 1
      %s289 = smul.addr %s288, 92
      %s290 = smul.addr %s289, 8
      %s291 = scalar_lea.vmem %s1, %s290
      %p292 = pneg %p81
      %p293 = pneg %p78
      %p294 = pneg %p102
      %p295 = pneg %p99
      %p296 = pneg %p123
      %p297 = pneg %p120
      %p298 = pneg %p144
      %p299 = pneg %p141
      %p300 = pneg %p165
      %p301 = pneg %p162
      %p302 = pneg %p186
      %p303 = pneg %p183
      %p304 = pneg %p214
      %p305 = pneg %p211
      %s306 = smul.u32 6, %s25
      %p307 = scmp.lt.s32.totalorder %s24, 1
      %s308 = scalar_select %p307, %s24, 1
      %p309 = scmp.lt.s32.totalorder %s306, 5
      %s310 = scalar_select %p309, %s306, 5
      %s311 = smul.addr %s308, 6
      %s312 = sadd.s32 %s310, %s311
      %s313 = scalar_lea.vmem %s7, %s312
      %s314 = smul.u32 6, %s25
      %p315 = scmp.lt.s32.totalorder %s24, 1
      %s316 = scalar_select %p315, %s24, 1
      %p317 = scmp.lt.s32.totalorder %s314, 5
      %s318 = scalar_select %p317, %s314, 5
      %s319 = smul.addr %s316, 6
      %s320 = sadd.s32 %s318, %s319
      %s321 = smul.addr %s320, 8
      %s322 = scalar_lea.vmem %s0, %s321
      %s323 = smul.u32 6, %s25
      %p324 = scmp.lt.s32.totalorder %s24, 1
      %s325 = scalar_select %p324, %s24, 1
      %s326 = smul.addr %s325, 92
      %s327 = smul.addr %s326, 8
      %s328 = scalar_lea.vmem %s1, %s327
      %s329 = smul.u32 6, %s25
      %p330 = scmp.lt.s32.totalorder %s24, 1
      %s331 = scalar_select %p330, %s24, 1
      %p332 = scmp.lt.s32.totalorder %s329, 5
      %s333 = scalar_select %p332, %s329, 5
      %s334 = smul.addr %s331, 6
      %s335 = sadd.s32 %s333, %s334
      %s336 = scalar_lea.vmem %s7, %s335
      %s337 = smul.u32 6, %s25
      %v339 = vld [vmem:[%s322] sm:$0xff]
      %v340 = vld [vmem:[%s322 + $0x8] sm:$0xff]
      %v341 = vld [vmem:[%s322 + $0x10] sm:$0xff]
      %v342 = vld [vmem:[%s322 + $0x18] sm:$0xff]
      %v343 = vld [vmem:[%s322 + $0x20] sm:$0xff]
      %v344 = vld [vmem:[%s322 + $0x28] sm:$0xff]
      %v345 = vld [vmem:[%s328] sm:$0xff]
      %v346 = vld [vmem:[%s328 + $0x8] sm:$0xff]
      %v347 = vld [vmem:[%s328 + $0x10] sm:$0xff]
      %v348 = vld [vmem:[%s328 + $0x18] sm:$0xff]
      %v349 = vld [vmem:[%s328 + $0x20] sm:$0xff]
      %v350 = vld [vmem:[%s328 + $0x28] sm:$0xff]
      %v351 = vld [vmem:[%s328 + $0x30] sm:$0xff]
      %v352 = vld [vmem:[%s328 + $0x38] sm:$0xff]
      %v353 = vld [vmem:[%s328 + $0x40] sm:$0xff]
      %v354 = vld [vmem:[%s328 + $0x48] sm:$0xff]
      %v355 = vld [vmem:[%s328 + $0x50] sm:$0xff]
      %v356 = vld [vmem:[%s328 + $0x58] sm:$0xff]
      %v357 = vld [vmem:[%s328 + $0x60] sm:$0xff]
      %v358 = vld [vmem:[%s328 + $0x68] sm:$0xff]
      %v359 = vld [vmem:[%s328 + $0x70] sm:$0xff]
      %v360 = vld [vmem:[%s328 + $0x78] sm:$0xff]
      %v361 = vld [vmem:[%s328 + $0x80] sm:$0xff]
      %v362 = vld [vmem:[%s328 + $0x88] sm:$0xff]
      %v363 = vld [vmem:[%s328 + $0x90] sm:$0xff]
      %v364 = vld [vmem:[%s328 + $0x98] sm:$0xff]
      %v365 = vld [vmem:[%s328 + $0xa0] sm:$0xff]
      %v366 = vld [vmem:[%s328 + $0xa8] sm:$0xff]
      %v367 = vld [vmem:[%s328 + $0xb0] sm:$0xff]
      %v368 = vld [vmem:[%s328 + $0xb8] sm:$0xff]
      %v369 = vld [vmem:[%s328 + $0xc0] sm:$0xff]
      %v370 = vld [vmem:[%s328 + $0xc8] sm:$0xff]
      %v371 = vld [vmem:[%s328 + $0xd0] sm:$0xff]
      %v372 = vld [vmem:[%s328 + $0xd8] sm:$0xff]
      %v373 = vld [vmem:[%s328 + $0xe0] sm:$0xff]
      %v374 = vld [vmem:[%s328 + $0xe8] sm:$0xff]
      %v375 = vld [vmem:[%s328 + $0xf0] sm:$0xff]
      %v376 = vld [vmem:[%s328 + $0xf8] sm:$0xff]
      %v377 = vld [vmem:[%s328 + $0x100] sm:$0xff]
      %v378 = vld [vmem:[%s328 + $0x108] sm:$0xff]
      %v379 = vld [vmem:[%s328 + $0x110] sm:$0xff]
      %v380 = vld [vmem:[%s328 + $0x118] sm:$0xff]
      %v381 = vld [vmem:[%s328 + $0x120] sm:$0xff]
      %v382 = vld [vmem:[%s328 + $0x128] sm:$0xff]
      %v383 = vld [vmem:[%s328 + $0x130] sm:$0xff]
      %v384 = vld [vmem:[%s328 + $0x138] sm:$0xff]
      %v385 = vld [vmem:[%s328 + $0x140] sm:$0xff]
      %v386 = vld [vmem:[%s328 + $0x148] sm:$0xff]
      %v387 = vld [vmem:[%s328 + $0x150] sm:$0xff]
      %v388 = vld [vmem:[%s328 + $0x158] sm:$0xff]
      %v389 = vld [vmem:[%s328 + $0x160] sm:$0xff]
      %v390 = vld [vmem:[%s328 + $0x168] sm:$0xff]
      %v391 = vld [vmem:[%s328 + $0x170] sm:$0xff]
      %v392 = vld [vmem:[%s328 + $0x178] sm:$0xff]
      %v393 = vld [vmem:[%s328 + $0x180] sm:$0xff]
      %v394 = vld [vmem:[%s328 + $0x188] sm:$0xff]
      %v395 = vld [vmem:[%s328 + $0x190] sm:$0xff]
      %v396 = vld [vmem:[%s328 + $0x198] sm:$0xff]
      %v397 = vld [vmem:[%s328 + $0x1a0] sm:$0xff]
      %v398 = vld [vmem:[%s328 + $0x1a8] sm:$0xff]
      %v399 = vld [vmem:[%s328 + $0x1b0] sm:$0xff]
      %v400 = vld [vmem:[%s328 + $0x1b8] sm:$0xff]
      %v401 = vld [vmem:[%s328 + $0x1c0] sm:$0xff]
      %v402 = vld [vmem:[%s328 + $0x1c8] sm:$0xff]
      %v403 = vld [vmem:[%s328 + $0x1d0] sm:$0xff]
      %v404 = vld [vmem:[%s328 + $0x1d8] sm:$0xff]
      %v405 = vld [vmem:[%s328 + $0x1e0] sm:$0xff]
      %v406 = vld [vmem:[%s328 + $0x1e8] sm:$0xff]
      %v407 = vld [vmem:[%s328 + $0x1f0] sm:$0xff]
      %v408 = vld [vmem:[%s328 + $0x1f8] sm:$0xff]
      %vm409 = vcmask 64512
      %v411 = vsel %vm409, %v345, 0
      %v414 = vsel %vm409, %v346, 0
      %v417 = vsel %vm409, %v347, 0
      %v420 = vsel %vm409, %v348, 0
      %v423 = vsel %vm409, %v349, 0
      %v426 = vsel %vm409, %v350, 0
      %v429 = vsel %vm409, %v351, 0
      %v432 = vsel %vm409, %v352, 0
      %v435 = vsel %vm409, %v353, 0
      %v438 = vsel %vm409, %v354, 0
      %v441 = vsel %vm409, %v355, 0
      %v444 = vsel %vm409, %v356, 0
      %v447 = vsel %vm409, %v357, 0
      %v450 = vsel %vm409, %v358, 0
      %v453 = vsel %vm409, %v359, 0
      %v456 = vsel %vm409, %v360, 0
      %v459 = vsel %vm409, %v361, 0
      %v462 = vsel %vm409, %v362, 0
      %v465 = vsel %vm409, %v363, 0
      %v468 = vsel %vm409, %v364, 0
      %v471 = vsel %vm409, %v365, 0
      %v474 = vsel %vm409, %v366, 0
      %v477 = vsel %vm409, %v367, 0
      %v480 = vsel %vm409, %v368, 0
      %v483 = vsel %vm409, %v369, 0
      %v486 = vsel %vm409, %v370, 0
      %v489 = vsel %vm409, %v371, 0
      %v492 = vsel %vm409, %v372, 0
      %v495 = vsel %vm409, %v373, 0
      %v498 = vsel %vm409, %v374, 0
      %v501 = vsel %vm409, %v375, 0
      %v504 = vsel %vm409, %v376, 0
      %v507 = vsel %vm409, %v377, 0
      %v510 = vsel %vm409, %v378, 0
      %v513 = vsel %vm409, %v379, 0
      %v516 = vsel %vm409, %v380, 0
      %v519 = vsel %vm409, %v381, 0
      %v522 = vsel %vm409, %v382, 0
      %v525 = vsel %vm409, %v383, 0
      %v528 = vsel %vm409, %v384, 0
      %v531 = vsel %vm409, %v385, 0
      %v534 = vsel %vm409, %v386, 0
      %v537 = vsel %vm409, %v387, 0
      %v540 = vsel %vm409, %v388, 0
      %v543 = vsel %vm409, %v389, 0
      %v546 = vsel %vm409, %v390, 0
      %v549 = vsel %vm409, %v391, 0
      %v552 = vsel %vm409, %v392, 0
      %v555 = vsel %vm409, %v393, 0
      %v558 = vsel %vm409, %v394, 0
      %v561 = vsel %vm409, %v395, 0
      %v564 = vsel %vm409, %v396, 0
      %v567 = vsel %vm409, %v397, 0
      %v570 = vsel %vm409, %v398, 0
      %v573 = vsel %vm409, %v399, 0
      %v576 = vsel %vm409, %v400, 0
      %v579 = vsel %vm409, %v401, 0
      %v582 = vsel %vm409, %v402, 0
      %v585 = vsel %vm409, %v403, 0
      %v588 = vsel %vm409, %v404, 0
      %v591 = vsel %vm409, %v405, 0
      %v594 = vsel %vm409, %v406, 0
      %v597 = vsel %vm409, %v407, 0
      %v600 = vsel %vm409, %v408, 0
      %602 = vmatprep.subr.mxu0 0.0
      %603 = vmatpush1.msra.mxu0 0.0
      %604 = vmatprep.subr.mxu0 0.0
      %605 = vmatpush1.msra.mxu0 0.0
      %606 = vmatprep.subr.mxu0 0.0
      %607 = vmatpush1.msra.mxu0 0.0
      %608 = vmatprep.subr.mxu0 0.0
      %609 = vmatpush1.msra.mxu0 0.0
      %610 = vmatprep.subr.mxu0 0.0
      %611 = vmatpush1.msra.mxu0 0.0
      %612 = vmatprep.subr.mxu0 0.0
      %613 = vmatpush1.msra.mxu0 0.0
      %614 = vmatprep.subr.mxu0 0.0
      %615 = vmatpush1.msra.mxu0 0.0
      %616 = vmatprep.subr.mxu0 0.0
      %617 = vmatpush1.msra.mxu0 0.0
      %618 = vmatprep.subr.mxu0 0.0
      %619 = vmatpush1.msra.mxu0 0.0
      %620 = vmatprep.subr.mxu0 0.0
      %621 = vmatpush1.msra.mxu0 0.0
      %622 = vmatprep.subr.mxu0 0.0
      %623 = vmatpush1.msra.mxu0 0.0
      %624 = vmatprep.subr.mxu0 0.0
      %625 = vmatpush1.msra.mxu0 0.0
      %626 = vmatprep.subr.mxu0 0.0
      %627 = vmatpush1.msra.mxu0 0.0
      %628 = vmatprep.subr.mxu0 0.0
      %629 = vmatpush1.msra.mxu0 0.0
      %630 = vmatprep.subr.mxu0 0.0
      %631 = vmatpush1.msra.mxu0 0.0
      %632 = vmatprep.subr.mxu0 %v340
      %633 = vmatpush1.msra.mxu0 %v339
      %634 = vmatprep.subr.mxu0 0.0
      %635 = vmatpush2.msra.mxu0 0.0
      %636 = vmatprep.subr.mxu0 0.0
      %637 = vmatpush2.msra.mxu0 0.0
      %638 = vmatprep.subr.mxu0 0.0
      %639 = vmatpush2.msra.mxu0 0.0
      %640 = vmatprep.subr.mxu0 0.0
      %641 = vmatpush2.msra.mxu0 0.0
      %642 = vmatprep.subr.mxu0 0.0
      %643 = vmatpush2.msra.mxu0 0.0
      %644 = vmatprep.subr.mxu0 0.0
      %645 = vmatpush2.msra.mxu0 0.0
      %646 = vmatprep.subr.mxu0 0.0
      %647 = vmatpush2.msra.mxu0 0.0
      %648 = vmatprep.subr.mxu0 0.0
      %649 = vmatpush2.msra.mxu0 0.0
      %650 = vmatprep.subr.mxu0 0.0
      %651 = vmatpush2.msra.mxu0 0.0
      %652 = vmatprep.subr.mxu0 0.0
      %653 = vmatpush2.msra.mxu0 0.0
      %654 = vmatprep.subr.mxu0 0.0
      %655 = vmatpush2.msra.mxu0 0.0
      %656 = vmatprep.subr.mxu0 0.0
      %657 = vmatpush2.msra.mxu0 0.0
      %658 = vmatprep.subr.mxu0 0.0
      %659 = vmatpush2.msra.mxu0 0.0
      %660 = vmatprep.subr.mxu0 0.0
      %661 = vmatpush2.msra.mxu0 0.0
      %662 = vmatprep.subr.mxu0 0.0
      %663 = vmatpush2.msra.mxu0 0.0
      %664 = vmatprep.subr.mxu0 0.0
      %665 = vmatpush2.msra.mxu0 0.0
      %666 = vmatprep.mubr.f32.mxu0 0.0
      %667 = vmatmul.mubr.f32.gmra.mxu0 %v411
      %v668 = vpop.f32.mrf.mxu0
      %v669 = vadd.f32 0.0, %v668
      %v670 = vpop.f32.mrf.mxu0
      %v671 = vadd.f32 0.0, %v670
      %672 = vmatprep.mubr.f32.mxu0 0.0
      %673 = vmatmul.mubr.f32.gmra.mxu0 %v414
      %v674 = vpop.f32.mrf.mxu0
      %v675 = vadd.f32 0.0, %v674
      %v676 = vpop.f32.mrf.mxu0
      %v677 = vadd.f32 0.0, %v676
      %678 = vmatprep.mubr.f32.mxu0 0.0
      %679 = vmatmul.mubr.f32.gmra.mxu0 %v417
      %v680 = vpop.f32.mrf.mxu0
      %v681 = vadd.f32 0.0, %v680
      %v682 = vpop.f32.mrf.mxu0
      %v683 = vadd.f32 0.0, %v682
      %684 = vmatprep.mubr.f32.mxu0 0.0
      %685 = vmatmul.mubr.f32.gmra.mxu0 %v420
      %v686 = vpop.f32.mrf.mxu0
      %v687 = vadd.f32 0.0, %v686
      %v688 = vpop.f32.mrf.mxu0
      %v689 = vadd.f32 0.0, %v688
      %690 = vmatprep.mubr.f32.mxu0 0.0
      %691 = vmatmul.mubr.f32.gmra.mxu0 %v423
      %v692 = vpop.f32.mrf.mxu0
      %v693 = vadd.f32 0.0, %v692
      %v694 = vpop.f32.mrf.mxu0
      %v695 = vadd.f32 0.0, %v694
      %696 = vmatprep.mubr.f32.mxu0 0.0
      %697 = vmatmul.mubr.f32.gmra.mxu0 %v426
      %v698 = vpop.f32.mrf.mxu0
      %v699 = vadd.f32 0.0, %v698
      %v700 = vpop.f32.mrf.mxu0
      %v701 = vadd.f32 0.0, %v700
      %702 = vmatprep.mubr.f32.mxu0 0.0
      %703 = vmatmul.mubr.f32.gmra.mxu0 %v429
      %v704 = vpop.f32.mrf.mxu0
      %v705 = vadd.f32 0.0, %v704
      %v706 = vpop.f32.mrf.mxu0
      %v707 = vadd.f32 0.0, %v706
      %708 = vmatprep.mubr.f32.mxu0 0.0
      %709 = vmatmul.mubr.f32.gmra.mxu0 %v432
      %v710 = vpop.f32.mrf.mxu0
      %v711 = vadd.f32 0.0, %v710
      %v712 = vpop.f32.mrf.mxu0
      %v713 = vadd.f32 0.0, %v712
      %714 = vmatprep.mubr.f32.mxu0 0.0
      %715 = vmatmul.mubr.f32.gmra.mxu0 %v435
      %v716 = vpop.f32.mrf.mxu0
      %v717 = vadd.f32 0.0, %v716
      %v718 = vpop.f32.mrf.mxu0
      %v719 = vadd.f32 0.0, %v718
      %720 = vmatprep.mubr.f32.mxu0 0.0
      %721 = vmatmul.mubr.f32.gmra.mxu0 %v438
      %v722 = vpop.f32.mrf.mxu0
      %v723 = vadd.f32 0.0, %v722
      %v724 = vpop.f32.mrf.mxu0
      %v725 = vadd.f32 0.0, %v724
      %726 = vmatprep.mubr.f32.mxu0 0.0
      %727 = vmatmul.mubr.f32.gmra.mxu0 %v441
      %v728 = vpop.f32.mrf.mxu0
      %v729 = vadd.f32 0.0, %v728
      %v730 = vpop.f32.mrf.mxu0
      %v731 = vadd.f32 0.0, %v730
      %732 = vmatprep.mubr.f32.mxu0 0.0
      %733 = vmatmul.mubr.f32.gmra.mxu0 %v444
      %v734 = vpop.f32.mrf.mxu0
      %v735 = vadd.f32 0.0, %v734
      %v736 = vpop.f32.mrf.mxu0
      %v737 = vadd.f32 0.0, %v736
      %738 = vmatprep.mubr.f32.mxu0 0.0
      %739 = vmatmul.mubr.f32.gmra.mxu0 %v447
      %v740 = vpop.f32.mrf.mxu0
      %v741 = vadd.f32 0.0, %v740
      %v742 = vpop.f32.mrf.mxu0
      %v743 = vadd.f32 0.0, %v742
      %744 = vmatprep.mubr.f32.mxu0 0.0
      %745 = vmatmul.mubr.f32.gmra.mxu0 %v450
      %v746 = vpop.f32.mrf.mxu0
      %v747 = vadd.f32 0.0, %v746
      %v748 = vpop.f32.mrf.mxu0
      %v749 = vadd.f32 0.0, %v748
      %750 = vmatprep.mubr.f32.mxu0 0.0
      %751 = vmatmul.mubr.f32.gmra.mxu0 %v453
      %v752 = vpop.f32.mrf.mxu0
      %v753 = vadd.f32 0.0, %v752
      %v754 = vpop.f32.mrf.mxu0
      %v755 = vadd.f32 0.0, %v754
      %756 = vmatprep.mubr.f32.mxu0 0.0
      %757 = vmatmul.mubr.f32.gmra.mxu0 %v456
      %v758 = vpop.f32.mrf.mxu0
      %v759 = vadd.f32 0.0, %v758
      %v760 = vpop.f32.mrf.mxu0
      %v761 = vadd.f32 0.0, %v760
      %762 = vmatprep.mubr.f32.mxu0 0.0
      %763 = vmatmul.mubr.f32.gmra.mxu0 %v459
      %v764 = vpop.f32.mrf.mxu0
      %v765 = vadd.f32 0.0, %v764
      %v766 = vpop.f32.mrf.mxu0
      %v767 = vadd.f32 0.0, %v766
      %768 = vmatprep.mubr.f32.mxu0 0.0
      %769 = vmatmul.mubr.f32.gmra.mxu0 %v462
      %v770 = vpop.f32.mrf.mxu0
      %v771 = vadd.f32 0.0, %v770
      %v772 = vpop.f32.mrf.mxu0
      %v773 = vadd.f32 0.0, %v772
      %774 = vmatprep.mubr.f32.mxu0 0.0
      %775 = vmatmul.mubr.f32.gmra.mxu0 %v465
      %v776 = vpop.f32.mrf.mxu0
      %v777 = vadd.f32 0.0, %v776
      %v778 = vpop.f32.mrf.mxu0
      %v779 = vadd.f32 0.0, %v778
      %780 = vmatprep.mubr.f32.mxu0 0.0
      %781 = vmatmul.mubr.f32.gmra.mxu0 %v468
      %v782 = vpop.f32.mrf.mxu0
      %v783 = vadd.f32 0.0, %v782
      %v784 = vpop.f32.mrf.mxu0
      %v785 = vadd.f32 0.0, %v784
      %786 = vmatprep.mubr.f32.mxu0 0.0
      %787 = vmatmul.mubr.f32.gmra.mxu0 %v471
      %v788 = vpop.f32.mrf.mxu0
      %v789 = vadd.f32 0.0, %v788
      %v790 = vpop.f32.mrf.mxu0
      %v791 = vadd.f32 0.0, %v790
      %792 = vmatprep.mubr.f32.mxu0 0.0
      %793 = vmatmul.mubr.f32.gmra.mxu0 %v474
      %v794 = vpop.f32.mrf.mxu0
      %v795 = vadd.f32 0.0, %v794
      %v796 = vpop.f32.mrf.mxu0
      %v797 = vadd.f32 0.0, %v796
      %798 = vmatprep.mubr.f32.mxu0 0.0
      %799 = vmatmul.mubr.f32.gmra.mxu0 %v477
      %v800 = vpop.f32.mrf.mxu0
      %v801 = vadd.f32 0.0, %v800
      %v802 = vpop.f32.mrf.mxu0
      %v803 = vadd.f32 0.0, %v802
      %804 = vmatprep.mubr.f32.mxu0 0.0
      %805 = vmatmul.mubr.f32.gmra.mxu0 %v480
      %v806 = vpop.f32.mrf.mxu0
      %v807 = vadd.f32 0.0, %v806
      %v808 = vpop.f32.mrf.mxu0
      %v809 = vadd.f32 0.0, %v808
      %810 = vmatprep.mubr.f32.mxu0 0.0
      %811 = vmatmul.mubr.f32.gmra.mxu0 %v483
      %v812 = vpop.f32.mrf.mxu0
      %v813 = vadd.f32 0.0, %v812
      %v814 = vpop.f32.mrf.mxu0
      %v815 = vadd.f32 0.0, %v814
      %816 = vmatprep.mubr.f32.mxu0 0.0
      %817 = vmatmul.mubr.f32.gmra.mxu0 %v486
      %v818 = vpop.f32.mrf.mxu0
      %v819 = vadd.f32 0.0, %v818
      %v820 = vpop.f32.mrf.mxu0
      %v821 = vadd.f32 0.0, %v820
      %822 = vmatprep.mubr.f32.mxu0 0.0
      %823 = vmatmul.mubr.f32.gmra.mxu0 %v489
      %v824 = vpop.f32.mrf.mxu0
      %v825 = vadd.f32 0.0, %v824
      %v826 = vpop.f32.mrf.mxu0
      %v827 = vadd.f32 0.0, %v826
      %828 = vmatprep.mubr.f32.mxu0 0.0
      %829 = vmatmul.mubr.f32.gmra.mxu0 %v492
      %v830 = vpop.f32.mrf.mxu0
      %v831 = vadd.f32 0.0, %v830
      %v832 = vpop.f32.mrf.mxu0
      %v833 = vadd.f32 0.0, %v832
      %834 = vmatprep.mubr.f32.mxu0 0.0
      %835 = vmatmul.mubr.f32.gmra.mxu0 %v495
      %v836 = vpop.f32.mrf.mxu0
      %v837 = vadd.f32 0.0, %v836
      %v838 = vpop.f32.mrf.mxu0
      %v839 = vadd.f32 0.0, %v838
      %840 = vmatprep.mubr.f32.mxu0 0.0
      %841 = vmatmul.mubr.f32.gmra.mxu0 %v498
      %v842 = vpop.f32.mrf.mxu0
      %v843 = vadd.f32 0.0, %v842
      %v844 = vpop.f32.mrf.mxu0
      %v845 = vadd.f32 0.0, %v844
      %846 = vmatprep.mubr.f32.mxu0 0.0
      %847 = vmatmul.mubr.f32.gmra.mxu0 %v501
      %v848 = vpop.f32.mrf.mxu0
      %v849 = vadd.f32 0.0, %v848
      %v850 = vpop.f32.mrf.mxu0
      %v851 = vadd.f32 0.0, %v850
      %852 = vmatprep.mubr.f32.mxu0 0.0
      %853 = vmatmul.mubr.f32.gmra.mxu0 %v504
      %v854 = vpop.f32.mrf.mxu0
      %v855 = vadd.f32 0.0, %v854
      %v856 = vpop.f32.mrf.mxu0
      %v857 = vadd.f32 0.0, %v856
      %858 = vmatprep.mubr.f32.mxu0 0.0
      %859 = vmatmul.mubr.f32.gmra.mxu0 %v507
      %v860 = vpop.f32.mrf.mxu0
      %v861 = vadd.f32 0.0, %v860
      %v862 = vpop.f32.mrf.mxu0
      %v863 = vadd.f32 0.0, %v862
      %864 = vmatprep.mubr.f32.mxu0 0.0
      %865 = vmatmul.mubr.f32.gmra.mxu0 %v510
      %v866 = vpop.f32.mrf.mxu0
      %v867 = vadd.f32 0.0, %v866
      %v868 = vpop.f32.mrf.mxu0
      %v869 = vadd.f32 0.0, %v868
      %870 = vmatprep.mubr.f32.mxu0 0.0
      %871 = vmatmul.mubr.f32.gmra.mxu0 %v513
      %v872 = vpop.f32.mrf.mxu0
      %v873 = vadd.f32 0.0, %v872
      %v874 = vpop.f32.mrf.mxu0
      %v875 = vadd.f32 0.0, %v874
      %876 = vmatprep.mubr.f32.mxu0 0.0
      %877 = vmatmul.mubr.f32.gmra.mxu0 %v516
      %v878 = vpop.f32.mrf.mxu0
      %v879 = vadd.f32 0.0, %v878
      %v880 = vpop.f32.mrf.mxu0
      %v881 = vadd.f32 0.0, %v880
      %882 = vmatprep.mubr.f32.mxu0 0.0
      %883 = vmatmul.mubr.f32.gmra.mxu0 %v519
      %v884 = vpop.f32.mrf.mxu0
      %v885 = vadd.f32 0.0, %v884
      %v886 = vpop.f32.mrf.mxu0
      %v887 = vadd.f32 0.0, %v886
      %888 = vmatprep.mubr.f32.mxu0 0.0
      %889 = vmatmul.mubr.f32.gmra.mxu0 %v522
      %v890 = vpop.f32.mrf.mxu0
      %v891 = vadd.f32 0.0, %v890
      %v892 = vpop.f32.mrf.mxu0
      %v893 = vadd.f32 0.0, %v892
      %894 = vmatprep.mubr.f32.mxu0 0.0
      %895 = vmatmul.mubr.f32.gmra.mxu0 %v525
      %v896 = vpop.f32.mrf.mxu0
      %v897 = vadd.f32 0.0, %v896
      %v898 = vpop.f32.mrf.mxu0
      %v899 = vadd.f32 0.0, %v898
      %900 = vmatprep.mubr.f32.mxu0 0.0
      %901 = vmatmul.mubr.f32.gmra.mxu0 %v528
      %v902 = vpop.f32.mrf.mxu0
      %v903 = vadd.f32 0.0, %v902
      %v904 = vpop.f32.mrf.mxu0
      %v905 = vadd.f32 0.0, %v904
      %906 = vmatprep.mubr.f32.mxu0 0.0
      %907 = vmatmul.mubr.f32.gmra.mxu0 %v531
      %v908 = vpop.f32.mrf.mxu0
      %v909 = vadd.f32 0.0, %v908
      %v910 = vpop.f32.mrf.mxu0
      %v911 = vadd.f32 0.0, %v910
      %912 = vmatprep.mubr.f32.mxu0 0.0
      %913 = vmatmul.mubr.f32.gmra.mxu0 %v534
      %v914 = vpop.f32.mrf.mxu0
      %v915 = vadd.f32 0.0, %v914
      %v916 = vpop.f32.mrf.mxu0
      %v917 = vadd.f32 0.0, %v916
      %918 = vmatprep.mubr.f32.mxu0 0.0
      %919 = vmatmul.mubr.f32.gmra.mxu0 %v537
      %v920 = vpop.f32.mrf.mxu0
      %v921 = vadd.f32 0.0, %v920
      %v922 = vpop.f32.mrf.mxu0
      %v923 = vadd.f32 0.0, %v922
      %924 = vmatprep.mubr.f32.mxu0 0.0
      %925 = vmatmul.mubr.f32.gmra.mxu0 %v540
      %v926 = vpop.f32.mrf.mxu0
      %v927 = vadd.f32 0.0, %v926
      %v928 = vpop.f32.mrf.mxu0
      %v929 = vadd.f32 0.0, %v928
      %930 = vmatprep.mubr.f32.mxu0 0.0
      %931 = vmatmul.mubr.f32.gmra.mxu0 %v543
      %v932 = vpop.f32.mrf.mxu0
      %v933 = vadd.f32 0.0, %v932
      %v934 = vpop.f32.mrf.mxu0
      %v935 = vadd.f32 0.0, %v934
      %936 = vmatprep.mubr.f32.mxu0 0.0
      %937 = vmatmul.mubr.f32.gmra.mxu0 %v546
      %v938 = vpop.f32.mrf.mxu0
      %v939 = vadd.f32 0.0, %v938
      %v940 = vpop.f32.mrf.mxu0
      %v941 = vadd.f32 0.0, %v940
      %942 = vmatprep.mubr.f32.mxu0 0.0
      %943 = vmatmul.mubr.f32.gmra.mxu0 %v549
      %v944 = vpop.f32.mrf.mxu0
      %v945 = vadd.f32 0.0, %v944
      %v946 = vpop.f32.mrf.mxu0
      %v947 = vadd.f32 0.0, %v946
      %948 = vmatprep.mubr.f32.mxu0 0.0
      %949 = vmatmul.mubr.f32.gmra.mxu0 %v552
      %v950 = vpop.f32.mrf.mxu0
      %v951 = vadd.f32 0.0, %v950
      %v952 = vpop.f32.mrf.mxu0
      %v953 = vadd.f32 0.0, %v952
      %954 = vmatprep.mubr.f32.mxu0 0.0
      %955 = vmatmul.mubr.f32.gmra.mxu0 %v555
      %v956 = vpop.f32.mrf.mxu0
      %v957 = vadd.f32 0.0, %v956
      %v958 = vpop.f32.mrf.mxu0
      %v959 = vadd.f32 0.0, %v958
      %960 = vmatprep.mubr.f32.mxu0 0.0
      %961 = vmatmul.mubr.f32.gmra.mxu0 %v558
      %v962 = vpop.f32.mrf.mxu0
      %v963 = vadd.f32 0.0, %v962
      %v964 = vpop.f32.mrf.mxu0
      %v965 = vadd.f32 0.0, %v964
      %966 = vmatprep.mubr.f32.mxu0 0.0
      %967 = vmatmul.mubr.f32.gmra.mxu0 %v561
      %v968 = vpop.f32.mrf.mxu0
      %v969 = vadd.f32 0.0, %v968
      %v970 = vpop.f32.mrf.mxu0
      %v971 = vadd.f32 0.0, %v970
      %972 = vmatprep.mubr.f32.mxu0 0.0
      %973 = vmatmul.mubr.f32.gmra.mxu0 %v564
      %v974 = vpop.f32.mrf.mxu0
      %v975 = vadd.f32 0.0, %v974
      %v976 = vpop.f32.mrf.mxu0
      %v977 = vadd.f32 0.0, %v976
      %978 = vmatprep.mubr.f32.mxu0 0.0
      %979 = vmatmul.mubr.f32.gmra.mxu0 %v567
      %v980 = vpop.f32.mrf.mxu0
      %v981 = vadd.f32 0.0, %v980
      %v982 = vpop.f32.mrf.mxu0
      %v983 = vadd.f32 0.0, %v982
      %984 = vmatprep.mubr.f32.mxu0 0.0
      %985 = vmatmul.mubr.f32.gmra.mxu0 %v570
      %v986 = vpop.f32.mrf.mxu0
      %v987 = vadd.f32 0.0, %v986
      %v988 = vpop.f32.mrf.mxu0
      %v989 = vadd.f32 0.0, %v988
      %990 = vmatprep.mubr.f32.mxu0 0.0
      %991 = vmatmul.mubr.f32.gmra.mxu0 %v573
      %v992 = vpop.f32.mrf.mxu0
      %v993 = vadd.f32 0.0, %v992
      %v994 = vpop.f32.mrf.mxu0
      %v995 = vadd.f32 0.0, %v994
      %996 = vmatprep.mubr.f32.mxu0 0.0
      %997 = vmatmul.mubr.f32.gmra.mxu0 %v576
      %v998 = vpop.f32.mrf.mxu0
      %v999 = vadd.f32 0.0, %v998
      %v1000 = vpop.f32.mrf.mxu0
      %v1001 = vadd.f32 0.0, %v1000
      %1002 = vmatprep.mubr.f32.mxu0 0.0
      %1003 = vmatmul.mubr.f32.gmra.mxu0 %v579
      %v1004 = vpop.f32.mrf.mxu0
      %v1005 = vadd.f32 0.0, %v1004
      %v1006 = vpop.f32.mrf.mxu0
      %v1007 = vadd.f32 0.0, %v1006
      %1008 = vmatprep.mubr.f32.mxu0 0.0
      %1009 = vmatmul.mubr.f32.gmra.mxu0 %v582
      %v1010 = vpop.f32.mrf.mxu0
      %v1011 = vadd.f32 0.0, %v1010
      %v1012 = vpop.f32.mrf.mxu0
      %v1013 = vadd.f32 0.0, %v1012
      %1014 = vmatprep.mubr.f32.mxu0 0.0
      %1015 = vmatmul.mubr.f32.gmra.mxu0 %v585
      %v1016 = vpop.f32.mrf.mxu0
      %v1017 = vadd.f32 0.0, %v1016
      %v1018 = vpop.f32.mrf.mxu0
      %v1019 = vadd.f32 0.0, %v1018
      %1020 = vmatprep.mubr.f32.mxu0 0.0
      %1021 = vmatmul.mubr.f32.gmra.mxu0 %v588
      %v1022 = vpop.f32.mrf.mxu0
      %v1023 = vadd.f32 0.0, %v1022
      %v1024 = vpop.f32.mrf.mxu0
      %v1025 = vadd.f32 0.0, %v1024
      %1026 = vmatprep.mubr.f32.mxu0 0.0
      %1027 = vmatmul.mubr.f32.gmra.mxu0 %v591
      %v1028 = vpop.f32.mrf.mxu0
      %v1029 = vadd.f32 0.0, %v1028
      %v1030 = vpop.f32.mrf.mxu0
      %v1031 = vadd.f32 0.0, %v1030
      %1032 = vmatprep.mubr.f32.mxu0 0.0
      %1033 = vmatmul.mubr.f32.gmra.mxu0 %v594
      %v1034 = vpop.f32.mrf.mxu0
      %v1035 = vadd.f32 0.0, %v1034
      %v1036 = vpop.f32.mrf.mxu0
      %v1037 = vadd.f32 0.0, %v1036
      %1038 = vmatprep.mubr.f32.mxu0 0.0
      %1039 = vmatmul.mubr.f32.gmra.mxu0 %v597
      %v1040 = vpop.f32.mrf.mxu0
      %v1041 = vadd.f32 0.0, %v1040
      %v1042 = vpop.f32.mrf.mxu0
      %v1043 = vadd.f32 0.0, %v1042
      %1044 = vmatprep.mubr.f32.mxu0 0.0
      %1045 = vmatmul.mubr.f32.gmra.mxu0 %v600
      %v1046 = vpop.f32.mrf.mxu0
      %v1047 = vadd.f32 0.0, %v1046
      %v1048 = vpop.f32.mrf.mxu0
      %v1049 = vadd.f32 0.0, %v1048
      %1050 = vdwg.mxu0
      %1051 = vmatprep.subr.mxu0 0.0
      %1052 = vmatpush1.msra.mxu0 0.0
      %1053 = vmatprep.subr.mxu0 0.0
      %1054 = vmatpush1.msra.mxu0 0.0
      %1055 = vmatprep.subr.mxu0 0.0
      %1056 = vmatpush1.msra.mxu0 0.0
      %1057 = vmatprep.subr.mxu0 0.0
      %1058 = vmatpush1.msra.mxu0 0.0
      %1059 = vmatprep.subr.mxu0 0.0
      %1060 = vmatpush1.msra.mxu0 0.0
      %1061 = vmatprep.subr.mxu0 0.0
      %1062 = vmatpush1.msra.mxu0 0.0
      %1063 = vmatprep.subr.mxu0 0.0
      %1064 = vmatpush1.msra.mxu0 0.0
      %1065 = vmatprep.subr.mxu0 0.0
      %1066 = vmatpush1.msra.mxu0 0.0
      %1067 = vmatprep.subr.mxu0 0.0
      %1068 = vmatpush1.msra.mxu0 0.0
      %1069 = vmatprep.subr.mxu0 0.0
      %1070 = vmatpush1.msra.mxu0 0.0
      %1071 = vmatprep.subr.mxu0 0.0
      %1072 = vmatpush1.msra.mxu0 0.0
      %1073 = vmatprep.subr.mxu0 0.0
      %1074 = vmatpush1.msra.mxu0 0.0
      %1075 = vmatprep.subr.mxu0 0.0
      %1076 = vmatpush1.msra.mxu0 0.0
      %1077 = vmatprep.subr.mxu0 0.0
      %1078 = vmatpush1.msra.mxu0 0.0
      %1079 = vmatprep.subr.mxu0 0.0
      %1080 = vmatpush1.msra.mxu0 0.0
      %1081 = vmatprep.subr.mxu0 %v342
      %1082 = vmatpush1.msra.mxu0 %v341
      %1083 = vmatprep.subr.mxu0 0.0
      %1084 = vmatpush2.msra.mxu0 0.0
      %1085 = vmatprep.subr.mxu0 0.0
      %1086 = vmatpush2.msra.mxu0 0.0
      %1087 = vmatprep.subr.mxu0 0.0
      %1088 = vmatpush2.msra.mxu0 0.0
      %1089 = vmatprep.subr.mxu0 0.0
      %1090 = vmatpush2.msra.mxu0 0.0
      %1091 = vmatprep.subr.mxu0 0.0
      %1092 = vmatpush2.msra.mxu0 0.0
      %1093 = vmatprep.subr.mxu0 0.0
      %1094 = vmatpush2.msra.mxu0 0.0
      %1095 = vmatprep.subr.mxu0 0.0
      %1096 = vmatpush2.msra.mxu0 0.0
      %1097 = vmatprep.subr.mxu0 0.0
      %1098 = vmatpush2.msra.mxu0 0.0
      %1099 = vmatprep.subr.mxu0 0.0
      %1100 = vmatpush2.msra.mxu0 0.0
      %1101 = vmatprep.subr.mxu0 0.0
      %1102 = vmatpush2.msra.mxu0 0.0
      %1103 = vmatprep.subr.mxu0 0.0
      %1104 = vmatpush2.msra.mxu0 0.0
      %1105 = vmatprep.subr.mxu0 0.0
      %1106 = vmatpush2.msra.mxu0 0.0
      %1107 = vmatprep.subr.mxu0 0.0
      %1108 = vmatpush2.msra.mxu0 0.0
      %1109 = vmatprep.subr.mxu0 0.0
      %1110 = vmatpush2.msra.mxu0 0.0
      %1111 = vmatprep.subr.mxu0 0.0
      %1112 = vmatpush2.msra.mxu0 0.0
      %1113 = vmatprep.subr.mxu0 0.0
      %1114 = vmatpush2.msra.mxu0 0.0
      %1115 = vmatprep.mubr.f32.mxu0 0.0
      %1116 = vmatmul.mubr.f32.gmra.mxu0 %v411
      %v1117 = vpop.f32.mrf.mxu0
      %v1118 = vadd.f32 0.0, %v1117
      %v1119 = vpop.f32.mrf.mxu0
      %v1120 = vadd.f32 0.0, %v1119
      %1121 = vmatprep.mubr.f32.mxu0 0.0
      %1122 = vmatmul.mubr.f32.gmra.mxu0 %v414
      %v1123 = vpop.f32.mrf.mxu0
      %v1124 = vadd.f32 0.0, %v1123
      %v1125 = vpop.f32.mrf.mxu0
      %v1126 = vadd.f32 0.0, %v1125
      %1127 = vmatprep.mubr.f32.mxu0 0.0
      %1128 = vmatmul.mubr.f32.gmra.mxu0 %v417
      %v1129 = vpop.f32.mrf.mxu0
      %v1130 = vadd.f32 0.0, %v1129
      %v1131 = vpop.f32.mrf.mxu0
      %v1132 = vadd.f32 0.0, %v1131
      %1133 = vmatprep.mubr.f32.mxu0 0.0
      %1134 = vmatmul.mubr.f32.gmra.mxu0 %v420
      %v1135 = vpop.f32.mrf.mxu0
      %v1136 = vadd.f32 0.0, %v1135
      %v1137 = vpop.f32.mrf.mxu0
      %v1138 = vadd.f32 0.0, %v1137
      %1139 = vmatprep.mubr.f32.mxu0 0.0
      %1140 = vmatmul.mubr.f32.gmra.mxu0 %v423
      %v1141 = vpop.f32.mrf.mxu0
      %v1142 = vadd.f32 0.0, %v1141
      %v1143 = vpop.f32.mrf.mxu0
      %v1144 = vadd.f32 0.0, %v1143
      %1145 = vmatprep.mubr.f32.mxu0 0.0
      %1146 = vmatmul.mubr.f32.gmra.mxu0 %v426
      %v1147 = vpop.f32.mrf.mxu0
      %v1148 = vadd.f32 0.0, %v1147
      %v1149 = vpop.f32.mrf.mxu0
      %v1150 = vadd.f32 0.0, %v1149
      %1151 = vmatprep.mubr.f32.mxu0 0.0
      %1152 = vmatmul.mubr.f32.gmra.mxu0 %v429
      %v1153 = vpop.f32.mrf.mxu0
      %v1154 = vadd.f32 0.0, %v1153
      %v1155 = vpop.f32.mrf.mxu0
      %v1156 = vadd.f32 0.0, %v1155
      %1157 = vmatprep.mubr.f32.mxu0 0.0
      %1158 = vmatmul.mubr.f32.gmra.mxu0 %v432
      %v1159 = vpop.f32.mrf.mxu0
      %v1160 = vadd.f32 0.0, %v1159
      %v1161 = vpop.f32.mrf.mxu0
      %v1162 = vadd.f32 0.0, %v1161
      %1163 = vmatprep.mubr.f32.mxu0 0.0
      %1164 = vmatmul.mubr.f32.gmra.mxu0 %v435
      %v1165 = vpop.f32.mrf.mxu0
      %v1166 = vadd.f32 0.0, %v1165
      %v1167 = vpop.f32.mrf.mxu0
      %v1168 = vadd.f32 0.0, %v1167
      %1169 = vmatprep.mubr.f32.mxu0 0.0
      %1170 = vmatmul.mubr.f32.gmra.mxu0 %v438
      %v1171 = vpop.f32.mrf.mxu0
      %v1172 = vadd.f32 0.0, %v1171
      %v1173 = vpop.f32.mrf.mxu0
      %v1174 = vadd.f32 0.0, %v1173
      %1175 = vmatprep.mubr.f32.mxu0 0.0
      %1176 = vmatmul.mubr.f32.gmra.mxu0 %v441
      %v1177 = vpop.f32.mrf.mxu0
      %v1178 = vadd.f32 0.0, %v1177
      %v1179 = vpop.f32.mrf.mxu0
      %v1180 = vadd.f32 0.0, %v1179
      %1181 = vmatprep.mubr.f32.mxu0 0.0
      %1182 = vmatmul.mubr.f32.gmra.mxu0 %v444
      %v1183 = vpop.f32.mrf.mxu0
      %v1184 = vadd.f32 0.0, %v1183
      %v1185 = vpop.f32.mrf.mxu0
      %v1186 = vadd.f32 0.0, %v1185
      %1187 = vmatprep.mubr.f32.mxu0 0.0
      %1188 = vmatmul.mubr.f32.gmra.mxu0 %v447
      %v1189 = vpop.f32.mrf.mxu0
      %v1190 = vadd.f32 0.0, %v1189
      %v1191 = vpop.f32.mrf.mxu0
      %v1192 = vadd.f32 0.0, %v1191
      %1193 = vmatprep.mubr.f32.mxu0 0.0
      %1194 = vmatmul.mubr.f32.gmra.mxu0 %v450
      %v1195 = vpop.f32.mrf.mxu0
      %v1196 = vadd.f32 0.0, %v1195
      %v1197 = vpop.f32.mrf.mxu0
      %v1198 = vadd.f32 0.0, %v1197
      %1199 = vmatprep.mubr.f32.mxu0 0.0
      %1200 = vmatmul.mubr.f32.gmra.mxu0 %v453
      %v1201 = vpop.f32.mrf.mxu0
      %v1202 = vadd.f32 0.0, %v1201
      %v1203 = vpop.f32.mrf.mxu0
      %v1204 = vadd.f32 0.0, %v1203
      %1205 = vmatprep.mubr.f32.mxu0 0.0
      %1206 = vmatmul.mubr.f32.gmra.mxu0 %v456
      %v1207 = vpop.f32.mrf.mxu0
      %v1208 = vadd.f32 0.0, %v1207
      %v1209 = vpop.f32.mrf.mxu0
      %v1210 = vadd.f32 0.0, %v1209
      %1211 = vmatprep.mubr.f32.mxu0 0.0
      %1212 = vmatmul.mubr.f32.gmra.mxu0 %v459
      %v1213 = vpop.f32.mrf.mxu0
      %v1214 = vadd.f32 0.0, %v1213
      %v1215 = vpop.f32.mrf.mxu0
      %v1216 = vadd.f32 0.0, %v1215
      %1217 = vmatprep.mubr.f32.mxu0 0.0
      %1218 = vmatmul.mubr.f32.gmra.mxu0 %v462
      %v1219 = vpop.f32.mrf.mxu0
      %v1220 = vadd.f32 0.0, %v1219
      %v1221 = vpop.f32.mrf.mxu0
      %v1222 = vadd.f32 0.0, %v1221
      %1223 = vmatprep.mubr.f32.mxu0 0.0
      %1224 = vmatmul.mubr.f32.gmra.mxu0 %v465
      %v1225 = vpop.f32.mrf.mxu0
      %v1226 = vadd.f32 0.0, %v1225
      %v1227 = vpop.f32.mrf.mxu0
      %v1228 = vadd.f32 0.0, %v1227
      %1229 = vmatprep.mubr.f32.mxu0 0.0
      %1230 = vmatmul.mubr.f32.gmra.mxu0 %v468
      %v1231 = vpop.f32.mrf.mxu0
      %v1232 = vadd.f32 0.0, %v1231
      %v1233 = vpop.f32.mrf.mxu0
      %v1234 = vadd.f32 0.0, %v1233
      %1235 = vmatprep.mubr.f32.mxu0 0.0
      %1236 = vmatmul.mubr.f32.gmra.mxu0 %v471
      %v1237 = vpop.f32.mrf.mxu0
      %v1238 = vadd.f32 0.0, %v1237
      %v1239 = vpop.f32.mrf.mxu0
      %v1240 = vadd.f32 0.0, %v1239
      %1241 = vmatprep.mubr.f32.mxu0 0.0
      %1242 = vmatmul.mubr.f32.gmra.mxu0 %v474
      %v1243 = vpop.f32.mrf.mxu0
      %v1244 = vadd.f32 0.0, %v1243
      %v1245 = vpop.f32.mrf.mxu0
      %v1246 = vadd.f32 0.0, %v1245
      %1247 = vmatprep.mubr.f32.mxu0 0.0
      %1248 = vmatmul.mubr.f32.gmra.mxu0 %v477
      %v1249 = vpop.f32.mrf.mxu0
      %v1250 = vadd.f32 0.0, %v1249
      %v1251 = vpop.f32.mrf.mxu0
      %v1252 = vadd.f32 0.0, %v1251
      %1253 = vmatprep.mubr.f32.mxu0 0.0
      %1254 = vmatmul.mubr.f32.gmra.mxu0 %v480
      %v1255 = vpop.f32.mrf.mxu0
      %v1256 = vadd.f32 0.0, %v1255
      %v1257 = vpop.f32.mrf.mxu0
      %v1258 = vadd.f32 0.0, %v1257
      %1259 = vmatprep.mubr.f32.mxu0 0.0
      %1260 = vmatmul.mubr.f32.gmra.mxu0 %v483
      %v1261 = vpop.f32.mrf.mxu0
      %v1262 = vadd.f32 0.0, %v1261
      %v1263 = vpop.f32.mrf.mxu0
      %v1264 = vadd.f32 0.0, %v1263
      %1265 = vmatprep.mubr.f32.mxu0 0.0
      %1266 = vmatmul.mubr.f32.gmra.mxu0 %v486
      %v1267 = vpop.f32.mrf.mxu0
      %v1268 = vadd.f32 0.0, %v1267
      %v1269 = vpop.f32.mrf.mxu0
      %v1270 = vadd.f32 0.0, %v1269
      %1271 = vmatprep.mubr.f32.mxu0 0.0
      %1272 = vmatmul.mubr.f32.gmra.mxu0 %v489
      %v1273 = vpop.f32.mrf.mxu0
      %v1274 = vadd.f32 0.0, %v1273
      %v1275 = vpop.f32.mrf.mxu0
      %v1276 = vadd.f32 0.0, %v1275
      %1277 = vmatprep.mubr.f32.mxu0 0.0
      %1278 = vmatmul.mubr.f32.gmra.mxu0 %v492
      %v1279 = vpop.f32.mrf.mxu0
      %v1280 = vadd.f32 0.0, %v1279
      %v1281 = vpop.f32.mrf.mxu0
      %v1282 = vadd.f32 0.0, %v1281
      %1283 = vmatprep.mubr.f32.mxu0 0.0
      %1284 = vmatmul.mubr.f32.gmra.mxu0 %v495
      %v1285 = vpop.f32.mrf.mxu0
      %v1286 = vadd.f32 0.0, %v1285
      %v1287 = vpop.f32.mrf.mxu0
      %v1288 = vadd.f32 0.0, %v1287
      %1289 = vmatprep.mubr.f32.mxu0 0.0
      %1290 = vmatmul.mubr.f32.gmra.mxu0 %v498
      %v1291 = vpop.f32.mrf.mxu0
      %v1292 = vadd.f32 0.0, %v1291
      %v1293 = vpop.f32.mrf.mxu0
      %v1294 = vadd.f32 0.0, %v1293
      %1295 = vmatprep.mubr.f32.mxu0 0.0
      %1296 = vmatmul.mubr.f32.gmra.mxu0 %v501
      %v1297 = vpop.f32.mrf.mxu0
      %v1298 = vadd.f32 0.0, %v1297
      %v1299 = vpop.f32.mrf.mxu0
      %v1300 = vadd.f32 0.0, %v1299
      %1301 = vmatprep.mubr.f32.mxu0 0.0
      %1302 = vmatmul.mubr.f32.gmra.mxu0 %v504
      %v1303 = vpop.f32.mrf.mxu0
      %v1304 = vadd.f32 0.0, %v1303
      %v1305 = vpop.f32.mrf.mxu0
      %v1306 = vadd.f32 0.0, %v1305
      %1307 = vmatprep.mubr.f32.mxu0 0.0
      %1308 = vmatmul.mubr.f32.gmra.mxu0 %v507
      %v1309 = vpop.f32.mrf.mxu0
      %v1310 = vadd.f32 0.0, %v1309
      %v1311 = vpop.f32.mrf.mxu0
      %v1312 = vadd.f32 0.0, %v1311
      %1313 = vmatprep.mubr.f32.mxu0 0.0
      %1314 = vmatmul.mubr.f32.gmra.mxu0 %v510
      %v1315 = vpop.f32.mrf.mxu0
      %v1316 = vadd.f32 0.0, %v1315
      %v1317 = vpop.f32.mrf.mxu0
      %v1318 = vadd.f32 0.0, %v1317
      %1319 = vmatprep.mubr.f32.mxu0 0.0
      %1320 = vmatmul.mubr.f32.gmra.mxu0 %v513
      %v1321 = vpop.f32.mrf.mxu0
      %v1322 = vadd.f32 0.0, %v1321
      %v1323 = vpop.f32.mrf.mxu0
      %v1324 = vadd.f32 0.0, %v1323
      %1325 = vmatprep.mubr.f32.mxu0 0.0
      %1326 = vmatmul.mubr.f32.gmra.mxu0 %v516
      %v1327 = vpop.f32.mrf.mxu0
      %v1328 = vadd.f32 0.0, %v1327
      %v1329 = vpop.f32.mrf.mxu0
      %v1330 = vadd.f32 0.0, %v1329
      %1331 = vmatprep.mubr.f32.mxu0 0.0
      %1332 = vmatmul.mubr.f32.gmra.mxu0 %v519
      %v1333 = vpop.f32.mrf.mxu0
      %v1334 = vadd.f32 0.0, %v1333
      %v1335 = vpop.f32.mrf.mxu0
      %v1336 = vadd.f32 0.0, %v1335
      %1337 = vmatprep.mubr.f32.mxu0 0.0
      %1338 = vmatmul.mubr.f32.gmra.mxu0 %v522
      %v1339 = vpop.f32.mrf.mxu0
      %v1340 = vadd.f32 0.0, %v1339
      %v1341 = vpop.f32.mrf.mxu0
      %v1342 = vadd.f32 0.0, %v1341
      %1343 = vmatprep.mubr.f32.mxu0 0.0
      %1344 = vmatmul.mubr.f32.gmra.mxu0 %v525
      %v1345 = vpop.f32.mrf.mxu0
      %v1346 = vadd.f32 0.0, %v1345
      %v1347 = vpop.f32.mrf.mxu0
      %v1348 = vadd.f32 0.0, %v1347
      %1349 = vmatprep.mubr.f32.mxu0 0.0
      %1350 = vmatmul.mubr.f32.gmra.mxu0 %v528
      %v1351 = vpop.f32.mrf.mxu0
      %v1352 = vadd.f32 0.0, %v1351
      %v1353 = vpop.f32.mrf.mxu0
      %v1354 = vadd.f32 0.0, %v1353
      %1355 = vmatprep.mubr.f32.mxu0 0.0
      %1356 = vmatmul.mubr.f32.gmra.mxu0 %v531
      %v1357 = vpop.f32.mrf.mxu0
      %v1358 = vadd.f32 0.0, %v1357
      %v1359 = vpop.f32.mrf.mxu0
      %v1360 = vadd.f32 0.0, %v1359
      %1361 = vmatprep.mubr.f32.mxu0 0.0
      %1362 = vmatmul.mubr.f32.gmra.mxu0 %v534
      %v1363 = vpop.f32.mrf.mxu0
      %v1364 = vadd.f32 0.0, %v1363
      %v1365 = vpop.f32.mrf.mxu0
      %v1366 = vadd.f32 0.0, %v1365
      %1367 = vmatprep.mubr.f32.mxu0 0.0
      %1368 = vmatmul.mubr.f32.gmra.mxu0 %v537
      %v1369 = vpop.f32.mrf.mxu0
      %v1370 = vadd.f32 0.0, %v1369
      %v1371 = vpop.f32.mrf.mxu0
      %v1372 = vadd.f32 0.0, %v1371
      %1373 = vmatprep.mubr.f32.mxu0 0.0
      %1374 = vmatmul.mubr.f32.gmra.mxu0 %v540
      %v1375 = vpop.f32.mrf.mxu0
      %v1376 = vadd.f32 0.0, %v1375
      %v1377 = vpop.f32.mrf.mxu0
      %v1378 = vadd.f32 0.0, %v1377
      %1379 = vmatprep.mubr.f32.mxu0 0.0
      %1380 = vmatmul.mubr.f32.gmra.mxu0 %v543
      %v1381 = vpop.f32.mrf.mxu0
      %v1382 = vadd.f32 0.0, %v1381
      %v1383 = vpop.f32.mrf.mxu0
      %v1384 = vadd.f32 0.0, %v1383
      %1385 = vmatprep.mubr.f32.mxu0 0.0
      %1386 = vmatmul.mubr.f32.gmra.mxu0 %v546
      %v1387 = vpop.f32.mrf.mxu0
      %v1388 = vadd.f32 0.0, %v1387
      %v1389 = vpop.f32.mrf.mxu0
      %v1390 = vadd.f32 0.0, %v1389
      %1391 = vmatprep.mubr.f32.mxu0 0.0
      %1392 = vmatmul.mubr.f32.gmra.mxu0 %v549
      %v1393 = vpop.f32.mrf.mxu0
      %v1394 = vadd.f32 0.0, %v1393
      %v1395 = vpop.f32.mrf.mxu0
      %v1396 = vadd.f32 0.0, %v1395
      %1397 = vmatprep.mubr.f32.mxu0 0.0
      %1398 = vmatmul.mubr.f32.gmra.mxu0 %v552
      %v1399 = vpop.f32.mrf.mxu0
      %v1400 = vadd.f32 0.0, %v1399
      %v1401 = vpop.f32.mrf.mxu0
      %v1402 = vadd.f32 0.0, %v1401
      %1403 = vmatprep.mubr.f32.mxu0 0.0
      %1404 = vmatmul.mubr.f32.gmra.mxu0 %v555
      %v1405 = vpop.f32.mrf.mxu0
      %v1406 = vadd.f32 0.0, %v1405
      %v1407 = vpop.f32.mrf.mxu0
      %v1408 = vadd.f32 0.0, %v1407
      %1409 = vmatprep.mubr.f32.mxu0 0.0
      %1410 = vmatmul.mubr.f32.gmra.mxu0 %v558
      %v1411 = vpop.f32.mrf.mxu0
      %v1412 = vadd.f32 0.0, %v1411
      %v1413 = vpop.f32.mrf.mxu0
      %v1414 = vadd.f32 0.0, %v1413
      %1415 = vmatprep.mubr.f32.mxu0 0.0
      %1416 = vmatmul.mubr.f32.gmra.mxu0 %v561
      %v1417 = vpop.f32.mrf.mxu0
      %v1418 = vadd.f32 0.0, %v1417
      %v1419 = vpop.f32.mrf.mxu0
      %v1420 = vadd.f32 0.0, %v1419
      %1421 = vmatprep.mubr.f32.mxu0 0.0
      %1422 = vmatmul.mubr.f32.gmra.mxu0 %v564
      %v1423 = vpop.f32.mrf.mxu0
      %v1424 = vadd.f32 0.0, %v1423
      %v1425 = vpop.f32.mrf.mxu0
      %v1426 = vadd.f32 0.0, %v1425
      %1427 = vmatprep.mubr.f32.mxu0 0.0
      %1428 = vmatmul.mubr.f32.gmra.mxu0 %v567
      %v1429 = vpop.f32.mrf.mxu0
      %v1430 = vadd.f32 0.0, %v1429
      %v1431 = vpop.f32.mrf.mxu0
      %v1432 = vadd.f32 0.0, %v1431
      %1433 = vmatprep.mubr.f32.mxu0 0.0
      %1434 = vmatmul.mubr.f32.gmra.mxu0 %v570
      %v1435 = vpop.f32.mrf.mxu0
      %v1436 = vadd.f32 0.0, %v1435
      %v1437 = vpop.f32.mrf.mxu0
      %v1438 = vadd.f32 0.0, %v1437
      %1439 = vmatprep.mubr.f32.mxu0 0.0
      %1440 = vmatmul.mubr.f32.gmra.mxu0 %v573
      %v1441 = vpop.f32.mrf.mxu0
      %v1442 = vadd.f32 0.0, %v1441
      %v1443 = vpop.f32.mrf.mxu0
      %v1444 = vadd.f32 0.0, %v1443
      %1445 = vmatprep.mubr.f32.mxu0 0.0
      %1446 = vmatmul.mubr.f32.gmra.mxu0 %v576
      %v1447 = vpop.f32.mrf.mxu0
      %v1448 = vadd.f32 0.0, %v1447
      %v1449 = vpop.f32.mrf.mxu0
      %v1450 = vadd.f32 0.0, %v1449
      %1451 = vmatprep.mubr.f32.mxu0 0.0
      %1452 = vmatmul.mubr.f32.gmra.mxu0 %v579
      %v1453 = vpop.f32.mrf.mxu0
      %v1454 = vadd.f32 0.0, %v1453
      %v1455 = vpop.f32.mrf.mxu0
      %v1456 = vadd.f32 0.0, %v1455
      %1457 = vmatprep.mubr.f32.mxu0 0.0
      %1458 = vmatmul.mubr.f32.gmra.mxu0 %v582
      %v1459 = vpop.f32.mrf.mxu0
      %v1460 = vadd.f32 0.0, %v1459
      %v1461 = vpop.f32.mrf.mxu0
      %v1462 = vadd.f32 0.0, %v1461
      %1463 = vmatprep.mubr.f32.mxu0 0.0
      %1464 = vmatmul.mubr.f32.gmra.mxu0 %v585
      %v1465 = vpop.f32.mrf.mxu0
      %v1466 = vadd.f32 0.0, %v1465
      %v1467 = vpop.f32.mrf.mxu0
      %v1468 = vadd.f32 0.0, %v1467
      %1469 = vmatprep.mubr.f32.mxu0 0.0
      %1470 = vmatmul.mubr.f32.gmra.mxu0 %v588
      %v1471 = vpop.f32.mrf.mxu0
      %v1472 = vadd.f32 0.0, %v1471
      %v1473 = vpop.f32.mrf.mxu0
      %v1474 = vadd.f32 0.0, %v1473
      %1475 = vmatprep.mubr.f32.mxu0 0.0
      %1476 = vmatmul.mubr.f32.gmra.mxu0 %v591
      %v1477 = vpop.f32.mrf.mxu0
      %v1478 = vadd.f32 0.0, %v1477
      %v1479 = vpop.f32.mrf.mxu0
      %v1480 = vadd.f32 0.0, %v1479
      %1481 = vmatprep.mubr.f32.mxu0 0.0
      %1482 = vmatmul.mubr.f32.gmra.mxu0 %v594
      %v1483 = vpop.f32.mrf.mxu0
      %v1484 = vadd.f32 0.0, %v1483
      %v1485 = vpop.f32.mrf.mxu0
      %v1486 = vadd.f32 0.0, %v1485
      %1487 = vmatprep.mubr.f32.mxu0 0.0
      %1488 = vmatmul.mubr.f32.gmra.mxu0 %v597
      %v1489 = vpop.f32.mrf.mxu0
      %v1490 = vadd.f32 0.0, %v1489
      %v1491 = vpop.f32.mrf.mxu0
      %v1492 = vadd.f32 0.0, %v1491
      %1493 = vmatprep.mubr.f32.mxu0 0.0
      %1494 = vmatmul.mubr.f32.gmra.mxu0 %v600
      %v1495 = vpop.f32.mrf.mxu0
      %v1496 = vadd.f32 0.0, %v1495
      %v1497 = vpop.f32.mrf.mxu0
      %v1498 = vadd.f32 0.0, %v1497
      %1499 = vdwg.mxu0
      %1500 = vmatprep.subr.mxu0 0.0
      %1501 = vmatpush1.msra.mxu0 0.0
      %1502 = vmatprep.subr.mxu0 0.0
      %1503 = vmatpush1.msra.mxu0 0.0
      %1504 = vmatprep.subr.mxu0 0.0
      %1505 = vmatpush1.msra.mxu0 0.0
      %1506 = vmatprep.subr.mxu0 0.0
      %1507 = vmatpush1.msra.mxu0 0.0
      %1508 = vmatprep.subr.mxu0 0.0
      %1509 = vmatpush1.msra.mxu0 0.0
      %1510 = vmatprep.subr.mxu0 0.0
      %1511 = vmatpush1.msra.mxu0 0.0
      %1512 = vmatprep.subr.mxu0 0.0
      %1513 = vmatpush1.msra.mxu0 0.0
      %1514 = vmatprep.subr.mxu0 0.0
      %1515 = vmatpush1.msra.mxu0 0.0
      %1516 = vmatprep.subr.mxu0 0.0
      %1517 = vmatpush1.msra.mxu0 0.0
      %1518 = vmatprep.subr.mxu0 0.0
      %1519 = vmatpush1.msra.mxu0 0.0
      %1520 = vmatprep.subr.mxu0 0.0
      %1521 = vmatpush1.msra.mxu0 0.0
      %1522 = vmatprep.subr.mxu0 0.0
      %1523 = vmatpush1.msra.mxu0 0.0
      %1524 = vmatprep.subr.mxu0 0.0
      %1525 = vmatpush1.msra.mxu0 0.0
      %1526 = vmatprep.subr.mxu0 0.0
      %1527 = vmatpush1.msra.mxu0 0.0
      %1528 = vmatprep.subr.mxu0 0.0
      %1529 = vmatpush1.msra.mxu0 0.0
      %1530 = vmatprep.subr.mxu0 %v344
      %1531 = vmatpush1.msra.mxu0 %v343
      %1532 = vmatprep.subr.mxu0 0.0
      %1533 = vmatpush2.msra.mxu0 0.0
      %1534 = vmatprep.subr.mxu0 0.0
      %1535 = vmatpush2.msra.mxu0 0.0
      %1536 = vmatprep.subr.mxu0 0.0
      %1537 = vmatpush2.msra.mxu0 0.0
      %1538 = vmatprep.subr.mxu0 0.0
      %1539 = vmatpush2.msra.mxu0 0.0
      %1540 = vmatprep.subr.mxu0 0.0
      %1541 = vmatpush2.msra.mxu0 0.0
      %1542 = vmatprep.subr.mxu0 0.0
      %1543 = vmatpush2.msra.mxu0 0.0
      %1544 = vmatprep.subr.mxu0 0.0
      %1545 = vmatpush2.msra.mxu0 0.0
      %1546 = vmatprep.subr.mxu0 0.0
      %1547 = vmatpush2.msra.mxu0 0.0
      %1548 = vmatprep.subr.mxu0 0.0
      %1549 = vmatpush2.msra.mxu0 0.0
      %1550 = vmatprep.subr.mxu0 0.0
      %1551 = vmatpush2.msra.mxu0 0.0
      %1552 = vmatprep.subr.mxu0 0.0
      %1553 = vmatpush2.msra.mxu0 0.0
      %1554 = vmatprep.subr.mxu0 0.0
      %1555 = vmatpush2.msra.mxu0 0.0
      %1556 = vmatprep.subr.mxu0 0.0
      %1557 = vmatpush2.msra.mxu0 0.0
      %1558 = vmatprep.subr.mxu0 0.0
      %1559 = vmatpush2.msra.mxu0 0.0
      %1560 = vmatprep.subr.mxu0 0.0
      %1561 = vmatpush2.msra.mxu0 0.0
      %1562 = vmatprep.subr.mxu0 0.0
      %1563 = vmatpush2.msra.mxu0 0.0
      %1564 = vmatprep.mubr.f32.mxu0 0.0
      %1565 = vmatmul.mubr.f32.gmra.mxu0 %v411
      %v1566 = vpop.f32.mrf.mxu0
      %v1567 = vadd.f32 0.0, %v1566
      %v1568 = vpop.f32.mrf.mxu0
      %v1569 = vadd.f32 0.0, %v1568
      %1570 = vmatprep.mubr.f32.mxu0 0.0
      %1571 = vmatmul.mubr.f32.gmra.mxu0 %v414
      %v1572 = vpop.f32.mrf.mxu0
      %v1573 = vadd.f32 0.0, %v1572
      %v1574 = vpop.f32.mrf.mxu0
      %v1575 = vadd.f32 0.0, %v1574
      %1576 = vmatprep.mubr.f32.mxu0 0.0
      %1577 = vmatmul.mubr.f32.gmra.mxu0 %v417
      %v1578 = vpop.f32.mrf.mxu0
      %v1579 = vadd.f32 0.0, %v1578
      %v1580 = vpop.f32.mrf.mxu0
      %v1581 = vadd.f32 0.0, %v1580
      %1582 = vmatprep.mubr.f32.mxu0 0.0
      %1583 = vmatmul.mubr.f32.gmra.mxu0 %v420
      %v1584 = vpop.f32.mrf.mxu0
      %v1585 = vadd.f32 0.0, %v1584
      %v1586 = vpop.f32.mrf.mxu0
      %v1587 = vadd.f32 0.0, %v1586
      %1588 = vmatprep.mubr.f32.mxu0 0.0
      %1589 = vmatmul.mubr.f32.gmra.mxu0 %v423
      %v1590 = vpop.f32.mrf.mxu0
      %v1591 = vadd.f32 0.0, %v1590
      %v1592 = vpop.f32.mrf.mxu0
      %v1593 = vadd.f32 0.0, %v1592
      %1594 = vmatprep.mubr.f32.mxu0 0.0
      %1595 = vmatmul.mubr.f32.gmra.mxu0 %v426
      %v1596 = vpop.f32.mrf.mxu0
      %v1597 = vadd.f32 0.0, %v1596
      %v1598 = vpop.f32.mrf.mxu0
      %v1599 = vadd.f32 0.0, %v1598
      %1600 = vmatprep.mubr.f32.mxu0 0.0
      %1601 = vmatmul.mubr.f32.gmra.mxu0 %v429
      %v1602 = vpop.f32.mrf.mxu0
      %v1603 = vadd.f32 0.0, %v1602
      %v1604 = vpop.f32.mrf.mxu0
      %v1605 = vadd.f32 0.0, %v1604
      %1606 = vmatprep.mubr.f32.mxu0 0.0
      %1607 = vmatmul.mubr.f32.gmra.mxu0 %v432
      %v1608 = vpop.f32.mrf.mxu0
      %v1609 = vadd.f32 0.0, %v1608
      %v1610 = vpop.f32.mrf.mxu0
      %v1611 = vadd.f32 0.0, %v1610
      %1612 = vmatprep.mubr.f32.mxu0 0.0
      %1613 = vmatmul.mubr.f32.gmra.mxu0 %v435
      %v1614 = vpop.f32.mrf.mxu0
      %v1615 = vadd.f32 0.0, %v1614
      %v1616 = vpop.f32.mrf.mxu0
      %v1617 = vadd.f32 0.0, %v1616
      %1618 = vmatprep.mubr.f32.mxu0 0.0
      %1619 = vmatmul.mubr.f32.gmra.mxu0 %v438
      %v1620 = vpop.f32.mrf.mxu0
      %v1621 = vadd.f32 0.0, %v1620
      %v1622 = vpop.f32.mrf.mxu0
      %v1623 = vadd.f32 0.0, %v1622
      %1624 = vmatprep.mubr.f32.mxu0 0.0
      %1625 = vmatmul.mubr.f32.gmra.mxu0 %v441
      %v1626 = vpop.f32.mrf.mxu0
      %v1627 = vadd.f32 0.0, %v1626
      %v1628 = vpop.f32.mrf.mxu0
      %v1629 = vadd.f32 0.0, %v1628
      %1630 = vmatprep.mubr.f32.mxu0 0.0
      %1631 = vmatmul.mubr.f32.gmra.mxu0 %v444
      %v1632 = vpop.f32.mrf.mxu0
      %v1633 = vadd.f32 0.0, %v1632
      %v1634 = vpop.f32.mrf.mxu0
      %v1635 = vadd.f32 0.0, %v1634
      %1636 = vmatprep.mubr.f32.mxu0 0.0
      %1637 = vmatmul.mubr.f32.gmra.mxu0 %v447
      %v1638 = vpop.f32.mrf.mxu0
      %v1639 = vadd.f32 0.0, %v1638
      %v1640 = vpop.f32.mrf.mxu0
      %v1641 = vadd.f32 0.0, %v1640
      %1642 = vmatprep.mubr.f32.mxu0 0.0
      %1643 = vmatmul.mubr.f32.gmra.mxu0 %v450
      %v1644 = vpop.f32.mrf.mxu0
      %v1645 = vadd.f32 0.0, %v1644
      %v1646 = vpop.f32.mrf.mxu0
      %v1647 = vadd.f32 0.0, %v1646
      %1648 = vmatprep.mubr.f32.mxu0 0.0
      %1649 = vmatmul.mubr.f32.gmra.mxu0 %v453
      %v1650 = vpop.f32.mrf.mxu0
      %v1651 = vadd.f32 0.0, %v1650
      %v1652 = vpop.f32.mrf.mxu0
      %v1653 = vadd.f32 0.0, %v1652
      %1654 = vmatprep.mubr.f32.mxu0 0.0
      %1655 = vmatmul.mubr.f32.gmra.mxu0 %v456
      %v1656 = vpop.f32.mrf.mxu0
      %v1657 = vadd.f32 0.0, %v1656
      %v1658 = vpop.f32.mrf.mxu0
      %v1659 = vadd.f32 0.0, %v1658
      %1660 = vmatprep.mubr.f32.mxu0 0.0
      %1661 = vmatmul.mubr.f32.gmra.mxu0 %v459
      %v1662 = vpop.f32.mrf.mxu0
      %v1663 = vadd.f32 0.0, %v1662
      %v1664 = vpop.f32.mrf.mxu0
      %v1665 = vadd.f32 0.0, %v1664
      %1666 = vmatprep.mubr.f32.mxu0 0.0
      %1667 = vmatmul.mubr.f32.gmra.mxu0 %v462
      %v1668 = vpop.f32.mrf.mxu0
      %v1669 = vadd.f32 0.0, %v1668
      %v1670 = vpop.f32.mrf.mxu0
      %v1671 = vadd.f32 0.0, %v1670
      %1672 = vmatprep.mubr.f32.mxu0 0.0
      %1673 = vmatmul.mubr.f32.gmra.mxu0 %v465
      %v1674 = vpop.f32.mrf.mxu0
      %v1675 = vadd.f32 0.0, %v1674
      %v1676 = vpop.f32.mrf.mxu0
      %v1677 = vadd.f32 0.0, %v1676
      %1678 = vmatprep.mubr.f32.mxu0 0.0
      %1679 = vmatmul.mubr.f32.gmra.mxu0 %v468
      %v1680 = vpop.f32.mrf.mxu0
      %v1681 = vadd.f32 0.0, %v1680
      %v1682 = vpop.f32.mrf.mxu0
      %v1683 = vadd.f32 0.0, %v1682
      %1684 = vmatprep.mubr.f32.mxu0 0.0
      %1685 = vmatmul.mubr.f32.gmra.mxu0 %v471
      %v1686 = vpop.f32.mrf.mxu0
      %v1687 = vadd.f32 0.0, %v1686
      %v1688 = vpop.f32.mrf.mxu0
      %v1689 = vadd.f32 0.0, %v1688
      %1690 = vmatprep.mubr.f32.mxu0 0.0
      %1691 = vmatmul.mubr.f32.gmra.mxu0 %v474
      %v1692 = vpop.f32.mrf.mxu0
      %v1693 = vadd.f32 0.0, %v1692
      %v1694 = vpop.f32.mrf.mxu0
      %v1695 = vadd.f32 0.0, %v1694
      %1696 = vmatprep.mubr.f32.mxu0 0.0
      %1697 = vmatmul.mubr.f32.gmra.mxu0 %v477
      %v1698 = vpop.f32.mrf.mxu0
      %v1699 = vadd.f32 0.0, %v1698
      %v1700 = vpop.f32.mrf.mxu0
      %v1701 = vadd.f32 0.0, %v1700
      %1702 = vmatprep.mubr.f32.mxu0 0.0
      %1703 = vmatmul.mubr.f32.gmra.mxu0 %v480
      %v1704 = vpop.f32.mrf.mxu0
      %v1705 = vadd.f32 0.0, %v1704
      %v1706 = vpop.f32.mrf.mxu0
      %v1707 = vadd.f32 0.0, %v1706
      %1708 = vmatprep.mubr.f32.mxu0 0.0
      %1709 = vmatmul.mubr.f32.gmra.mxu0 %v483
      %v1710 = vpop.f32.mrf.mxu0
      %v1711 = vadd.f32 0.0, %v1710
      %v1712 = vpop.f32.mrf.mxu0
      %v1713 = vadd.f32 0.0, %v1712
      %1714 = vmatprep.mubr.f32.mxu0 0.0
      %1715 = vmatmul.mubr.f32.gmra.mxu0 %v486
      %v1716 = vpop.f32.mrf.mxu0
      %v1717 = vadd.f32 0.0, %v1716
      %v1718 = vpop.f32.mrf.mxu0
      %v1719 = vadd.f32 0.0, %v1718
      %1720 = vmatprep.mubr.f32.mxu0 0.0
      %1721 = vmatmul.mubr.f32.gmra.mxu0 %v489
      %v1722 = vpop.f32.mrf.mxu0
      %v1723 = vadd.f32 0.0, %v1722
      %v1724 = vpop.f32.mrf.mxu0
      %v1725 = vadd.f32 0.0, %v1724
      %1726 = vmatprep.mubr.f32.mxu0 0.0
      %1727 = vmatmul.mubr.f32.gmra.mxu0 %v492
      %v1728 = vpop.f32.mrf.mxu0
      %v1729 = vadd.f32 0.0, %v1728
      %v1730 = vpop.f32.mrf.mxu0
      %v1731 = vadd.f32 0.0, %v1730
      %1732 = vmatprep.mubr.f32.mxu0 0.0
      %1733 = vmatmul.mubr.f32.gmra.mxu0 %v495
      %v1734 = vpop.f32.mrf.mxu0
      %v1735 = vadd.f32 0.0, %v1734
      %v1736 = vpop.f32.mrf.mxu0
      %v1737 = vadd.f32 0.0, %v1736
      %1738 = vmatprep.mubr.f32.mxu0 0.0
      %1739 = vmatmul.mubr.f32.gmra.mxu0 %v498
      %v1740 = vpop.f32.mrf.mxu0
      %v1741 = vadd.f32 0.0, %v1740
      %v1742 = vpop.f32.mrf.mxu0
      %v1743 = vadd.f32 0.0, %v1742
      %1744 = vmatprep.mubr.f32.mxu0 0.0
      %1745 = vmatmul.mubr.f32.gmra.mxu0 %v501
      %v1746 = vpop.f32.mrf.mxu0
      %v1747 = vadd.f32 0.0, %v1746
      %v1748 = vpop.f32.mrf.mxu0
      %v1749 = vadd.f32 0.0, %v1748
      %1750 = vmatprep.mubr.f32.mxu0 0.0
      %1751 = vmatmul.mubr.f32.gmra.mxu0 %v504
      %v1752 = vpop.f32.mrf.mxu0
      %v1753 = vadd.f32 0.0, %v1752
      %v1754 = vpop.f32.mrf.mxu0
      %v1755 = vadd.f32 0.0, %v1754
      %1756 = vmatprep.mubr.f32.mxu0 0.0
      %1757 = vmatmul.mubr.f32.gmra.mxu0 %v507
      %v1758 = vpop.f32.mrf.mxu0
      %v1759 = vadd.f32 0.0, %v1758
      %v1760 = vpop.f32.mrf.mxu0
      %v1761 = vadd.f32 0.0, %v1760
      %1762 = vmatprep.mubr.f32.mxu0 0.0
      %1763 = vmatmul.mubr.f32.gmra.mxu0 %v510
      %v1764 = vpop.f32.mrf.mxu0
      %v1765 = vadd.f32 0.0, %v1764
      %v1766 = vpop.f32.mrf.mxu0
      %v1767 = vadd.f32 0.0, %v1766
      %1768 = vmatprep.mubr.f32.mxu0 0.0
      %1769 = vmatmul.mubr.f32.gmra.mxu0 %v513
      %v1770 = vpop.f32.mrf.mxu0
      %v1771 = vadd.f32 0.0, %v1770
      %v1772 = vpop.f32.mrf.mxu0
      %v1773 = vadd.f32 0.0, %v1772
      %1774 = vmatprep.mubr.f32.mxu0 0.0
      %1775 = vmatmul.mubr.f32.gmra.mxu0 %v516
      %v1776 = vpop.f32.mrf.mxu0
      %v1777 = vadd.f32 0.0, %v1776
      %v1778 = vpop.f32.mrf.mxu0
      %v1779 = vadd.f32 0.0, %v1778
      %1780 = vmatprep.mubr.f32.mxu0 0.0
      %1781 = vmatmul.mubr.f32.gmra.mxu0 %v519
      %v1782 = vpop.f32.mrf.mxu0
      %v1783 = vadd.f32 0.0, %v1782
      %v1784 = vpop.f32.mrf.mxu0
      %v1785 = vadd.f32 0.0, %v1784
      %1786 = vmatprep.mubr.f32.mxu0 0.0
      %1787 = vmatmul.mubr.f32.gmra.mxu0 %v522
      %v1788 = vpop.f32.mrf.mxu0
      %v1789 = vadd.f32 0.0, %v1788
      %v1790 = vpop.f32.mrf.mxu0
      %v1791 = vadd.f32 0.0, %v1790
      %1792 = vmatprep.mubr.f32.mxu0 0.0
      %1793 = vmatmul.mubr.f32.gmra.mxu0 %v525
      %v1794 = vpop.f32.mrf.mxu0
      %v1795 = vadd.f32 0.0, %v1794
      %v1796 = vpop.f32.mrf.mxu0
      %v1797 = vadd.f32 0.0, %v1796
      %1798 = vmatprep.mubr.f32.mxu0 0.0
      %1799 = vmatmul.mubr.f32.gmra.mxu0 %v528
      %v1800 = vpop.f32.mrf.mxu0
      %v1801 = vadd.f32 0.0, %v1800
      %v1802 = vpop.f32.mrf.mxu0
      %v1803 = vadd.f32 0.0, %v1802
      %1804 = vmatprep.mubr.f32.mxu0 0.0
      %1805 = vmatmul.mubr.f32.gmra.mxu0 %v531
      %v1806 = vpop.f32.mrf.mxu0
      %v1807 = vadd.f32 0.0, %v1806
      %v1808 = vpop.f32.mrf.mxu0
      %v1809 = vadd.f32 0.0, %v1808
      %1810 = vmatprep.mubr.f32.mxu0 0.0
      %1811 = vmatmul.mubr.f32.gmra.mxu0 %v534
      %v1812 = vpop.f32.mrf.mxu0
      %v1813 = vadd.f32 0.0, %v1812
      %v1814 = vpop.f32.mrf.mxu0
      %v1815 = vadd.f32 0.0, %v1814
      %1816 = vmatprep.mubr.f32.mxu0 0.0
      %1817 = vmatmul.mubr.f32.gmra.mxu0 %v537
      %v1818 = vpop.f32.mrf.mxu0
      %v1819 = vadd.f32 0.0, %v1818
      %v1820 = vpop.f32.mrf.mxu0
      %v1821 = vadd.f32 0.0, %v1820
      %1822 = vmatprep.mubr.f32.mxu0 0.0
      %1823 = vmatmul.mubr.f32.gmra.mxu0 %v540
      %v1824 = vpop.f32.mrf.mxu0
      %v1825 = vadd.f32 0.0, %v1824
      %v1826 = vpop.f32.mrf.mxu0
      %v1827 = vadd.f32 0.0, %v1826
      %1828 = vmatprep.mubr.f32.mxu0 0.0
      %1829 = vmatmul.mubr.f32.gmra.mxu0 %v543
      %v1830 = vpop.f32.mrf.mxu0
      %v1831 = vadd.f32 0.0, %v1830
      %v1832 = vpop.f32.mrf.mxu0
      %v1833 = vadd.f32 0.0, %v1832
      %1834 = vmatprep.mubr.f32.mxu0 0.0
      %1835 = vmatmul.mubr.f32.gmra.mxu0 %v546
      %v1836 = vpop.f32.mrf.mxu0
      %v1837 = vadd.f32 0.0, %v1836
      %v1838 = vpop.f32.mrf.mxu0
      %v1839 = vadd.f32 0.0, %v1838
      %1840 = vmatprep.mubr.f32.mxu0 0.0
      %1841 = vmatmul.mubr.f32.gmra.mxu0 %v549
      %v1842 = vpop.f32.mrf.mxu0
      %v1843 = vadd.f32 0.0, %v1842
      %v1844 = vpop.f32.mrf.mxu0
      %v1845 = vadd.f32 0.0, %v1844
      %1846 = vmatprep.mubr.f32.mxu0 0.0
      %1847 = vmatmul.mubr.f32.gmra.mxu0 %v552
      %v1848 = vpop.f32.mrf.mxu0
      %v1849 = vadd.f32 0.0, %v1848
      %v1850 = vpop.f32.mrf.mxu0
      %v1851 = vadd.f32 0.0, %v1850
      %1852 = vmatprep.mubr.f32.mxu0 0.0
      %1853 = vmatmul.mubr.f32.gmra.mxu0 %v555
      %v1854 = vpop.f32.mrf.mxu0
      %v1855 = vadd.f32 0.0, %v1854
      %v1856 = vpop.f32.mrf.mxu0
      %v1857 = vadd.f32 0.0, %v1856
      %1858 = vmatprep.mubr.f32.mxu0 0.0
      %1859 = vmatmul.mubr.f32.gmra.mxu0 %v558
      %v1860 = vpop.f32.mrf.mxu0
      %v1861 = vadd.f32 0.0, %v1860
      %v1862 = vpop.f32.mrf.mxu0
      %v1863 = vadd.f32 0.0, %v1862
      %1864 = vmatprep.mubr.f32.mxu0 0.0
      %1865 = vmatmul.mubr.f32.gmra.mxu0 %v561
      %v1866 = vpop.f32.mrf.mxu0
      %v1867 = vadd.f32 0.0, %v1866
      %v1868 = vpop.f32.mrf.mxu0
      %v1869 = vadd.f32 0.0, %v1868
      %1870 = vmatprep.mubr.f32.mxu0 0.0
      %1871 = vmatmul.mubr.f32.gmra.mxu0 %v564
      %v1872 = vpop.f32.mrf.mxu0
      %v1873 = vadd.f32 0.0, %v1872
      %v1874 = vpop.f32.mrf.mxu0
      %v1875 = vadd.f32 0.0, %v1874
      %1876 = vmatprep.mubr.f32.mxu0 0.0
      %1877 = vmatmul.mubr.f32.gmra.mxu0 %v567
      %v1878 = vpop.f32.mrf.mxu0
      %v1879 = vadd.f32 0.0, %v1878
      %v1880 = vpop.f32.mrf.mxu0
      %v1881 = vadd.f32 0.0, %v1880
      %1882 = vmatprep.mubr.f32.mxu0 0.0
      %1883 = vmatmul.mubr.f32.gmra.mxu0 %v570
      %v1884 = vpop.f32.mrf.mxu0
      %v1885 = vadd.f32 0.0, %v1884
      %v1886 = vpop.f32.mrf.mxu0
      %v1887 = vadd.f32 0.0, %v1886
      %1888 = vmatprep.mubr.f32.mxu0 0.0
      %1889 = vmatmul.mubr.f32.gmra.mxu0 %v573
      %v1890 = vpop.f32.mrf.mxu0
      %v1891 = vadd.f32 0.0, %v1890
      %v1892 = vpop.f32.mrf.mxu0
      %v1893 = vadd.f32 0.0, %v1892
      %1894 = vmatprep.mubr.f32.mxu0 0.0
      %1895 = vmatmul.mubr.f32.gmra.mxu0 %v576
      %v1896 = vpop.f32.mrf.mxu0
      %v1897 = vadd.f32 0.0, %v1896
      %v1898 = vpop.f32.mrf.mxu0
      %v1899 = vadd.f32 0.0, %v1898
      %1900 = vmatprep.mubr.f32.mxu0 0.0
      %1901 = vmatmul.mubr.f32.gmra.mxu0 %v579
      %v1902 = vpop.f32.mrf.mxu0
      %v1903 = vadd.f32 0.0, %v1902
      %v1904 = vpop.f32.mrf.mxu0
      %v1905 = vadd.f32 0.0, %v1904
      %1906 = vmatprep.mubr.f32.mxu0 0.0
      %1907 = vmatmul.mubr.f32.gmra.mxu0 %v582
      %v1908 = vpop.f32.mrf.mxu0
      %v1909 = vadd.f32 0.0, %v1908
      %v1910 = vpop.f32.mrf.mxu0
      %v1911 = vadd.f32 0.0, %v1910
      %1912 = vmatprep.mubr.f32.mxu0 0.0
      %1913 = vmatmul.mubr.f32.gmra.mxu0 %v585
      %v1914 = vpop.f32.mrf.mxu0
      %v1915 = vadd.f32 0.0, %v1914
      %v1916 = vpop.f32.mrf.mxu0
      %v1917 = vadd.f32 0.0, %v1916
      %1918 = vmatprep.mubr.f32.mxu0 0.0
      %1919 = vmatmul.mubr.f32.gmra.mxu0 %v588
      %v1920 = vpop.f32.mrf.mxu0
      %v1921 = vadd.f32 0.0, %v1920
      %v1922 = vpop.f32.mrf.mxu0
      %v1923 = vadd.f32 0.0, %v1922
      %1924 = vmatprep.mubr.f32.mxu0 0.0
      %1925 = vmatmul.mubr.f32.gmra.mxu0 %v591
      %v1926 = vpop.f32.mrf.mxu0
      %v1927 = vadd.f32 0.0, %v1926
      %v1928 = vpop.f32.mrf.mxu0
      %v1929 = vadd.f32 0.0, %v1928
      %1930 = vmatprep.mubr.f32.mxu0 0.0
      %1931 = vmatmul.mubr.f32.gmra.mxu0 %v594
      %v1932 = vpop.f32.mrf.mxu0
      %v1933 = vadd.f32 0.0, %v1932
      %v1934 = vpop.f32.mrf.mxu0
      %v1935 = vadd.f32 0.0, %v1934
      %1936 = vmatprep.mubr.f32.mxu0 0.0
      %1937 = vmatmul.mubr.f32.gmra.mxu0 %v597
      %v1938 = vpop.f32.mrf.mxu0
      %v1939 = vadd.f32 0.0, %v1938
      %v1940 = vpop.f32.mrf.mxu0
      %v1941 = vadd.f32 0.0, %v1940
      %1942 = vmatprep.mubr.f32.mxu0 0.0
      %1943 = vmatmul.mubr.f32.gmra.mxu0 %v600
      %v1944 = vpop.f32.mrf.mxu0
      %v1945 = vadd.f32 0.0, %v1944
      %v1946 = vpop.f32.mrf.mxu0
      %v1947 = vadd.f32 0.0, %v1946
      %1948 = vdwg.mxu0
      %v1949 = vmul.f32 %v669, 0.02
      %v1950 = vmul.f32 %v671, 0.02
      %v1951 = vmul.f32 %v1118, 0.02
      %v1952 = vmul.f32 %v1120, 0.02
      %v1953 = vmul.f32 %v1567, 0.02
      %v1954 = vmul.f32 %v1569, 0.02
      %v1955 = vmul.f32 %v675, 0.02
      %v1956 = vmul.f32 %v677, 0.02
      %v1957 = vmul.f32 %v1124, 0.02
      %v1958 = vmul.f32 %v1126, 0.02
      %v1959 = vmul.f32 %v1573, 0.02
      %v1960 = vmul.f32 %v1575, 0.02
      %v1961 = vmul.f32 %v681, 0.02
      %v1962 = vmul.f32 %v683, 0.02
      %v1963 = vmul.f32 %v1130, 0.02
      %v1964 = vmul.f32 %v1132, 0.02
      %v1965 = vmul.f32 %v1579, 0.02
      %v1966 = vmul.f32 %v1581, 0.02
      %v1967 = vmul.f32 %v687, 0.02
      %v1968 = vmul.f32 %v689, 0.02
      %v1969 = vmul.f32 %v1136, 0.02
      %v1970 = vmul.f32 %v1138, 0.02
      %v1971 = vmul.f32 %v1585, 0.02
      %v1972 = vmul.f32 %v1587, 0.02
      %v1973 = vmul.f32 %v693, 0.02
      %v1974 = vmul.f32 %v695, 0.02
      %v1975 = vmul.f32 %v1142, 0.02
      %v1976 = vmul.f32 %v1144, 0.02
      %v1977 = vmul.f32 %v1591, 0.02
      %v1978 = vmul.f32 %v1593, 0.02
      %v1979 = vmul.f32 %v699, 0.02
      %v1980 = vmul.f32 %v701, 0.02
      %v1981 = vmul.f32 %v1148, 0.02
      %v1982 = vmul.f32 %v1150, 0.02
      %v1983 = vmul.f32 %v1597, 0.02
      %v1984 = vmul.f32 %v1599, 0.02
      %v1985 = vmul.f32 %v705, 0.02
      %v1986 = vmul.f32 %v707, 0.02
      %v1987 = vmul.f32 %v1154, 0.02
      %v1988 = vmul.f32 %v1156, 0.02
      %v1989 = vmul.f32 %v1603, 0.02
      %v1990 = vmul.f32 %v1605, 0.02
      %v1991 = vmul.f32 %v711, 0.02
      %v1992 = vmul.f32 %v713, 0.02
      %v1993 = vmul.f32 %v1160, 0.02
      %v1994 = vmul.f32 %v1162, 0.02
      %v1995 = vmul.f32 %v1609, 0.02
      %v1996 = vmul.f32 %v1611, 0.02
      %v1997 = vmul.f32 %v717, 0.02
      %v1998 = vmul.f32 %v719, 0.02
      %v1999 = vmul.f32 %v1166, 0.02
      %v2000 = vmul.f32 %v1168, 0.02
      %v2001 = vmul.f32 %v1615, 0.02
      %v2002 = vmul.f32 %v1617, 0.02
      %v2003 = vmul.f32 %v723, 0.02
      %v2004 = vmul.f32 %v725, 0.02
      %v2005 = vmul.f32 %v1172, 0.02
      %v2006 = vmul.f32 %v1174, 0.02
      %v2007 = vmul.f32 %v1621, 0.02
      %v2008 = vmul.f32 %v1623, 0.02
      %v2009 = vmul.f32 %v729, 0.02
      %v2010 = vmul.f32 %v731, 0.02
      %v2011 = vmul.f32 %v1178, 0.02
      %v2012 = vmul.f32 %v1180, 0.02
      %v2013 = vmul.f32 %v1627, 0.02
      %v2014 = vmul.f32 %v1629, 0.02
      %v2015 = vmul.f32 %v735, 0.02
      %v2016 = vmul.f32 %v737, 0.02
      %v2017 = vmul.f32 %v1184, 0.02
      %v2018 = vmul.f32 %v1186, 0.02
      %v2019 = vmul.f32 %v1633, 0.02
      %v2020 = vmul.f32 %v1635, 0.02
      %v2021 = vmul.f32 %v741, 0.02
      %v2022 = vmul.f32 %v743, 0.02
      %v2023 = vmul.f32 %v1190, 0.02
      %v2024 = vmul.f32 %v1192, 0.02
      %v2025 = vmul.f32 %v1639, 0.02
      %v2026 = vmul.f32 %v1641, 0.02
      %v2027 = vmul.f32 %v747, 0.02
      %v2028 = vmul.f32 %v749, 0.02
      %v2029 = vmul.f32 %v1196, 0.02
      %v2030 = vmul.f32 %v1198, 0.02
      %v2031 = vmul.f32 %v1645, 0.02
      %v2032 = vmul.f32 %v1647, 0.02
      %v2033 = vmul.f32 %v753, 0.02
      %v2034 = vmul.f32 %v755, 0.02
      %v2035 = vmul.f32 %v1202, 0.02
      %v2036 = vmul.f32 %v1204, 0.02
      %v2037 = vmul.f32 %v1651, 0.02
      %v2038 = vmul.f32 %v1653, 0.02
      %v2039 = vmul.f32 %v759, 0.02
      %v2040 = vmul.f32 %v761, 0.02
      %v2041 = vmul.f32 %v1208, 0.02
      %v2042 = vmul.f32 %v1210, 0.02
      %v2043 = vmul.f32 %v1657, 0.02
      %v2044 = vmul.f32 %v1659, 0.02
      %v2045 = vmul.f32 %v765, 0.02
      %v2046 = vmul.f32 %v767, 0.02
      %v2047 = vmul.f32 %v1214, 0.02
      %v2048 = vmul.f32 %v1216, 0.02
      %v2049 = vmul.f32 %v1663, 0.02
      %v2050 = vmul.f32 %v1665, 0.02
      %v2051 = vmul.f32 %v771, 0.02
      %v2052 = vmul.f32 %v773, 0.02
      %v2053 = vmul.f32 %v1220, 0.02
      %v2054 = vmul.f32 %v1222, 0.02
      %v2055 = vmul.f32 %v1669, 0.02
      %v2056 = vmul.f32 %v1671, 0.02
      %v2057 = vmul.f32 %v777, 0.02
      %v2058 = vmul.f32 %v779, 0.02
      %v2059 = vmul.f32 %v1226, 0.02
      %v2060 = vmul.f32 %v1228, 0.02
      %v2061 = vmul.f32 %v1675, 0.02
      %v2062 = vmul.f32 %v1677, 0.02
      %v2063 = vmul.f32 %v783, 0.02
      %v2064 = vmul.f32 %v785, 0.02
      %v2065 = vmul.f32 %v1232, 0.02
      %v2066 = vmul.f32 %v1234, 0.02
      %v2067 = vmul.f32 %v1681, 0.02
      %v2068 = vmul.f32 %v1683, 0.02
      %v2069 = vmul.f32 %v789, 0.02
      %v2070 = vmul.f32 %v791, 0.02
      %v2071 = vmul.f32 %v1238, 0.02
      %v2072 = vmul.f32 %v1240, 0.02
      %v2073 = vmul.f32 %v1687, 0.02
      %v2074 = vmul.f32 %v1689, 0.02
      %v2075 = vmul.f32 %v795, 0.02
      %v2076 = vmul.f32 %v797, 0.02
      %v2077 = vmul.f32 %v1244, 0.02
      %v2078 = vmul.f32 %v1246, 0.02
      %v2079 = vmul.f32 %v1693, 0.02
      %v2080 = vmul.f32 %v1695, 0.02
      %v2081 = vmul.f32 %v801, 0.02
      %v2082 = vmul.f32 %v803, 0.02
      %v2083 = vmul.f32 %v1250, 0.02
      %v2084 = vmul.f32 %v1252, 0.02
      %v2085 = vmul.f32 %v1699, 0.02
      %v2086 = vmul.f32 %v1701, 0.02
      %v2087 = vmul.f32 %v807, 0.02
      %v2088 = vmul.f32 %v809, 0.02
      %v2089 = vmul.f32 %v1256, 0.02
      %v2090 = vmul.f32 %v1258, 0.02
      %v2091 = vmul.f32 %v1705, 0.02
      %v2092 = vmul.f32 %v1707, 0.02
      %v2093 = vmul.f32 %v813, 0.02
      %v2094 = vmul.f32 %v815, 0.02
      %v2095 = vmul.f32 %v1262, 0.02
      %v2096 = vmul.f32 %v1264, 0.02
      %v2097 = vmul.f32 %v1711, 0.02
      %v2098 = vmul.f32 %v1713, 0.02
      %v2099 = vmul.f32 %v819, 0.02
      %v2100 = vmul.f32 %v821, 0.02
      %v2101 = vmul.f32 %v1268, 0.02
      %v2102 = vmul.f32 %v1270, 0.02
      %v2103 = vmul.f32 %v1717, 0.02
      %v2104 = vmul.f32 %v1719, 0.02
      %v2105 = vmul.f32 %v825, 0.02
      %v2106 = vmul.f32 %v827, 0.02
      %v2107 = vmul.f32 %v1274, 0.02
      %v2108 = vmul.f32 %v1276, 0.02
      %v2109 = vmul.f32 %v1723, 0.02
      %v2110 = vmul.f32 %v1725, 0.02
      %v2111 = vmul.f32 %v831, 0.02
      %v2112 = vmul.f32 %v833, 0.02
      %v2113 = vmul.f32 %v1280, 0.02
      %v2114 = vmul.f32 %v1282, 0.02
      %v2115 = vmul.f32 %v1729, 0.02
      %v2116 = vmul.f32 %v1731, 0.02
      %v2117 = vmul.f32 %v837, 0.02
      %v2118 = vmul.f32 %v839, 0.02
      %v2119 = vmul.f32 %v1286, 0.02
      %v2120 = vmul.f32 %v1288, 0.02
      %v2121 = vmul.f32 %v1735, 0.02
      %v2122 = vmul.f32 %v1737, 0.02
      %v2123 = vmul.f32 %v843, 0.02
      %v2124 = vmul.f32 %v845, 0.02
      %v2125 = vmul.f32 %v1292, 0.02
      %v2126 = vmul.f32 %v1294, 0.02
      %v2127 = vmul.f32 %v1741, 0.02
      %v2128 = vmul.f32 %v1743, 0.02
      %v2129 = vmul.f32 %v849, 0.02
      %v2130 = vmul.f32 %v851, 0.02
      %v2131 = vmul.f32 %v1298, 0.02
      %v2132 = vmul.f32 %v1300, 0.02
      %v2133 = vmul.f32 %v1747, 0.02
      %v2134 = vmul.f32 %v1749, 0.02
      %v2135 = vmul.f32 %v855, 0.02
      %v2136 = vmul.f32 %v857, 0.02
      %v2137 = vmul.f32 %v1304, 0.02
      %v2138 = vmul.f32 %v1306, 0.02
      %v2139 = vmul.f32 %v1753, 0.02
      %v2140 = vmul.f32 %v1755, 0.02
      %v2141 = vmul.f32 %v861, 0.02
      %v2142 = vmul.f32 %v863, 0.02
      %v2143 = vmul.f32 %v1310, 0.02
      %v2144 = vmul.f32 %v1312, 0.02
      %v2145 = vmul.f32 %v1759, 0.02
      %v2146 = vmul.f32 %v1761, 0.02
      %v2147 = vmul.f32 %v867, 0.02
      %v2148 = vmul.f32 %v869, 0.02
      %v2149 = vmul.f32 %v1316, 0.02
      %v2150 = vmul.f32 %v1318, 0.02
      %v2151 = vmul.f32 %v1765, 0.02
      %v2152 = vmul.f32 %v1767, 0.02
      %v2153 = vmul.f32 %v873, 0.02
      %v2154 = vmul.f32 %v875, 0.02
      %v2155 = vmul.f32 %v1322, 0.02
      %v2156 = vmul.f32 %v1324, 0.02
      %v2157 = vmul.f32 %v1771, 0.02
      %v2158 = vmul.f32 %v1773, 0.02
      %v2159 = vmul.f32 %v879, 0.02
      %v2160 = vmul.f32 %v881, 0.02
      %v2161 = vmul.f32 %v1328, 0.02
      %v2162 = vmul.f32 %v1330, 0.02
      %v2163 = vmul.f32 %v1777, 0.02
      %v2164 = vmul.f32 %v1779, 0.02
      %v2165 = vmul.f32 %v885, 0.02
      %v2166 = vmul.f32 %v887, 0.02
      %v2167 = vmul.f32 %v1334, 0.02
      %v2168 = vmul.f32 %v1336, 0.02
      %v2169 = vmul.f32 %v1783, 0.02
      %v2170 = vmul.f32 %v1785, 0.02
      %v2171 = vmul.f32 %v891, 0.02
      %v2172 = vmul.f32 %v893, 0.02
      %v2173 = vmul.f32 %v1340, 0.02
      %v2174 = vmul.f32 %v1342, 0.02
      %v2175 = vmul.f32 %v1789, 0.02
      %v2176 = vmul.f32 %v1791, 0.02
      %v2177 = vmul.f32 %v897, 0.02
      %v2178 = vmul.f32 %v899, 0.02
      %v2179 = vmul.f32 %v1346, 0.02
      %v2180 = vmul.f32 %v1348, 0.02
      %v2181 = vmul.f32 %v1795, 0.02
      %v2182 = vmul.f32 %v1797, 0.02
      %v2183 = vmul.f32 %v903, 0.02
      %v2184 = vmul.f32 %v905, 0.02
      %v2185 = vmul.f32 %v1352, 0.02
      %v2186 = vmul.f32 %v1354, 0.02
      %v2187 = vmul.f32 %v1801, 0.02
      %v2188 = vmul.f32 %v1803, 0.02
      %v2189 = vmul.f32 %v909, 0.02
      %v2190 = vmul.f32 %v911, 0.02
      %v2191 = vmul.f32 %v1358, 0.02
      %v2192 = vmul.f32 %v1360, 0.02
      %v2193 = vmul.f32 %v1807, 0.02
      %v2194 = vmul.f32 %v1809, 0.02
      %v2195 = vmul.f32 %v915, 0.02
      %v2196 = vmul.f32 %v917, 0.02
      %v2197 = vmul.f32 %v1364, 0.02
      %v2198 = vmul.f32 %v1366, 0.02
      %v2199 = vmul.f32 %v1813, 0.02
      %v2200 = vmul.f32 %v1815, 0.02
      %v2201 = vmul.f32 %v921, 0.02
      %v2202 = vmul.f32 %v923, 0.02
      %v2203 = vmul.f32 %v1370, 0.02
      %v2204 = vmul.f32 %v1372, 0.02
      %v2205 = vmul.f32 %v1819, 0.02
      %v2206 = vmul.f32 %v1821, 0.02
      %v2207 = vmul.f32 %v927, 0.02
      %v2208 = vmul.f32 %v929, 0.02
      %v2209 = vmul.f32 %v1376, 0.02
      %v2210 = vmul.f32 %v1378, 0.02
      %v2211 = vmul.f32 %v1825, 0.02
      %v2212 = vmul.f32 %v1827, 0.02
      %v2213 = vmul.f32 %v933, 0.02
      %v2214 = vmul.f32 %v935, 0.02
      %v2215 = vmul.f32 %v1382, 0.02
      %v2216 = vmul.f32 %v1384, 0.02
      %v2217 = vmul.f32 %v1831, 0.02
      %v2218 = vmul.f32 %v1833, 0.02
      %v2219 = vmul.f32 %v939, 0.02
      %v2220 = vmul.f32 %v941, 0.02
      %v2221 = vmul.f32 %v1388, 0.02
      %v2222 = vmul.f32 %v1390, 0.02
      %v2223 = vmul.f32 %v1837, 0.02
      %v2224 = vmul.f32 %v1839, 0.02
      %v2225 = vmul.f32 %v945, 0.02
      %v2226 = vmul.f32 %v947, 0.02
      %v2227 = vmul.f32 %v1394, 0.02
      %v2228 = vmul.f32 %v1396, 0.02
      %v2229 = vmul.f32 %v1843, 0.02
      %v2230 = vmul.f32 %v1845, 0.02
      %v2231 = vmul.f32 %v951, 0.02
      %v2232 = vmul.f32 %v953, 0.02
      %v2233 = vmul.f32 %v1400, 0.02
      %v2234 = vmul.f32 %v1402, 0.02
      %v2235 = vmul.f32 %v1849, 0.02
      %v2236 = vmul.f32 %v1851, 0.02
      %v2237 = vmul.f32 %v957, 0.02
      %v2238 = vmul.f32 %v959, 0.02
      %v2239 = vmul.f32 %v1406, 0.02
      %v2240 = vmul.f32 %v1408, 0.02
      %v2241 = vmul.f32 %v1855, 0.02
      %v2242 = vmul.f32 %v1857, 0.02
      %v2243 = vmul.f32 %v963, 0.02
      %v2244 = vmul.f32 %v965, 0.02
      %v2245 = vmul.f32 %v1412, 0.02
      %v2246 = vmul.f32 %v1414, 0.02
      %v2247 = vmul.f32 %v1861, 0.02
      %v2248 = vmul.f32 %v1863, 0.02
      %v2249 = vmul.f32 %v969, 0.02
      %v2250 = vmul.f32 %v971, 0.02
      %v2251 = vmul.f32 %v1418, 0.02
      %v2252 = vmul.f32 %v1420, 0.02
      %v2253 = vmul.f32 %v1867, 0.02
      %v2254 = vmul.f32 %v1869, 0.02
      %v2255 = vmul.f32 %v975, 0.02
      %v2256 = vmul.f32 %v977, 0.02
      %v2257 = vmul.f32 %v1424, 0.02
      %v2258 = vmul.f32 %v1426, 0.02
      %v2259 = vmul.f32 %v1873, 0.02
      %v2260 = vmul.f32 %v1875, 0.02
      %v2261 = vmul.f32 %v981, 0.02
      %v2262 = vmul.f32 %v983, 0.02
      %v2263 = vmul.f32 %v1430, 0.02
      %v2264 = vmul.f32 %v1432, 0.02
      %v2265 = vmul.f32 %v1879, 0.02
      %v2266 = vmul.f32 %v1881, 0.02
      %v2267 = vmul.f32 %v987, 0.02
      %v2268 = vmul.f32 %v989, 0.02
      %v2269 = vmul.f32 %v1436, 0.02
      %v2270 = vmul.f32 %v1438, 0.02
      %v2271 = vmul.f32 %v1885, 0.02
      %v2272 = vmul.f32 %v1887, 0.02
      %v2273 = vmul.f32 %v993, 0.02
      %v2274 = vmul.f32 %v995, 0.02
      %v2275 = vmul.f32 %v1442, 0.02
      %v2276 = vmul.f32 %v1444, 0.02
      %v2277 = vmul.f32 %v1891, 0.02
      %v2278 = vmul.f32 %v1893, 0.02
      %v2279 = vmul.f32 %v999, 0.02
      %v2280 = vmul.f32 %v1001, 0.02
      %v2281 = vmul.f32 %v1448, 0.02
      %v2282 = vmul.f32 %v1450, 0.02
      %v2283 = vmul.f32 %v1897, 0.02
      %v2284 = vmul.f32 %v1899, 0.02
      %v2285 = vmul.f32 %v1005, 0.02
      %v2286 = vmul.f32 %v1007, 0.02
      %v2287 = vmul.f32 %v1454, 0.02
      %v2288 = vmul.f32 %v1456, 0.02
      %v2289 = vmul.f32 %v1903, 0.02
      %v2290 = vmul.f32 %v1905, 0.02
      %v2291 = vmul.f32 %v1011, 0.02
      %v2292 = vmul.f32 %v1013, 0.02
      %v2293 = vmul.f32 %v1460, 0.02
      %v2294 = vmul.f32 %v1462, 0.02
      %v2295 = vmul.f32 %v1909, 0.02
      %v2296 = vmul.f32 %v1911, 0.02
      %v2297 = vmul.f32 %v1017, 0.02
      %v2298 = vmul.f32 %v1019, 0.02
      %v2299 = vmul.f32 %v1466, 0.02
      %v2300 = vmul.f32 %v1468, 0.02
      %v2301 = vmul.f32 %v1915, 0.02
      %v2302 = vmul.f32 %v1917, 0.02
      %v2303 = vmul.f32 %v1023, 0.02
      %v2304 = vmul.f32 %v1025, 0.02
      %v2305 = vmul.f32 %v1472, 0.02
      %v2306 = vmul.f32 %v1474, 0.02
      %v2307 = vmul.f32 %v1921, 0.02
      %v2308 = vmul.f32 %v1923, 0.02
      %v2309 = vmul.f32 %v1029, 0.02
      %v2310 = vmul.f32 %v1031, 0.02
      %v2311 = vmul.f32 %v1478, 0.02
      %v2312 = vmul.f32 %v1480, 0.02
      %v2313 = vmul.f32 %v1927, 0.02
      %v2314 = vmul.f32 %v1929, 0.02
      %v2315 = vmul.f32 %v1035, 0.02
      %v2316 = vmul.f32 %v1037, 0.02
      %v2317 = vmul.f32 %v1484, 0.02
      %v2318 = vmul.f32 %v1486, 0.02
      %v2319 = vmul.f32 %v1933, 0.02
      %v2320 = vmul.f32 %v1935, 0.02
      %v2321 = vmul.f32 %v1041, 0.02
      %v2322 = vmul.f32 %v1043, 0.02
      %v2323 = vmul.f32 %v1490, 0.02
      %v2324 = vmul.f32 %v1492, 0.02
      %v2325 = vmul.f32 %v1939, 0.02
      %v2326 = vmul.f32 %v1941, 0.02
      %v2327 = vmul.f32 %v1047, 0.02
      %v2328 = vmul.f32 %v1049, 0.02
      %v2329 = vmul.f32 %v1496, 0.02
      %v2330 = vmul.f32 %v1498, 0.02
      %v2331 = vmul.f32 %v1945, 0.02
      %v2332 = vmul.f32 %v1947, 0.02
      %v2333 = vmax.f32 %v669, %v1949
      %v2334 = vmax.f32 %v671, %v1950
      %v2335 = vmax.f32 %v1118, %v1951
      %v2336 = vmax.f32 %v1120, %v1952
      %v2337 = vmax.f32 %v1567, %v1953
      %v2338 = vmax.f32 %v1569, %v1954
      %v2339 = vmax.f32 %v675, %v1955
      %v2340 = vmax.f32 %v677, %v1956
      %v2341 = vmax.f32 %v1124, %v1957
      %v2342 = vmax.f32 %v1126, %v1958
      %v2343 = vmax.f32 %v1573, %v1959
      %v2344 = vmax.f32 %v1575, %v1960
      %v2345 = vmax.f32 %v681, %v1961
      %v2346 = vmax.f32 %v683, %v1962
      %v2347 = vmax.f32 %v1130, %v1963
      %v2348 = vmax.f32 %v1132, %v1964
      %v2349 = vmax.f32 %v1579, %v1965
      %v2350 = vmax.f32 %v1581, %v1966
      %v2351 = vmax.f32 %v687, %v1967
      %v2352 = vmax.f32 %v689, %v1968
      %v2353 = vmax.f32 %v1136, %v1969
      %v2354 = vmax.f32 %v1138, %v1970
      %v2355 = vmax.f32 %v1585, %v1971
      %v2356 = vmax.f32 %v1587, %v1972
      %v2357 = vmax.f32 %v693, %v1973
      %v2358 = vmax.f32 %v695, %v1974
      %v2359 = vmax.f32 %v1142, %v1975
      %v2360 = vmax.f32 %v1144, %v1976
      %v2361 = vmax.f32 %v1591, %v1977
      %v2362 = vmax.f32 %v1593, %v1978
      %v2363 = vmax.f32 %v699, %v1979
      %v2364 = vmax.f32 %v701, %v1980
      %v2365 = vmax.f32 %v1148, %v1981
      %v2366 = vmax.f32 %v1150, %v1982
      %v2367 = vmax.f32 %v1597, %v1983
      %v2368 = vmax.f32 %v1599, %v1984
      %v2369 = vmax.f32 %v705, %v1985
      %v2370 = vmax.f32 %v707, %v1986
      %v2371 = vmax.f32 %v1154, %v1987
      %v2372 = vmax.f32 %v1156, %v1988
      %v2373 = vmax.f32 %v1603, %v1989
      %v2374 = vmax.f32 %v1605, %v1990
      %v2375 = vmax.f32 %v711, %v1991
      %v2376 = vmax.f32 %v713, %v1992
      %v2377 = vmax.f32 %v1160, %v1993
      %v2378 = vmax.f32 %v1162, %v1994
      %v2379 = vmax.f32 %v1609, %v1995
      %v2380 = vmax.f32 %v1611, %v1996
      %v2381 = vmax.f32 %v717, %v1997
      %v2382 = vmax.f32 %v719, %v1998
      %v2383 = vmax.f32 %v1166, %v1999
      %v2384 = vmax.f32 %v1168, %v2000
      %v2385 = vmax.f32 %v1615, %v2001
      %v2386 = vmax.f32 %v1617, %v2002
      %v2387 = vmax.f32 %v723, %v2003
      %v2388 = vmax.f32 %v725, %v2004
      %v2389 = vmax.f32 %v1172, %v2005
      %v2390 = vmax.f32 %v1174, %v2006
      %v2391 = vmax.f32 %v1621, %v2007
      %v2392 = vmax.f32 %v1623, %v2008
      %v2393 = vmax.f32 %v729, %v2009
      %v2394 = vmax.f32 %v731, %v2010
      %v2395 = vmax.f32 %v1178, %v2011
      %v2396 = vmax.f32 %v1180, %v2012
      %v2397 = vmax.f32 %v1627, %v2013
      %v2398 = vmax.f32 %v1629, %v2014
      %v2399 = vmax.f32 %v735, %v2015
      %v2400 = vmax.f32 %v737, %v2016
      %v2401 = vmax.f32 %v1184, %v2017
      %v2402 = vmax.f32 %v1186, %v2018
      %v2403 = vmax.f32 %v1633, %v2019
      %v2404 = vmax.f32 %v1635, %v2020
      %v2405 = vmax.f32 %v741, %v2021
      %v2406 = vmax.f32 %v743, %v2022
      %v2407 = vmax.f32 %v1190, %v2023
      %v2408 = vmax.f32 %v1192, %v2024
      %v2409 = vmax.f32 %v1639, %v2025
      %v2410 = vmax.f32 %v1641, %v2026
      %v2411 = vmax.f32 %v747, %v2027
      %v2412 = vmax.f32 %v749, %v2028
      %v2413 = vmax.f32 %v1196, %v2029
      %v2414 = vmax.f32 %v1198, %v2030
      %v2415 = vmax.f32 %v1645, %v2031
      %v2416 = vmax.f32 %v1647, %v2032
      %v2417 = vmax.f32 %v753, %v2033
      %v2418 = vmax.f32 %v755, %v2034
      %v2419 = vmax.f32 %v1202, %v2035
      %v2420 = vmax.f32 %v1204, %v2036
      %v2421 = vmax.f32 %v1651, %v2037
      %v2422 = vmax.f32 %v1653, %v2038
      %v2423 = vmax.f32 %v759, %v2039
      %v2424 = vmax.f32 %v761, %v2040
      %v2425 = vmax.f32 %v1208, %v2041
      %v2426 = vmax.f32 %v1210, %v2042
      %v2427 = vmax.f32 %v1657, %v2043
      %v2428 = vmax.f32 %v1659, %v2044
      %v2429 = vmax.f32 %v765, %v2045
      %v2430 = vmax.f32 %v767, %v2046
      %v2431 = vmax.f32 %v1214, %v2047
      %v2432 = vmax.f32 %v1216, %v2048
      %v2433 = vmax.f32 %v1663, %v2049
      %v2434 = vmax.f32 %v1665, %v2050
      %v2435 = vmax.f32 %v771, %v2051
      %v2436 = vmax.f32 %v773, %v2052
      %v2437 = vmax.f32 %v1220, %v2053
      %v2438 = vmax.f32 %v1222, %v2054
      %v2439 = vmax.f32 %v1669, %v2055
      %v2440 = vmax.f32 %v1671, %v2056
      %v2441 = vmax.f32 %v777, %v2057
      %v2442 = vmax.f32 %v779, %v2058
      %v2443 = vmax.f32 %v1226, %v2059
      %v2444 = vmax.f32 %v1228, %v2060
      %v2445 = vmax.f32 %v1675, %v2061
      %v2446 = vmax.f32 %v1677, %v2062
      %v2447 = vmax.f32 %v783, %v2063
      %v2448 = vmax.f32 %v785, %v2064
      %v2449 = vmax.f32 %v1232, %v2065
      %v2450 = vmax.f32 %v1234, %v2066
      %v2451 = vmax.f32 %v1681, %v2067
      %v2452 = vmax.f32 %v1683, %v2068
      %v2453 = vmax.f32 %v789, %v2069
      %v2454 = vmax.f32 %v791, %v2070
      %v2455 = vmax.f32 %v1238, %v2071
      %v2456 = vmax.f32 %v1240, %v2072
      %v2457 = vmax.f32 %v1687, %v2073
      %v2458 = vmax.f32 %v1689, %v2074
      %v2459 = vmax.f32 %v795, %v2075
      %v2460 = vmax.f32 %v797, %v2076
      %v2461 = vmax.f32 %v1244, %v2077
      %v2462 = vmax.f32 %v1246, %v2078
      %v2463 = vmax.f32 %v1693, %v2079
      %v2464 = vmax.f32 %v1695, %v2080
      %v2465 = vmax.f32 %v801, %v2081
      %v2466 = vmax.f32 %v803, %v2082
      %v2467 = vmax.f32 %v1250, %v2083
      %v2468 = vmax.f32 %v1252, %v2084
      %v2469 = vmax.f32 %v1699, %v2085
      %v2470 = vmax.f32 %v1701, %v2086
      %v2471 = vmax.f32 %v807, %v2087
      %v2472 = vmax.f32 %v809, %v2088
      %v2473 = vmax.f32 %v1256, %v2089
      %v2474 = vmax.f32 %v1258, %v2090
      %v2475 = vmax.f32 %v1705, %v2091
      %v2476 = vmax.f32 %v1707, %v2092
      %v2477 = vmax.f32 %v813, %v2093
      %v2478 = vmax.f32 %v815, %v2094
      %v2479 = vmax.f32 %v1262, %v2095
      %v2480 = vmax.f32 %v1264, %v2096
      %v2481 = vmax.f32 %v1711, %v2097
      %v2482 = vmax.f32 %v1713, %v2098
      %v2483 = vmax.f32 %v819, %v2099
      %v2484 = vmax.f32 %v821, %v2100
      %v2485 = vmax.f32 %v1268, %v2101
      %v2486 = vmax.f32 %v1270, %v2102
      %v2487 = vmax.f32 %v1717, %v2103
      %v2488 = vmax.f32 %v1719, %v2104
      %v2489 = vmax.f32 %v825, %v2105
      %v2490 = vmax.f32 %v827, %v2106
      %v2491 = vmax.f32 %v1274, %v2107
      %v2492 = vmax.f32 %v1276, %v2108
      %v2493 = vmax.f32 %v1723, %v2109
      %v2494 = vmax.f32 %v1725, %v2110
      %v2495 = vmax.f32 %v831, %v2111
      %v2496 = vmax.f32 %v833, %v2112
      %v2497 = vmax.f32 %v1280, %v2113
      %v2498 = vmax.f32 %v1282, %v2114
      %v2499 = vmax.f32 %v1729, %v2115
      %v2500 = vmax.f32 %v1731, %v2116
      %v2501 = vmax.f32 %v837, %v2117
      %v2502 = vmax.f32 %v839, %v2118
      %v2503 = vmax.f32 %v1286, %v2119
      %v2504 = vmax.f32 %v1288, %v2120
      %v2505 = vmax.f32 %v1735, %v2121
      %v2506 = vmax.f32 %v1737, %v2122
      %v2507 = vmax.f32 %v843, %v2123
      %v2508 = vmax.f32 %v845, %v2124
      %v2509 = vmax.f32 %v1292, %v2125
      %v2510 = vmax.f32 %v1294, %v2126
      %v2511 = vmax.f32 %v1741, %v2127
      %v2512 = vmax.f32 %v1743, %v2128
      %v2513 = vmax.f32 %v849, %v2129
      %v2514 = vmax.f32 %v851, %v2130
      %v2515 = vmax.f32 %v1298, %v2131
      %v2516 = vmax.f32 %v1300, %v2132
      %v2517 = vmax.f32 %v1747, %v2133
      %v2518 = vmax.f32 %v1749, %v2134
      %v2519 = vmax.f32 %v855, %v2135
      %v2520 = vmax.f32 %v857, %v2136
      %v2521 = vmax.f32 %v1304, %v2137
      %v2522 = vmax.f32 %v1306, %v2138
      %v2523 = vmax.f32 %v1753, %v2139
      %v2524 = vmax.f32 %v1755, %v2140
      %v2525 = vmax.f32 %v861, %v2141
      %v2526 = vmax.f32 %v863, %v2142
      %v2527 = vmax.f32 %v1310, %v2143
      %v2528 = vmax.f32 %v1312, %v2144
      %v2529 = vmax.f32 %v1759, %v2145
      %v2530 = vmax.f32 %v1761, %v2146
      %v2531 = vmax.f32 %v867, %v2147
      %v2532 = vmax.f32 %v869, %v2148
      %v2533 = vmax.f32 %v1316, %v2149
      %v2534 = vmax.f32 %v1318, %v2150
      %v2535 = vmax.f32 %v1765, %v2151
      %v2536 = vmax.f32 %v1767, %v2152
      %v2537 = vmax.f32 %v873, %v2153
      %v2538 = vmax.f32 %v875, %v2154
      %v2539 = vmax.f32 %v1322, %v2155
      %v2540 = vmax.f32 %v1324, %v2156
      %v2541 = vmax.f32 %v1771, %v2157
      %v2542 = vmax.f32 %v1773, %v2158
      %v2543 = vmax.f32 %v879, %v2159
      %v2544 = vmax.f32 %v881, %v2160
      %v2545 = vmax.f32 %v1328, %v2161
      %v2546 = vmax.f32 %v1330, %v2162
      %v2547 = vmax.f32 %v1777, %v2163
      %v2548 = vmax.f32 %v1779, %v2164
      %v2549 = vmax.f32 %v885, %v2165
      %v2550 = vmax.f32 %v887, %v2166
      %v2551 = vmax.f32 %v1334, %v2167
      %v2552 = vmax.f32 %v1336, %v2168
      %v2553 = vmax.f32 %v1783, %v2169
      %v2554 = vmax.f32 %v1785, %v2170
      %v2555 = vmax.f32 %v891, %v2171
      %v2556 = vmax.f32 %v893, %v2172
      %v2557 = vmax.f32 %v1340, %v2173
      %v2558 = vmax.f32 %v1342, %v2174
      %v2559 = vmax.f32 %v1789, %v2175
      %v2560 = vmax.f32 %v1791, %v2176
      %v2561 = vmax.f32 %v897, %v2177
      %v2562 = vmax.f32 %v899, %v2178
      %v2563 = vmax.f32 %v1346, %v2179
      %v2564 = vmax.f32 %v1348, %v2180
      %v2565 = vmax.f32 %v1795, %v2181
      %v2566 = vmax.f32 %v1797, %v2182
      %v2567 = vmax.f32 %v903, %v2183
      %v2568 = vmax.f32 %v905, %v2184
      %v2569 = vmax.f32 %v1352, %v2185
      %v2570 = vmax.f32 %v1354, %v2186
      %v2571 = vmax.f32 %v1801, %v2187
      %v2572 = vmax.f32 %v1803, %v2188
      %v2573 = vmax.f32 %v909, %v2189
      %v2574 = vmax.f32 %v911, %v2190
      %v2575 = vmax.f32 %v1358, %v2191
      %v2576 = vmax.f32 %v1360, %v2192
      %v2577 = vmax.f32 %v1807, %v2193
      %v2578 = vmax.f32 %v1809, %v2194
      %v2579 = vmax.f32 %v915, %v2195
      %v2580 = vmax.f32 %v917, %v2196
      %v2581 = vmax.f32 %v1364, %v2197
      %v2582 = vmax.f32 %v1366, %v2198
      %v2583 = vmax.f32 %v1813, %v2199
      %v2584 = vmax.f32 %v1815, %v2200
      %v2585 = vmax.f32 %v921, %v2201
      %v2586 = vmax.f32 %v923, %v2202
      %v2587 = vmax.f32 %v1370, %v2203
      %v2588 = vmax.f32 %v1372, %v2204
      %v2589 = vmax.f32 %v1819, %v2205
      %v2590 = vmax.f32 %v1821, %v2206
      %v2591 = vmax.f32 %v927, %v2207
      %v2592 = vmax.f32 %v929, %v2208
      %v2593 = vmax.f32 %v1376, %v2209
      %v2594 = vmax.f32 %v1378, %v2210
      %v2595 = vmax.f32 %v1825, %v2211
      %v2596 = vmax.f32 %v1827, %v2212
      %v2597 = vmax.f32 %v933, %v2213
      %v2598 = vmax.f32 %v935, %v2214
      %v2599 = vmax.f32 %v1382, %v2215
      %v2600 = vmax.f32 %v1384, %v2216
      %v2601 = vmax.f32 %v1831, %v2217
      %v2602 = vmax.f32 %v1833, %v2218
      %v2603 = vmax.f32 %v939, %v2219
      %v2604 = vmax.f32 %v941, %v2220
      %v2605 = vmax.f32 %v1388, %v2221
      %v2606 = vmax.f32 %v1390, %v2222
      %v2607 = vmax.f32 %v1837, %v2223
      %v2608 = vmax.f32 %v1839, %v2224
      %v2609 = vmax.f32 %v945, %v2225
      %v2610 = vmax.f32 %v947, %v2226
      %v2611 = vmax.f32 %v1394, %v2227
      %v2612 = vmax.f32 %v1396, %v2228
      %v2613 = vmax.f32 %v1843, %v2229
      %v2614 = vmax.f32 %v1845, %v2230
      %v2615 = vmax.f32 %v951, %v2231
      %v2616 = vmax.f32 %v953, %v2232
      %v2617 = vmax.f32 %v1400, %v2233
      %v2618 = vmax.f32 %v1402, %v2234
      %v2619 = vmax.f32 %v1849, %v2235
      %v2620 = vmax.f32 %v1851, %v2236
      %v2621 = vmax.f32 %v957, %v2237
      %v2622 = vmax.f32 %v959, %v2238
      %v2623 = vmax.f32 %v1406, %v2239
      %v2624 = vmax.f32 %v1408, %v2240
      %v2625 = vmax.f32 %v1855, %v2241
      %v2626 = vmax.f32 %v1857, %v2242
      %v2627 = vmax.f32 %v963, %v2243
      %v2628 = vmax.f32 %v965, %v2244
      %v2629 = vmax.f32 %v1412, %v2245
      %v2630 = vmax.f32 %v1414, %v2246
      %v2631 = vmax.f32 %v1861, %v2247
      %v2632 = vmax.f32 %v1863, %v2248
      %v2633 = vmax.f32 %v969, %v2249
      %v2634 = vmax.f32 %v971, %v2250
      %v2635 = vmax.f32 %v1418, %v2251
      %v2636 = vmax.f32 %v1420, %v2252
      %v2637 = vmax.f32 %v1867, %v2253
      %v2638 = vmax.f32 %v1869, %v2254
      %v2639 = vmax.f32 %v975, %v2255
      %v2640 = vmax.f32 %v977, %v2256
      %v2641 = vmax.f32 %v1424, %v2257
      %v2642 = vmax.f32 %v1426, %v2258
      %v2643 = vmax.f32 %v1873, %v2259
      %v2644 = vmax.f32 %v1875, %v2260
      %v2645 = vmax.f32 %v981, %v2261
      %v2646 = vmax.f32 %v983, %v2262
      %v2647 = vmax.f32 %v1430, %v2263
      %v2648 = vmax.f32 %v1432, %v2264
      %v2649 = vmax.f32 %v1879, %v2265
      %v2650 = vmax.f32 %v1881, %v2266
      %v2651 = vmax.f32 %v987, %v2267
      %v2652 = vmax.f32 %v989, %v2268
      %v2653 = vmax.f32 %v1436, %v2269
      %v2654 = vmax.f32 %v1438, %v2270
      %v2655 = vmax.f32 %v1885, %v2271
      %v2656 = vmax.f32 %v1887, %v2272
      %v2657 = vmax.f32 %v993, %v2273
      %v2658 = vmax.f32 %v995, %v2274
      %v2659 = vmax.f32 %v1442, %v2275
      %v2660 = vmax.f32 %v1444, %v2276
      %v2661 = vmax.f32 %v1891, %v2277
      %v2662 = vmax.f32 %v1893, %v2278
      %v2663 = vmax.f32 %v999, %v2279
      %v2664 = vmax.f32 %v1001, %v2280
      %v2665 = vmax.f32 %v1448, %v2281
      %v2666 = vmax.f32 %v1450, %v2282
      %v2667 = vmax.f32 %v1897, %v2283
      %v2668 = vmax.f32 %v1899, %v2284
      %v2669 = vmax.f32 %v1005, %v2285
      %v2670 = vmax.f32 %v1007, %v2286
      %v2671 = vmax.f32 %v1454, %v2287
      %v2672 = vmax.f32 %v1456, %v2288
      %v2673 = vmax.f32 %v1903, %v2289
      %v2674 = vmax.f32 %v1905, %v2290
      %v2675 = vmax.f32 %v1011, %v2291
      %v2676 = vmax.f32 %v1013, %v2292
      %v2677 = vmax.f32 %v1460, %v2293
      %v2678 = vmax.f32 %v1462, %v2294
      %v2679 = vmax.f32 %v1909, %v2295
      %v2680 = vmax.f32 %v1911, %v2296
      %v2681 = vmax.f32 %v1017, %v2297
      %v2682 = vmax.f32 %v1019, %v2298
      %v2683 = vmax.f32 %v1466, %v2299
      %v2684 = vmax.f32 %v1468, %v2300
      %v2685 = vmax.f32 %v1915, %v2301
      %v2686 = vmax.f32 %v1917, %v2302
      %v2687 = vmax.f32 %v1023, %v2303
      %v2688 = vmax.f32 %v1025, %v2304
      %v2689 = vmax.f32 %v1472, %v2305
      %v2690 = vmax.f32 %v1474, %v2306
      %v2691 = vmax.f32 %v1921, %v2307
      %v2692 = vmax.f32 %v1923, %v2308
      %v2693 = vmax.f32 %v1029, %v2309
      %v2694 = vmax.f32 %v1031, %v2310
      %v2695 = vmax.f32 %v1478, %v2311
      %v2696 = vmax.f32 %v1480, %v2312
      %v2697 = vmax.f32 %v1927, %v2313
      %v2698 = vmax.f32 %v1929, %v2314
      %v2699 = vmax.f32 %v1035, %v2315
      %v2700 = vmax.f32 %v1037, %v2316
      %v2701 = vmax.f32 %v1484, %v2317
      %v2702 = vmax.f32 %v1486, %v2318
      %v2703 = vmax.f32 %v1933, %v2319
      %v2704 = vmax.f32 %v1935, %v2320
      %v2705 = vmax.f32 %v1041, %v2321
      %v2706 = vmax.f32 %v1043, %v2322
      %v2707 = vmax.f32 %v1490, %v2323
      %v2708 = vmax.f32 %v1492, %v2324
      %v2709 = vmax.f32 %v1939, %v2325
      %v2710 = vmax.f32 %v1941, %v2326
      %v2711 = vmax.f32 %v1047, %v2327
      %v2712 = vmax.f32 %v1049, %v2328
      %v2713 = vmax.f32 %v1496, %v2329
      %v2714 = vmax.f32 %v1498, %v2330
      %v2715 = vmax.f32 %v1945, %v2331
      %v2716 = vmax.f32 %v1947, %v2332
      %v2717 = vpack.c.bf16 %v2339, %v2333
      %v2718 = vpack.c.bf16 %v2340, %v2334
      %v2719 = vpack.c.bf16 %v2341, %v2335
      %v2720 = vpack.c.bf16 %v2342, %v2336
      %v2721 = vpack.c.bf16 %v2343, %v2337
      %v2722 = vpack.c.bf16 %v2344, %v2338
      %v2723 = vpack.c.bf16 %v2351, %v2345
      %v2724 = vpack.c.bf16 %v2352, %v2346
      %v2725 = vpack.c.bf16 %v2353, %v2347
      %v2726 = vpack.c.bf16 %v2354, %v2348
      %v2727 = vpack.c.bf16 %v2355, %v2349
      %v2728 = vpack.c.bf16 %v2356, %v2350
      %v2729 = vpack.c.bf16 %v2363, %v2357
      %v2730 = vpack.c.bf16 %v2364, %v2358
      %v2731 = vpack.c.bf16 %v2365, %v2359
      %v2732 = vpack.c.bf16 %v2366, %v2360
      %v2733 = vpack.c.bf16 %v2367, %v2361
      %v2734 = vpack.c.bf16 %v2368, %v2362
      %v2735 = vpack.c.bf16 %v2375, %v2369
      %v2736 = vpack.c.bf16 %v2376, %v2370
      %v2737 = vpack.c.bf16 %v2377, %v2371
      %v2738 = vpack.c.bf16 %v2378, %v2372
      %v2739 = vpack.c.bf16 %v2379, %v2373
      %v2740 = vpack.c.bf16 %v2380, %v2374
      %v2741 = vpack.c.bf16 %v2387, %v2381
      %v2742 = vpack.c.bf16 %v2388, %v2382
      %v2743 = vpack.c.bf16 %v2389, %v2383
      %v2744 = vpack.c.bf16 %v2390, %v2384
      %v2745 = vpack.c.bf16 %v2391, %v2385
      %v2746 = vpack.c.bf16 %v2392, %v2386
      %v2747 = vpack.c.bf16 %v2399, %v2393
      %v2748 = vpack.c.bf16 %v2400, %v2394
      %v2749 = vpack.c.bf16 %v2401, %v2395
      %v2750 = vpack.c.bf16 %v2402, %v2396
      %v2751 = vpack.c.bf16 %v2403, %v2397
      %v2752 = vpack.c.bf16 %v2404, %v2398
      %v2753 = vpack.c.bf16 %v2411, %v2405
      %v2754 = vpack.c.bf16 %v2412, %v2406
      %v2755 = vpack.c.bf16 %v2413, %v2407
      %v2756 = vpack.c.bf16 %v2414, %v2408
      %v2757 = vpack.c.bf16 %v2415, %v2409
      %v2758 = vpack.c.bf16 %v2416, %v2410
      %v2759 = vpack.c.bf16 %v2423, %v2417
      %v2760 = vpack.c.bf16 %v2424, %v2418
      %v2761 = vpack.c.bf16 %v2425, %v2419
      %v2762 = vpack.c.bf16 %v2426, %v2420
      %v2763 = vpack.c.bf16 %v2427, %v2421
      %v2764 = vpack.c.bf16 %v2428, %v2422
      %v2765 = vpack.c.bf16 %v2435, %v2429
      %v2766 = vpack.c.bf16 %v2436, %v2430
      %v2767 = vpack.c.bf16 %v2437, %v2431
      %v2768 = vpack.c.bf16 %v2438, %v2432
      %v2769 = vpack.c.bf16 %v2439, %v2433
      %v2770 = vpack.c.bf16 %v2440, %v2434
      %v2771 = vpack.c.bf16 %v2447, %v2441
      %v2772 = vpack.c.bf16 %v2448, %v2442
      %v2773 = vpack.c.bf16 %v2449, %v2443
      %v2774 = vpack.c.bf16 %v2450, %v2444
      %v2775 = vpack.c.bf16 %v2451, %v2445
      %v2776 = vpack.c.bf16 %v2452, %v2446
      %v2777 = vpack.c.bf16 %v2459, %v2453
      %v2778 = vpack.c.bf16 %v2460, %v2454
      %v2779 = vpack.c.bf16 %v2461, %v2455
      %v2780 = vpack.c.bf16 %v2462, %v2456
      %v2781 = vpack.c.bf16 %v2463, %v2457
      %v2782 = vpack.c.bf16 %v2464, %v2458
      %v2783 = vpack.c.bf16 %v2471, %v2465
      %v2784 = vpack.c.bf16 %v2472, %v2466
      %v2785 = vpack.c.bf16 %v2473, %v2467
      %v2786 = vpack.c.bf16 %v2474, %v2468
      %v2787 = vpack.c.bf16 %v2475, %v2469
      %v2788 = vpack.c.bf16 %v2476, %v2470
      %v2789 = vpack.c.bf16 %v2483, %v2477
      %v2790 = vpack.c.bf16 %v2484, %v2478
      %v2791 = vpack.c.bf16 %v2485, %v2479
      %v2792 = vpack.c.bf16 %v2486, %v2480
      %v2793 = vpack.c.bf16 %v2487, %v2481
      %v2794 = vpack.c.bf16 %v2488, %v2482
      %v2795 = vpack.c.bf16 %v2495, %v2489
      %v2796 = vpack.c.bf16 %v2496, %v2490
      %v2797 = vpack.c.bf16 %v2497, %v2491
      %v2798 = vpack.c.bf16 %v2498, %v2492
      %v2799 = vpack.c.bf16 %v2499, %v2493
      %v2800 = vpack.c.bf16 %v2500, %v2494
      %v2801 = vpack.c.bf16 %v2507, %v2501
      %v2802 = vpack.c.bf16 %v2508, %v2502
      %v2803 = vpack.c.bf16 %v2509, %v2503
      %v2804 = vpack.c.bf16 %v2510, %v2504
      %v2805 = vpack.c.bf16 %v2511, %v2505
      %v2806 = vpack.c.bf16 %v2512, %v2506
      %v2807 = vpack.c.bf16 %v2519, %v2513
      %v2808 = vpack.c.bf16 %v2520, %v2514
      %v2809 = vpack.c.bf16 %v2521, %v2515
      %v2810 = vpack.c.bf16 %v2522, %v2516
      %v2811 = vpack.c.bf16 %v2523, %v2517
      %v2812 = vpack.c.bf16 %v2524, %v2518
      %v2813 = vpack.c.bf16 %v2531, %v2525
      %v2814 = vpack.c.bf16 %v2532, %v2526
      %v2815 = vpack.c.bf16 %v2533, %v2527
      %v2816 = vpack.c.bf16 %v2534, %v2528
      %v2817 = vpack.c.bf16 %v2535, %v2529
      %v2818 = vpack.c.bf16 %v2536, %v2530
      %v2819 = vpack.c.bf16 %v2543, %v2537
      %v2820 = vpack.c.bf16 %v2544, %v2538
      %v2821 = vpack.c.bf16 %v2545, %v2539
      %v2822 = vpack.c.bf16 %v2546, %v2540
      %v2823 = vpack.c.bf16 %v2547, %v2541
      %v2824 = vpack.c.bf16 %v2548, %v2542
      %v2825 = vpack.c.bf16 %v2555, %v2549
      %v2826 = vpack.c.bf16 %v2556, %v2550
      %v2827 = vpack.c.bf16 %v2557, %v2551
      %v2828 = vpack.c.bf16 %v2558, %v2552
      %v2829 = vpack.c.bf16 %v2559, %v2553
      %v2830 = vpack.c.bf16 %v2560, %v2554
      %v2831 = vpack.c.bf16 %v2567, %v2561
      %v2832 = vpack.c.bf16 %v2568, %v2562
      %v2833 = vpack.c.bf16 %v2569, %v2563
      %v2834 = vpack.c.bf16 %v2570, %v2564
      %v2835 = vpack.c.bf16 %v2571, %v2565
      %v2836 = vpack.c.bf16 %v2572, %v2566
      %v2837 = vpack.c.bf16 %v2579, %v2573
      %v2838 = vpack.c.bf16 %v2580, %v2574
      %v2839 = vpack.c.bf16 %v2581, %v2575
      %v2840 = vpack.c.bf16 %v2582, %v2576
      %v2841 = vpack.c.bf16 %v2583, %v2577
      %v2842 = vpack.c.bf16 %v2584, %v2578
      %v2843 = vpack.c.bf16 %v2591, %v2585
      %v2844 = vpack.c.bf16 %v2592, %v2586
      %v2845 = vpack.c.bf16 %v2593, %v2587
      %v2846 = vpack.c.bf16 %v2594, %v2588
      %v2847 = vpack.c.bf16 %v2595, %v2589
      %v2848 = vpack.c.bf16 %v2596, %v2590
      %v2849 = vpack.c.bf16 %v2603, %v2597
      %v2850 = vpack.c.bf16 %v2604, %v2598
      %v2851 = vpack.c.bf16 %v2605, %v2599
      %v2852 = vpack.c.bf16 %v2606, %v2600
      %v2853 = vpack.c.bf16 %v2607, %v2601
      %v2854 = vpack.c.bf16 %v2608, %v2602
      %v2855 = vpack.c.bf16 %v2615, %v2609
      %v2856 = vpack.c.bf16 %v2616, %v2610
      %v2857 = vpack.c.bf16 %v2617, %v2611
      %v2858 = vpack.c.bf16 %v2618, %v2612
      %v2859 = vpack.c.bf16 %v2619, %v2613
      %v2860 = vpack.c.bf16 %v2620, %v2614
      %v2861 = vpack.c.bf16 %v2627, %v2621
      %v2862 = vpack.c.bf16 %v2628, %v2622
      %v2863 = vpack.c.bf16 %v2629, %v2623
      %v2864 = vpack.c.bf16 %v2630, %v2624
      %v2865 = vpack.c.bf16 %v2631, %v2625
      %v2866 = vpack.c.bf16 %v2632, %v2626
      %v2867 = vpack.c.bf16 %v2639, %v2633
      %v2868 = vpack.c.bf16 %v2640, %v2634
      %v2869 = vpack.c.bf16 %v2641, %v2635
      %v2870 = vpack.c.bf16 %v2642, %v2636
      %v2871 = vpack.c.bf16 %v2643, %v2637
      %v2872 = vpack.c.bf16 %v2644, %v2638
      %v2873 = vpack.c.bf16 %v2651, %v2645
      %v2874 = vpack.c.bf16 %v2652, %v2646
      %v2875 = vpack.c.bf16 %v2653, %v2647
      %v2876 = vpack.c.bf16 %v2654, %v2648
      %v2877 = vpack.c.bf16 %v2655, %v2649
      %v2878 = vpack.c.bf16 %v2656, %v2650
      %v2879 = vpack.c.bf16 %v2663, %v2657
      %v2880 = vpack.c.bf16 %v2664, %v2658
      %v2881 = vpack.c.bf16 %v2665, %v2659
      %v2882 = vpack.c.bf16 %v2666, %v2660
      %v2883 = vpack.c.bf16 %v2667, %v2661
      %v2884 = vpack.c.bf16 %v2668, %v2662
      %v2885 = vpack.c.bf16 %v2675, %v2669
      %v2886 = vpack.c.bf16 %v2676, %v2670
      %v2887 = vpack.c.bf16 %v2677, %v2671
      %v2888 = vpack.c.bf16 %v2678, %v2672
      %v2889 = vpack.c.bf16 %v2679, %v2673
      %v2890 = vpack.c.bf16 %v2680, %v2674
      %v2891 = vpack.c.bf16 %v2687, %v2681
      %v2892 = vpack.c.bf16 %v2688, %v2682
      %v2893 = vpack.c.bf16 %v2689, %v2683
      %v2894 = vpack.c.bf16 %v2690, %v2684
      %v2895 = vpack.c.bf16 %v2691, %v2685
      %v2896 = vpack.c.bf16 %v2692, %v2686
      %v2897 = vpack.c.bf16 %v2699, %v2693
      %v2898 = vpack.c.bf16 %v2700, %v2694
      %v2899 = vpack.c.bf16 %v2701, %v2695
      %v2900 = vpack.c.bf16 %v2702, %v2696
      %v2901 = vpack.c.bf16 %v2703, %v2697
      %v2902 = vpack.c.bf16 %v2704, %v2698
      %v2903 = vpack.c.bf16 %v2711, %v2705
      %v2904 = vpack.c.bf16 %v2712, %v2706
      %v2905 = vpack.c.bf16 %v2713, %v2707
      %v2906 = vpack.c.bf16 %v2714, %v2708
      %v2907 = vpack.c.bf16 %v2715, %v2709
      %v2908 = vpack.c.bf16 %v2716, %v2710
      %v2909 = vld [vmem:[%s2] sm:$0xff]
      %v2910 = vld [vmem:[%s2 + $0x8] sm:$0xff]
      %v2911 = vld [vmem:[%s2 + $0x10] sm:$0xff]
      %v2912 = vld [vmem:[%s2 + $0x18] sm:$0xff]
      %v2913 = vld [vmem:[%s2 + $0x20] sm:$0xff]
      %v2914 = vld [vmem:[%s2 + $0x28] sm:$0xff]
      %v2915 = vld [vmem:[%s2 + $0x30] sm:$0xff]
      %v2916 = vld [vmem:[%s2 + $0x38] sm:$0xff]
      %v2917 = vld [vmem:[%s2 + $0x40] sm:$0xff]
      %v2918 = vld [vmem:[%s2 + $0x48] sm:$0xff]
      %v2919 = vld [vmem:[%s2 + $0x50] sm:$0xff]
      %v2920 = vld [vmem:[%s2 + $0x58] sm:$0xff]
      %v2921 = vld [vmem:[%s2 + $0x60] sm:$0xff]
      %v2922 = vld [vmem:[%s2 + $0x68] sm:$0xff]
      %v2923 = vld [vmem:[%s2 + $0x70] sm:$0xff]
      %v2924 = vld [vmem:[%s2 + $0x78] sm:$0xff]
      %v2925 = vld [vmem:[%s2 + $0x80] sm:$0xff]
      %v2926 = vld [vmem:[%s2 + $0x88] sm:$0xff]
      %v2927 = vld [vmem:[%s2 + $0x90] sm:$0xff]
      %v2928 = vld [vmem:[%s2 + $0x98] sm:$0xff]
      %v2929 = vld [vmem:[%s2 + $0xa0] sm:$0xff]
      %v2930 = vld [vmem:[%s2 + $0xa8] sm:$0xff]
      %v2931 = vld [vmem:[%s2 + $0xb0] sm:$0xff]
      %v2932 = vld [vmem:[%s2 + $0xb8] sm:$0xff]
      %v2933 = vld [vmem:[%s2 + $0xc0] sm:$0xff]
      %v2934 = vld [vmem:[%s2 + $0xc8] sm:$0xff]
      %v2935 = vld [vmem:[%s2 + $0xd0] sm:$0xff]
      %v2936 = vld [vmem:[%s2 + $0xd8] sm:$0xff]
      %v2937 = vld [vmem:[%s2 + $0xe0] sm:$0xff]
      %v2938 = vld [vmem:[%s2 + $0xe8] sm:$0xff]
      %v2939 = vld [vmem:[%s2 + $0xf0] sm:$0xff]
      %v2940 = vld [vmem:[%s2 + $0xf8] sm:$0xff]
      %v2941 = vld [vmem:[%s328 + $0x200] sm:$0xff]
      %v2942 = vld [vmem:[%s328 + $0x208] sm:$0xff]
      %v2943 = vld [vmem:[%s328 + $0x210] sm:$0xff]
      %v2944 = vld [vmem:[%s328 + $0x218] sm:$0xff]
      %v2945 = vld [vmem:[%s328 + $0x220] sm:$0xff]
      %v2946 = vld [vmem:[%s328 + $0x228] sm:$0xff]
      %v2947 = vld [vmem:[%s328 + $0x230] sm:$0xff]
      %v2948 = vld [vmem:[%s328 + $0x238] sm:$0xff]
      %v2949 = vld [vmem:[%s328 + $0x240] sm:$0xff]
      %v2950 = vld [vmem:[%s328 + $0x248] sm:$0xff]
      %v2951 = vld [vmem:[%s328 + $0x250] sm:$0xff]
      %v2952 = vld [vmem:[%s328 + $0x258] sm:$0xff]
      %v2953 = vld [vmem:[%s328 + $0x260] sm:$0xff]
      %v2954 = vld [vmem:[%s328 + $0x268] sm:$0xff]
      %v2955 = vld [vmem:[%s328 + $0x270] sm:$0xff]
      %v2956 = vld [vmem:[%s328 + $0x278] sm:$0xff]
      %v2958 = vsel %vm409, %v2941, 0
      %v2961 = vsel %vm409, %v2942, 0
      %v2964 = vsel %vm409, %v2943, 0
      %v2967 = vsel %vm409, %v2944, 0
      %v2970 = vsel %vm409, %v2945, 0
      %v2973 = vsel %vm409, %v2946, 0
      %v2976 = vsel %vm409, %v2947, 0
      %v2979 = vsel %vm409, %v2948, 0
      %v2982 = vsel %vm409, %v2949, 0
      %v2985 = vsel %vm409, %v2950, 0
      %v2988 = vsel %vm409, %v2951, 0
      %v2991 = vsel %vm409, %v2952, 0
      %v2994 = vsel %vm409, %v2953, 0
      %v2997 = vsel %vm409, %v2954, 0
      %v3000 = vsel %vm409, %v2955, 0
      %v3003 = vsel %vm409, %v2956, 0
      %3005 = vmatprep.subr.mxu0 0.0
      %3006 = vmatpush1.msra.mxu0 0.0
      %3007 = vmatprep.subr.mxu0 0.0
      %3008 = vmatpush1.msra.mxu0 0.0
      %3009 = vmatprep.subr.mxu0 0.0
      %3010 = vmatpush1.msra.mxu0 0.0
      %3011 = vmatprep.subr.mxu0 0.0
      %3012 = vmatpush1.msra.mxu0 0.0
      %3013 = vmatprep.subr.mxu0 0.0
      %3014 = vmatpush1.msra.mxu0 0.0
      %3015 = vmatprep.subr.mxu0 0.0
      %3016 = vmatpush1.msra.mxu0 0.0
      %3017 = vmatprep.subr.mxu0 0.0
      %3018 = vmatpush1.msra.mxu0 0.0
      %3019 = vmatprep.subr.mxu0 0.0
      %3020 = vmatpush1.msra.mxu0 0.0
      %3021 = vmatprep.subr.mxu0 0.0
      %3022 = vmatpush1.msra.mxu0 0.0
      %3023 = vmatprep.subr.mxu0 0.0
      %3024 = vmatpush1.msra.mxu0 0.0
      %3025 = vmatprep.subr.mxu0 0.0
      %3026 = vmatpush1.msra.mxu0 0.0
      %3027 = vmatprep.subr.mxu0 0.0
      %3028 = vmatpush1.msra.mxu0 0.0
      %3029 = vmatprep.subr.mxu0 0.0
      %3030 = vmatpush1.msra.mxu0 0.0
      %3031 = vmatprep.subr.mxu0 0.0
      %3032 = vmatpush1.msra.mxu0 0.0
      %3033 = vmatprep.subr.mxu0 0.0
      %3034 = vmatpush1.msra.mxu0 0.0
      %3035 = vmatprep.subr.mxu0 %v340
      %3036 = vmatpush1.msra.mxu0 %v339
      %3037 = vmatprep.subr.mxu0 0.0
      %3038 = vmatpush2.msra.mxu0 0.0
      %3039 = vmatprep.subr.mxu0 0.0
      %3040 = vmatpush2.msra.mxu0 0.0
      %3041 = vmatprep.subr.mxu0 0.0
      %3042 = vmatpush2.msra.mxu0 0.0
      %3043 = vmatprep.subr.mxu0 0.0
      %3044 = vmatpush2.msra.mxu0 0.0
      %3045 = vmatprep.subr.mxu0 0.0
      %3046 = vmatpush2.msra.mxu0 0.0
      %3047 = vmatprep.subr.mxu0 0.0
      %3048 = vmatpush2.msra.mxu0 0.0
      %3049 = vmatprep.subr.mxu0 0.0
      %3050 = vmatpush2.msra.mxu0 0.0
      %3051 = vmatprep.subr.mxu0 0.0
      %3052 = vmatpush2.msra.mxu0 0.0
      %3053 = vmatprep.subr.mxu0 0.0
      %3054 = vmatpush2.msra.mxu0 0.0
      %3055 = vmatprep.subr.mxu0 0.0
      %3056 = vmatpush2.msra.mxu0 0.0
      %3057 = vmatprep.subr.mxu0 0.0
      %3058 = vmatpush2.msra.mxu0 0.0
      %3059 = vmatprep.subr.mxu0 0.0
      %3060 = vmatpush2.msra.mxu0 0.0
      %3061 = vmatprep.subr.mxu0 0.0
      %3062 = vmatpush2.msra.mxu0 0.0
      %3063 = vmatprep.subr.mxu0 0.0
      %3064 = vmatpush2.msra.mxu0 0.0
      %3065 = vmatprep.subr.mxu0 0.0
      %3066 = vmatpush2.msra.mxu0 0.0
      %3067 = vmatprep.subr.mxu0 0.0
      %3068 = vmatpush2.msra.mxu0 0.0
      %3069 = vmatprep.mubr.f32.mxu0 0.0
      %3070 = vmatmul.mubr.f32.gmra.mxu0 %v2958
      %v3071 = vpop.f32.mrf.mxu0
      %v3072 = vadd.f32 0.0, %v3071
      %v3073 = vpop.f32.mrf.mxu0
      %v3074 = vadd.f32 0.0, %v3073
      %3075 = vmatprep.mubr.f32.mxu0 0.0
      %3076 = vmatmul.mubr.f32.gmra.mxu0 %v2961
      %v3077 = vpop.f32.mrf.mxu0
      %v3078 = vadd.f32 0.0, %v3077
      %v3079 = vpop.f32.mrf.mxu0
      %v3080 = vadd.f32 0.0, %v3079
      %3081 = vmatprep.mubr.f32.mxu0 0.0
      %3082 = vmatmul.mubr.f32.gmra.mxu0 %v2964
      %v3083 = vpop.f32.mrf.mxu0
      %v3084 = vadd.f32 0.0, %v3083
      %v3085 = vpop.f32.mrf.mxu0
      %v3086 = vadd.f32 0.0, %v3085
      %3087 = vmatprep.mubr.f32.mxu0 0.0
      %3088 = vmatmul.mubr.f32.gmra.mxu0 %v2967
      %v3089 = vpop.f32.mrf.mxu0
      %v3090 = vadd.f32 0.0, %v3089
      %v3091 = vpop.f32.mrf.mxu0
      %v3092 = vadd.f32 0.0, %v3091
      %3093 = vmatprep.mubr.f32.mxu0 0.0
      %3094 = vmatmul.mubr.f32.gmra.mxu0 %v2970
      %v3095 = vpop.f32.mrf.mxu0
      %v3096 = vadd.f32 0.0, %v3095
      %v3097 = vpop.f32.mrf.mxu0
      %v3098 = vadd.f32 0.0, %v3097
      %3099 = vmatprep.mubr.f32.mxu0 0.0
      %3100 = vmatmul.mubr.f32.gmra.mxu0 %v2973
      %v3101 = vpop.f32.mrf.mxu0
      %v3102 = vadd.f32 0.0, %v3101
      %v3103 = vpop.f32.mrf.mxu0
      %v3104 = vadd.f32 0.0, %v3103
      %3105 = vmatprep.mubr.f32.mxu0 0.0
      %3106 = vmatmul.mubr.f32.gmra.mxu0 %v2976
      %v3107 = vpop.f32.mrf.mxu0
      %v3108 = vadd.f32 0.0, %v3107
      %v3109 = vpop.f32.mrf.mxu0
      %v3110 = vadd.f32 0.0, %v3109
      %3111 = vmatprep.mubr.f32.mxu0 0.0
      %3112 = vmatmul.mubr.f32.gmra.mxu0 %v2979
      %v3113 = vpop.f32.mrf.mxu0
      %v3114 = vadd.f32 0.0, %v3113
      %v3115 = vpop.f32.mrf.mxu0
      %v3116 = vadd.f32 0.0, %v3115
      %3117 = vmatprep.mubr.f32.mxu0 0.0
      %3118 = vmatmul.mubr.f32.gmra.mxu0 %v2982
      %v3119 = vpop.f32.mrf.mxu0
      %v3120 = vadd.f32 0.0, %v3119
      %v3121 = vpop.f32.mrf.mxu0
      %v3122 = vadd.f32 0.0, %v3121
      %3123 = vmatprep.mubr.f32.mxu0 0.0
      %3124 = vmatmul.mubr.f32.gmra.mxu0 %v2985
      %v3125 = vpop.f32.mrf.mxu0
      %v3126 = vadd.f32 0.0, %v3125
      %v3127 = vpop.f32.mrf.mxu0
      %v3128 = vadd.f32 0.0, %v3127
      %3129 = vmatprep.mubr.f32.mxu0 0.0
      %3130 = vmatmul.mubr.f32.gmra.mxu0 %v2988
      %v3131 = vpop.f32.mrf.mxu0
      %v3132 = vadd.f32 0.0, %v3131
      %v3133 = vpop.f32.mrf.mxu0
      %v3134 = vadd.f32 0.0, %v3133
      %3135 = vmatprep.mubr.f32.mxu0 0.0
      %3136 = vmatmul.mubr.f32.gmra.mxu0 %v2991
      %v3137 = vpop.f32.mrf.mxu0
      %v3138 = vadd.f32 0.0, %v3137
      %v3139 = vpop.f32.mrf.mxu0
      %v3140 = vadd.f32 0.0, %v3139
      %3141 = vmatprep.mubr.f32.mxu0 0.0
      %3142 = vmatmul.mubr.f32.gmra.mxu0 %v2994
      %v3143 = vpop.f32.mrf.mxu0
      %v3144 = vadd.f32 0.0, %v3143
      %v3145 = vpop.f32.mrf.mxu0
      %v3146 = vadd.f32 0.0, %v3145
      %3147 = vmatprep.mubr.f32.mxu0 0.0
      %3148 = vmatmul.mubr.f32.gmra.mxu0 %v2997
      %v3149 = vpop.f32.mrf.mxu0
      %v3150 = vadd.f32 0.0, %v3149
      %v3151 = vpop.f32.mrf.mxu0
      %v3152 = vadd.f32 0.0, %v3151
      %3153 = vmatprep.mubr.f32.mxu0 0.0
      %3154 = vmatmul.mubr.f32.gmra.mxu0 %v3000
      %v3155 = vpop.f32.mrf.mxu0
      %v3156 = vadd.f32 0.0, %v3155
      %v3157 = vpop.f32.mrf.mxu0
      %v3158 = vadd.f32 0.0, %v3157
      %3159 = vmatprep.mubr.f32.mxu0 0.0
      %3160 = vmatmul.mubr.f32.gmra.mxu0 %v3003
      %v3161 = vpop.f32.mrf.mxu0
      %v3162 = vadd.f32 0.0, %v3161
      %v3163 = vpop.f32.mrf.mxu0
      %v3164 = vadd.f32 0.0, %v3163
      %3165 = vdwg.mxu0
      %3166 = vmatprep.subr.mxu0 0.0
      %3167 = vmatpush1.msra.mxu0 0.0
      %3168 = vmatprep.subr.mxu0 0.0
      %3169 = vmatpush1.msra.mxu0 0.0
      %3170 = vmatprep.subr.mxu0 0.0
      %3171 = vmatpush1.msra.mxu0 0.0
      %3172 = vmatprep.subr.mxu0 0.0
      %3173 = vmatpush1.msra.mxu0 0.0
      %3174 = vmatprep.subr.mxu0 0.0
      %3175 = vmatpush1.msra.mxu0 0.0
      %3176 = vmatprep.subr.mxu0 0.0
      %3177 = vmatpush1.msra.mxu0 0.0
      %3178 = vmatprep.subr.mxu0 0.0
      %3179 = vmatpush1.msra.mxu0 0.0
      %3180 = vmatprep.subr.mxu0 0.0
      %3181 = vmatpush1.msra.mxu0 0.0
      %3182 = vmatprep.subr.mxu0 0.0
      %3183 = vmatpush1.msra.mxu0 0.0
      %3184 = vmatprep.subr.mxu0 0.0
      %3185 = vmatpush1.msra.mxu0 0.0
      %3186 = vmatprep.subr.mxu0 0.0
      %3187 = vmatpush1.msra.mxu0 0.0
      %3188 = vmatprep.subr.mxu0 0.0
      %3189 = vmatpush1.msra.mxu0 0.0
      %3190 = vmatprep.subr.mxu0 0.0
      %3191 = vmatpush1.msra.mxu0 0.0
      %3192 = vmatprep.subr.mxu0 0.0
      %3193 = vmatpush1.msra.mxu0 0.0
      %3194 = vmatprep.subr.mxu0 0.0
      %3195 = vmatpush1.msra.mxu0 0.0
      %3196 = vmatprep.subr.mxu0 %v342
      %3197 = vmatpush1.msra.mxu0 %v341
      %3198 = vmatprep.subr.mxu0 0.0
      %3199 = vmatpush2.msra.mxu0 0.0
      %3200 = vmatprep.subr.mxu0 0.0
      %3201 = vmatpush2.msra.mxu0 0.0
      %3202 = vmatprep.subr.mxu0 0.0
      %3203 = vmatpush2.msra.mxu0 0.0
      %3204 = vmatprep.subr.mxu0 0.0
      %3205 = vmatpush2.msra.mxu0 0.0
      %3206 = vmatprep.subr.mxu0 0.0
      %3207 = vmatpush2.msra.mxu0 0.0
      %3208 = vmatprep.subr.mxu0 0.0
      %3209 = vmatpush2.msra.mxu0 0.0
      %3210 = vmatprep.subr.mxu0 0.0
      %3211 = vmatpush2.msra.mxu0 0.0
      %3212 = vmatprep.subr.mxu0 0.0
      %3213 = vmatpush2.msra.mxu0 0.0
      %3214 = vmatprep.subr.mxu0 0.0
      %3215 = vmatpush2.msra.mxu0 0.0
      %3216 = vmatprep.subr.mxu0 0.0
      %3217 = vmatpush2.msra.mxu0 0.0
      %3218 = vmatprep.subr.mxu0 0.0
      %3219 = vmatpush2.msra.mxu0 0.0
      %3220 = vmatprep.subr.mxu0 0.0
      %3221 = vmatpush2.msra.mxu0 0.0
      %3222 = vmatprep.subr.mxu0 0.0
      %3223 = vmatpush2.msra.mxu0 0.0
      %3224 = vmatprep.subr.mxu0 0.0
      %3225 = vmatpush2.msra.mxu0 0.0
      %3226 = vmatprep.subr.mxu0 0.0
      %3227 = vmatpush2.msra.mxu0 0.0
      %3228 = vmatprep.subr.mxu0 0.0
      %3229 = vmatpush2.msra.mxu0 0.0
      %3230 = vmatprep.mubr.f32.mxu0 0.0
      %3231 = vmatmul.mubr.f32.gmra.mxu0 %v2958
      %v3232 = vpop.f32.mrf.mxu0
      %v3233 = vadd.f32 0.0, %v3232
      %v3234 = vpop.f32.mrf.mxu0
      %v3235 = vadd.f32 0.0, %v3234
      %3236 = vmatprep.mubr.f32.mxu0 0.0
      %3237 = vmatmul.mubr.f32.gmra.mxu0 %v2961
      %v3238 = vpop.f32.mrf.mxu0
      %v3239 = vadd.f32 0.0, %v3238
      %v3240 = vpop.f32.mrf.mxu0
      %v3241 = vadd.f32 0.0, %v3240
      %3242 = vmatprep.mubr.f32.mxu0 0.0
      %3243 = vmatmul.mubr.f32.gmra.mxu0 %v2964
      %v3244 = vpop.f32.mrf.mxu0
      %v3245 = vadd.f32 0.0, %v3244
      %v3246 = vpop.f32.mrf.mxu0
      %v3247 = vadd.f32 0.0, %v3246
      %3248 = vmatprep.mubr.f32.mxu0 0.0
      %3249 = vmatmul.mubr.f32.gmra.mxu0 %v2967
      %v3250 = vpop.f32.mrf.mxu0
      %v3251 = vadd.f32 0.0, %v3250
      %v3252 = vpop.f32.mrf.mxu0
      %v3253 = vadd.f32 0.0, %v3252
      %3254 = vmatprep.mubr.f32.mxu0 0.0
      %3255 = vmatmul.mubr.f32.gmra.mxu0 %v2970
      %v3256 = vpop.f32.mrf.mxu0
      %v3257 = vadd.f32 0.0, %v3256
      %v3258 = vpop.f32.mrf.mxu0
      %v3259 = vadd.f32 0.0, %v3258
      %3260 = vmatprep.mubr.f32.mxu0 0.0
      %3261 = vmatmul.mubr.f32.gmra.mxu0 %v2973
      %v3262 = vpop.f32.mrf.mxu0
      %v3263 = vadd.f32 0.0, %v3262
      %v3264 = vpop.f32.mrf.mxu0
      %v3265 = vadd.f32 0.0, %v3264
      %3266 = vmatprep.mubr.f32.mxu0 0.0
      %3267 = vmatmul.mubr.f32.gmra.mxu0 %v2976
      %v3268 = vpop.f32.mrf.mxu0
      %v3269 = vadd.f32 0.0, %v3268
      %v3270 = vpop.f32.mrf.mxu0
      %v3271 = vadd.f32 0.0, %v3270
      %3272 = vmatprep.mubr.f32.mxu0 0.0
      %3273 = vmatmul.mubr.f32.gmra.mxu0 %v2979
      %v3274 = vpop.f32.mrf.mxu0
      %v3275 = vadd.f32 0.0, %v3274
      %v3276 = vpop.f32.mrf.mxu0
      %v3277 = vadd.f32 0.0, %v3276
      %3278 = vmatprep.mubr.f32.mxu0 0.0
      %3279 = vmatmul.mubr.f32.gmra.mxu0 %v2982
      %v3280 = vpop.f32.mrf.mxu0
      %v3281 = vadd.f32 0.0, %v3280
      %v3282 = vpop.f32.mrf.mxu0
      %v3283 = vadd.f32 0.0, %v3282
      %3284 = vmatprep.mubr.f32.mxu0 0.0
      %3285 = vmatmul.mubr.f32.gmra.mxu0 %v2985
      %v3286 = vpop.f32.mrf.mxu0
      %v3287 = vadd.f32 0.0, %v3286
      %v3288 = vpop.f32.mrf.mxu0
      %v3289 = vadd.f32 0.0, %v3288
      %3290 = vmatprep.mubr.f32.mxu0 0.0
      %3291 = vmatmul.mubr.f32.gmra.mxu0 %v2988
      %v3292 = vpop.f32.mrf.mxu0
      %v3293 = vadd.f32 0.0, %v3292
      %v3294 = vpop.f32.mrf.mxu0
      %v3295 = vadd.f32 0.0, %v3294
      %3296 = vmatprep.mubr.f32.mxu0 0.0
      %3297 = vmatmul.mubr.f32.gmra.mxu0 %v2991
      %v3298 = vpop.f32.mrf.mxu0
      %v3299 = vadd.f32 0.0, %v3298
      %v3300 = vpop.f32.mrf.mxu0
      %v3301 = vadd.f32 0.0, %v3300
      %3302 = vmatprep.mubr.f32.mxu0 0.0
      %3303 = vmatmul.mubr.f32.gmra.mxu0 %v2994
      %v3304 = vpop.f32.mrf.mxu0
      %v3305 = vadd.f32 0.0, %v3304
      %v3306 = vpop.f32.mrf.mxu0
      %v3307 = vadd.f32 0.0, %v3306
      %3308 = vmatprep.mubr.f32.mxu0 0.0
      %3309 = vmatmul.mubr.f32.gmra.mxu0 %v2997
      %v3310 = vpop.f32.mrf.mxu0
      %v3311 = vadd.f32 0.0, %v3310
      %v3312 = vpop.f32.mrf.mxu0
      %v3313 = vadd.f32 0.0, %v3312
      %3314 = vmatprep.mubr.f32.mxu0 0.0
      %3315 = vmatmul.mubr.f32.gmra.mxu0 %v3000
      %v3316 = vpop.f32.mrf.mxu0
      %v3317 = vadd.f32 0.0, %v3316
      %v3318 = vpop.f32.mrf.mxu0
      %v3319 = vadd.f32 0.0, %v3318
      %3320 = vmatprep.mubr.f32.mxu0 0.0
      %3321 = vmatmul.mubr.f32.gmra.mxu0 %v3003
      %v3322 = vpop.f32.mrf.mxu0
      %v3323 = vadd.f32 0.0, %v3322
      %v3324 = vpop.f32.mrf.mxu0
      %v3325 = vadd.f32 0.0, %v3324
      %3326 = vdwg.mxu0
      %3327 = vmatprep.subr.mxu0 0.0
      %3328 = vmatpush1.msra.mxu0 0.0
      %3329 = vmatprep.subr.mxu0 0.0
      %3330 = vmatpush1.msra.mxu0 0.0
      %3331 = vmatprep.subr.mxu0 0.0
      %3332 = vmatpush1.msra.mxu0 0.0
      %3333 = vmatprep.subr.mxu0 0.0
      %3334 = vmatpush1.msra.mxu0 0.0
      %3335 = vmatprep.subr.mxu0 0.0
      %3336 = vmatpush1.msra.mxu0 0.0
      %3337 = vmatprep.subr.mxu0 0.0
      %3338 = vmatpush1.msra.mxu0 0.0
      %3339 = vmatprep.subr.mxu0 0.0
      %3340 = vmatpush1.msra.mxu0 0.0
      %3341 = vmatprep.subr.mxu0 0.0
      %3342 = vmatpush1.msra.mxu0 0.0
      %3343 = vmatprep.subr.mxu0 0.0
      %3344 = vmatpush1.msra.mxu0 0.0
      %3345 = vmatprep.subr.mxu0 0.0
      %3346 = vmatpush1.msra.mxu0 0.0
      %3347 = vmatprep.subr.mxu0 0.0
      %3348 = vmatpush1.msra.mxu0 0.0
      %3349 = vmatprep.subr.mxu0 0.0
      %3350 = vmatpush1.msra.mxu0 0.0
      %3351 = vmatprep.subr.mxu0 0.0
      %3352 = vmatpush1.msra.mxu0 0.0
      %3353 = vmatprep.subr.mxu0 0.0
      %3354 = vmatpush1.msra.mxu0 0.0
      %3355 = vmatprep.subr.mxu0 0.0
      %3356 = vmatpush1.msra.mxu0 0.0
      %3357 = vmatprep.subr.mxu0 %v344
      %3358 = vmatpush1.msra.mxu0 %v343
      %3359 = vmatprep.subr.mxu0 0.0
      %3360 = vmatpush2.msra.mxu0 0.0
      %3361 = vmatprep.subr.mxu0 0.0
      %3362 = vmatpush2.msra.mxu0 0.0
      %3363 = vmatprep.subr.mxu0 0.0
      %3364 = vmatpush2.msra.mxu0 0.0
      %3365 = vmatprep.subr.mxu0 0.0
      %3366 = vmatpush2.msra.mxu0 0.0
      %3367 = vmatprep.subr.mxu0 0.0
      %3368 = vmatpush2.msra.mxu0 0.0
      %3369 = vmatprep.subr.mxu0 0.0
      %3370 = vmatpush2.msra.mxu0 0.0
      %3371 = vmatprep.subr.mxu0 0.0
      %3372 = vmatpush2.msra.mxu0 0.0
      %3373 = vmatprep.subr.mxu0 0.0
      %3374 = vmatpush2.msra.mxu0 0.0
      %3375 = vmatprep.subr.mxu0 0.0
      %3376 = vmatpush2.msra.mxu0 0.0
      %3377 = vmatprep.subr.mxu0 0.0
      %3378 = vmatpush2.msra.mxu0 0.0
      %3379 = vmatprep.subr.mxu0 0.0
      %3380 = vmatpush2.msra.mxu0 0.0
      %3381 = vmatprep.subr.mxu0 0.0
      %3382 = vmatpush2.msra.mxu0 0.0
      %3383 = vmatprep.subr.mxu0 0.0
      %3384 = vmatpush2.msra.mxu0 0.0
      %3385 = vmatprep.subr.mxu0 0.0
      %3386 = vmatpush2.msra.mxu0 0.0
      %3387 = vmatprep.subr.mxu0 0.0
      %3388 = vmatpush2.msra.mxu0 0.0
      %3389 = vmatprep.subr.mxu0 0.0
      %3390 = vmatpush2.msra.mxu0 0.0
      %3391 = vmatprep.mubr.f32.mxu0 0.0
      %3392 = vmatmul.mubr.f32.gmra.mxu0 %v2958
      %v3393 = vpop.f32.mrf.mxu0
      %v3394 = vadd.f32 0.0, %v3393
      %v3395 = vpop.f32.mrf.mxu0
      %v3396 = vadd.f32 0.0, %v3395
      %3397 = vmatprep.mubr.f32.mxu0 0.0
      %3398 = vmatmul.mubr.f32.gmra.mxu0 %v2961
      %v3399 = vpop.f32.mrf.mxu0
      %v3400 = vadd.f32 0.0, %v3399
      %v3401 = vpop.f32.mrf.mxu0
      %v3402 = vadd.f32 0.0, %v3401
      %3403 = vmatprep.mubr.f32.mxu0 0.0
      %3404 = vmatmul.mubr.f32.gmra.mxu0 %v2964
      %v3405 = vpop.f32.mrf.mxu0
      %v3406 = vadd.f32 0.0, %v3405
      %v3407 = vpop.f32.mrf.mxu0
      %v3408 = vadd.f32 0.0, %v3407
      %3409 = vmatprep.mubr.f32.mxu0 0.0
      %3410 = vmatmul.mubr.f32.gmra.mxu0 %v2967
      %v3411 = vpop.f32.mrf.mxu0
      %v3412 = vadd.f32 0.0, %v3411
      %v3413 = vpop.f32.mrf.mxu0
      %v3414 = vadd.f32 0.0, %v3413
      %3415 = vmatprep.mubr.f32.mxu0 0.0
      %3416 = vmatmul.mubr.f32.gmra.mxu0 %v2970
      %v3417 = vpop.f32.mrf.mxu0
      %v3418 = vadd.f32 0.0, %v3417
      %v3419 = vpop.f32.mrf.mxu0
      %v3420 = vadd.f32 0.0, %v3419
      %3421 = vmatprep.mubr.f32.mxu0 0.0
      %3422 = vmatmul.mubr.f32.gmra.mxu0 %v2973
      %v3423 = vpop.f32.mrf.mxu0
      %v3424 = vadd.f32 0.0, %v3423
      %v3425 = vpop.f32.mrf.mxu0
      %v3426 = vadd.f32 0.0, %v3425
      %3427 = vmatprep.mubr.f32.mxu0 0.0
      %3428 = vmatmul.mubr.f32.gmra.mxu0 %v2976
      %v3429 = vpop.f32.mrf.mxu0
      %v3430 = vadd.f32 0.0, %v3429
      %v3431 = vpop.f32.mrf.mxu0
      %v3432 = vadd.f32 0.0, %v3431
      %3433 = vmatprep.mubr.f32.mxu0 0.0
      %3434 = vmatmul.mubr.f32.gmra.mxu0 %v2979
      %v3435 = vpop.f32.mrf.mxu0
      %v3436 = vadd.f32 0.0, %v3435
      %v3437 = vpop.f32.mrf.mxu0
      %v3438 = vadd.f32 0.0, %v3437
      %3439 = vmatprep.mubr.f32.mxu0 0.0
      %3440 = vmatmul.mubr.f32.gmra.mxu0 %v2982
      %v3441 = vpop.f32.mrf.mxu0
      %v3442 = vadd.f32 0.0, %v3441
      %v3443 = vpop.f32.mrf.mxu0
      %v3444 = vadd.f32 0.0, %v3443
      %3445 = vmatprep.mubr.f32.mxu0 0.0
      %3446 = vmatmul.mubr.f32.gmra.mxu0 %v2985
      %v3447 = vpop.f32.mrf.mxu0
      %v3448 = vadd.f32 0.0, %v3447
      %v3449 = vpop.f32.mrf.mxu0
      %v3450 = vadd.f32 0.0, %v3449
      %3451 = vmatprep.mubr.f32.mxu0 0.0
      %3452 = vmatmul.mubr.f32.gmra.mxu0 %v2988
      %v3453 = vpop.f32.mrf.mxu0
      %v3454 = vadd.f32 0.0, %v3453
      %v3455 = vpop.f32.mrf.mxu0
      %v3456 = vadd.f32 0.0, %v3455
      %3457 = vmatprep.mubr.f32.mxu0 0.0
      %3458 = vmatmul.mubr.f32.gmra.mxu0 %v2991
      %v3459 = vpop.f32.mrf.mxu0
      %v3460 = vadd.f32 0.0, %v3459
      %v3461 = vpop.f32.mrf.mxu0
      %v3462 = vadd.f32 0.0, %v3461
      %3463 = vmatprep.mubr.f32.mxu0 0.0
      %3464 = vmatmul.mubr.f32.gmra.mxu0 %v2994
      %v3465 = vpop.f32.mrf.mxu0
      %v3466 = vadd.f32 0.0, %v3465
      %v3467 = vpop.f32.mrf.mxu0
      %v3468 = vadd.f32 0.0, %v3467
      %3469 = vmatprep.mubr.f32.mxu0 0.0
      %3470 = vmatmul.mubr.f32.gmra.mxu0 %v2997
      %v3471 = vpop.f32.mrf.mxu0
      %v3472 = vadd.f32 0.0, %v3471
      %v3473 = vpop.f32.mrf.mxu0
      %v3474 = vadd.f32 0.0, %v3473
      %3475 = vmatprep.mubr.f32.mxu0 0.0
      %3476 = vmatmul.mubr.f32.gmra.mxu0 %v3000
      %v3477 = vpop.f32.mrf.mxu0
      %v3478 = vadd.f32 0.0, %v3477
      %v3479 = vpop.f32.mrf.mxu0
      %v3480 = vadd.f32 0.0, %v3479
      %3481 = vmatprep.mubr.f32.mxu0 0.0
      %3482 = vmatmul.mubr.f32.gmra.mxu0 %v3003
      %v3483 = vpop.f32.mrf.mxu0
      %v3484 = vadd.f32 0.0, %v3483
      %v3485 = vpop.f32.mrf.mxu0
      %v3486 = vadd.f32 0.0, %v3485
      %3487 = vdwg.mxu0
      %v3520 = vunpack.c.l.b16 %v2909
      %v3521 = vunpack.c.h.b16 %v2909
      %v3522 = vunpack.c.l.b16 %v2910
      %v3523 = vunpack.c.h.b16 %v2910
      %v3524 = vunpack.c.l.b16 %v2911
      %v3525 = vunpack.c.h.b16 %v2911
      %v3526 = vunpack.c.l.b16 %v2912
      %v3527 = vunpack.c.h.b16 %v2912
      %v3528 = vunpack.c.l.b16 %v2913
      %v3529 = vunpack.c.h.b16 %v2913
      %v3530 = vunpack.c.l.b16 %v2914
      %v3531 = vunpack.c.h.b16 %v2914
      %v3532 = vunpack.c.l.b16 %v2915
      %v3533 = vunpack.c.h.b16 %v2915
      %v3534 = vunpack.c.l.b16 %v2916
      %v3535 = vunpack.c.h.b16 %v2916
      %v3536 = vunpack.c.l.b16 %v2917
      %v3537 = vunpack.c.h.b16 %v2917
      %v3538 = vunpack.c.l.b16 %v2918
      %v3539 = vunpack.c.h.b16 %v2918
      %v3540 = vunpack.c.l.b16 %v2919
      %v3541 = vunpack.c.h.b16 %v2919
      %v3542 = vunpack.c.l.b16 %v2920
      %v3543 = vunpack.c.h.b16 %v2920
      %v3544 = vunpack.c.l.b16 %v2921
      %v3545 = vunpack.c.h.b16 %v2921
      %v3546 = vunpack.c.l.b16 %v2922
      %v3547 = vunpack.c.h.b16 %v2922
      %v3548 = vunpack.c.l.b16 %v2923
      %v3549 = vunpack.c.h.b16 %v2923
      %v3550 = vunpack.c.l.b16 %v2924
      %v3551 = vunpack.c.h.b16 %v2924
      %v3552 = vunpack.c.l.b16 %v2925
      %v3553 = vunpack.c.h.b16 %v2925
      %v3554 = vunpack.c.l.b16 %v2926
      %v3555 = vunpack.c.h.b16 %v2926
      %v3556 = vunpack.c.l.b16 %v2927
      %v3557 = vunpack.c.h.b16 %v2927
      %v3558 = vunpack.c.l.b16 %v2928
      %v3559 = vunpack.c.h.b16 %v2928
      %v3560 = vunpack.c.l.b16 %v2929
      %v3561 = vunpack.c.h.b16 %v2929
      %v3562 = vunpack.c.l.b16 %v2930
      %v3563 = vunpack.c.h.b16 %v2930
      %v3564 = vunpack.c.l.b16 %v2931
      %v3565 = vunpack.c.h.b16 %v2931
      %v3566 = vunpack.c.l.b16 %v2932
      %v3567 = vunpack.c.h.b16 %v2932
      %v3568 = vunpack.c.l.b16 %v2933
      %v3569 = vunpack.c.h.b16 %v2933
      %v3570 = vunpack.c.l.b16 %v2934
      %v3571 = vunpack.c.h.b16 %v2934
      %v3572 = vunpack.c.l.b16 %v2935
      %v3573 = vunpack.c.h.b16 %v2935
      %v3574 = vunpack.c.l.b16 %v2936
      %v3575 = vunpack.c.h.b16 %v2936
      %v3576 = vunpack.c.l.b16 %v2937
      %v3577 = vunpack.c.h.b16 %v2937
      %v3578 = vunpack.c.l.b16 %v2938
      %v3579 = vunpack.c.h.b16 %v2938
      %v3580 = vunpack.c.l.b16 %v2939
      %v3581 = vunpack.c.h.b16 %v2939
      %v3582 = vunpack.c.l.b16 %v2940
      %v3583 = vunpack.c.h.b16 %v2940
      %v3584 = vpack.c.b16 %v3524, %v3520
      %v3585 = vpack.c.b16 %v3525, %v3521
      %v3586 = vpack.c.b16 %v3526, %v3522
      %v3587 = vpack.c.b16 %v3527, %v3523
      %v3588 = vpack.c.b16 %v3532, %v3528
      %v3589 = vpack.c.b16 %v3533, %v3529
      %v3590 = vpack.c.b16 %v3534, %v3530
      %v3591 = vpack.c.b16 %v3535, %v3531
      %v3592 = vpack.c.b16 %v3540, %v3536
      %v3593 = vpack.c.b16 %v3541, %v3537
      %v3594 = vpack.c.b16 %v3542, %v3538
      %v3595 = vpack.c.b16 %v3543, %v3539
      %v3596 = vpack.c.b16 %v3548, %v3544
      %v3597 = vpack.c.b16 %v3549, %v3545
      %v3598 = vpack.c.b16 %v3550, %v3546
      %v3599 = vpack.c.b16 %v3551, %v3547
      %v3600 = vpack.c.b16 %v3556, %v3552
      %v3601 = vpack.c.b16 %v3557, %v3553
      %v3602 = vpack.c.b16 %v3558, %v3554
      %v3603 = vpack.c.b16 %v3559, %v3555
      %v3604 = vpack.c.b16 %v3564, %v3560
      %v3605 = vpack.c.b16 %v3565, %v3561
      %v3606 = vpack.c.b16 %v3566, %v3562
      %v3607 = vpack.c.b16 %v3567, %v3563
      %v3608 = vpack.c.b16 %v3572, %v3568
      %v3609 = vpack.c.b16 %v3573, %v3569
      %v3610 = vpack.c.b16 %v3574, %v3570
      %v3611 = vpack.c.b16 %v3575, %v3571
      %v3612 = vpack.c.b16 %v3580, %v3576
      %v3613 = vpack.c.b16 %v3581, %v3577
      %v3614 = vpack.c.b16 %v3582, %v3578
      %v3615 = vpack.c.b16 %v3583, %v3579
      %3648 = vmatprep.subr.bf16.mxu0 %v2760
      %3649 = vmatpush1.bf16.msra.mxu0 %v2759
      %3650 = vmatprep.subr.bf16.mxu0 %v2754
      %3651 = vmatpush1.bf16.msra.mxu0 %v2753
      %3652 = vmatprep.subr.bf16.mxu0 %v2748
      %3653 = vmatpush1.bf16.msra.mxu0 %v2747
      %3654 = vmatprep.subr.bf16.mxu0 %v2742
      %3655 = vmatpush1.bf16.msra.mxu0 %v2741
      %3656 = vmatprep.subr.bf16.mxu0 %v2736
      %3657 = vmatpush1.bf16.msra.mxu0 %v2735
      %3658 = vmatprep.subr.bf16.mxu0 %v2730
      %3659 = vmatpush1.bf16.msra.mxu0 %v2729
      %3660 = vmatprep.subr.bf16.mxu0 %v2724
      %3661 = vmatpush1.bf16.msra.mxu0 %v2723
      %3662 = vmatprep.subr.bf16.mxu0 %v2718
      %3663 = vmatpush1.bf16.msra.mxu0 %v2717
      %3664 = vmatprep.subr.bf16.mxu0 %v2808
      %3665 = vmatpush2.bf16.msra.mxu0 %v2807
      %3666 = vmatprep.subr.bf16.mxu0 %v2802
      %3667 = vmatpush2.bf16.msra.mxu0 %v2801
      %3668 = vmatprep.subr.bf16.mxu0 %v2796
      %3669 = vmatpush2.bf16.msra.mxu0 %v2795
      %3670 = vmatprep.subr.bf16.mxu0 %v2790
      %3671 = vmatpush2.bf16.msra.mxu0 %v2789
      %3672 = vmatprep.subr.bf16.mxu0 %v2784
      %3673 = vmatpush2.bf16.msra.mxu0 %v2783
      %3674 = vmatprep.subr.bf16.mxu0 %v2778
      %3675 = vmatpush2.bf16.msra.mxu0 %v2777
      %3676 = vmatprep.subr.bf16.mxu0 %v2772
      %3677 = vmatpush2.bf16.msra.mxu0 %v2771
      %3678 = vmatprep.subr.bf16.mxu0 %v2766
      %3679 = vmatpush2.bf16.msra.mxu0 %v2765
      %3680 = vmatprep.mubr.bf16.mxu0 %v3585
      %3681 = vmatmul.mubr.bf16.gmra.mxu0 %v3584
      %v3682 = vpop.f32.mrf.mxu0
      %v3683 = vadd.f32 %v3072, %v3682
      %v3684 = vpop.f32.mrf.mxu0
      %v3685 = vadd.f32 %v3074, %v3684
      %v3686 = vpop.f32.mrf.mxu0
      %v3687 = vadd.f32 %v3078, %v3686
      %v3688 = vpop.f32.mrf.mxu0
      %v3689 = vadd.f32 %v3080, %v3688
      %3690 = vmatprep.mubr.bf16.mxu0 %v3589
      %3691 = vmatmul.mubr.bf16.gmra.mxu0 %v3588
      %v3692 = vpop.f32.mrf.mxu0
      %v3693 = vadd.f32 %v3084, %v3692
      %v3694 = vpop.f32.mrf.mxu0
      %v3695 = vadd.f32 %v3086, %v3694
      %v3696 = vpop.f32.mrf.mxu0
      %v3697 = vadd.f32 %v3090, %v3696
      %v3698 = vpop.f32.mrf.mxu0
      %v3699 = vadd.f32 %v3092, %v3698
      %3700 = vmatprep.mubr.bf16.mxu0 %v3593
      %3701 = vmatmul.mubr.bf16.gmra.mxu0 %v3592
      %v3702 = vpop.f32.mrf.mxu0
      %v3703 = vadd.f32 %v3096, %v3702
      %v3704 = vpop.f32.mrf.mxu0
      %v3705 = vadd.f32 %v3098, %v3704
      %v3706 = vpop.f32.mrf.mxu0
      %v3707 = vadd.f32 %v3102, %v3706
      %v3708 = vpop.f32.mrf.mxu0
      %v3709 = vadd.f32 %v3104, %v3708
      %3710 = vmatprep.mubr.bf16.mxu0 %v3597
      %3711 = vmatmul.mubr.bf16.gmra.mxu0 %v3596
      %v3712 = vpop.f32.mrf.mxu0
      %v3713 = vadd.f32 %v3108, %v3712
      %v3714 = vpop.f32.mrf.mxu0
      %v3715 = vadd.f32 %v3110, %v3714
      %v3716 = vpop.f32.mrf.mxu0
      %v3717 = vadd.f32 %v3114, %v3716
      %v3718 = vpop.f32.mrf.mxu0
      %v3719 = vadd.f32 %v3116, %v3718
      %3720 = vmatprep.mubr.bf16.mxu0 %v3601
      %3721 = vmatmul.mubr.bf16.gmra.mxu0 %v3600
      %v3722 = vpop.f32.mrf.mxu0
      %v3723 = vadd.f32 %v3120, %v3722
      %v3724 = vpop.f32.mrf.mxu0
      %v3725 = vadd.f32 %v3122, %v3724
      %v3726 = vpop.f32.mrf.mxu0
      %v3727 = vadd.f32 %v3126, %v3726
      %v3728 = vpop.f32.mrf.mxu0
      %v3729 = vadd.f32 %v3128, %v3728
      %3730 = vmatprep.mubr.bf16.mxu0 %v3605
      %3731 = vmatmul.mubr.bf16.gmra.mxu0 %v3604
      %v3732 = vpop.f32.mrf.mxu0
      %v3733 = vadd.f32 %v3132, %v3732
      %v3734 = vpop.f32.mrf.mxu0
      %v3735 = vadd.f32 %v3134, %v3734
      %v3736 = vpop.f32.mrf.mxu0
      %v3737 = vadd.f32 %v3138, %v3736
      %v3738 = vpop.f32.mrf.mxu0
      %v3739 = vadd.f32 %v3140, %v3738
      %3740 = vmatprep.mubr.bf16.mxu0 %v3609
      %3741 = vmatmul.mubr.bf16.gmra.mxu0 %v3608
      %v3742 = vpop.f32.mrf.mxu0
      %v3743 = vadd.f32 %v3144, %v3742
      %v3744 = vpop.f32.mrf.mxu0
      %v3745 = vadd.f32 %v3146, %v3744
      %v3746 = vpop.f32.mrf.mxu0
      %v3747 = vadd.f32 %v3150, %v3746
      %v3748 = vpop.f32.mrf.mxu0
      %v3749 = vadd.f32 %v3152, %v3748
      %3750 = vmatprep.mubr.bf16.mxu0 %v3613
      %3751 = vmatmul.mubr.bf16.gmra.mxu0 %v3612
      %v3752 = vpop.f32.mrf.mxu0
      %v3753 = vadd.f32 %v3156, %v3752
      %v3754 = vpop.f32.mrf.mxu0
      %v3755 = vadd.f32 %v3158, %v3754
      %v3756 = vpop.f32.mrf.mxu0
      %v3757 = vadd.f32 %v3162, %v3756
      %v3758 = vpop.f32.mrf.mxu0
      %v3759 = vadd.f32 %v3164, %v3758
      %3760 = vdwg.mxu0
      %3761 = vmatprep.subr.bf16.mxu0 %v2856
      %3762 = vmatpush1.bf16.msra.mxu0 %v2855
      %3763 = vmatprep.subr.bf16.mxu0 %v2850
      %3764 = vmatpush1.bf16.msra.mxu0 %v2849
      %3765 = vmatprep.subr.bf16.mxu0 %v2844
      %3766 = vmatpush1.bf16.msra.mxu0 %v2843
      %3767 = vmatprep.subr.bf16.mxu0 %v2838
      %3768 = vmatpush1.bf16.msra.mxu0 %v2837
      %3769 = vmatprep.subr.bf16.mxu0 %v2832
      %3770 = vmatpush1.bf16.msra.mxu0 %v2831
      %3771 = vmatprep.subr.bf16.mxu0 %v2826
      %3772 = vmatpush1.bf16.msra.mxu0 %v2825
      %3773 = vmatprep.subr.bf16.mxu0 %v2820
      %3774 = vmatpush1.bf16.msra.mxu0 %v2819
      %3775 = vmatprep.subr.bf16.mxu0 %v2814
      %3776 = vmatpush1.bf16.msra.mxu0 %v2813
      %3777 = vmatprep.subr.bf16.mxu0 %v2904
      %3778 = vmatpush2.bf16.msra.mxu0 %v2903
      %3779 = vmatprep.subr.bf16.mxu0 %v2898
      %3780 = vmatpush2.bf16.msra.mxu0 %v2897
      %3781 = vmatprep.subr.bf16.mxu0 %v2892
      %3782 = vmatpush2.bf16.msra.mxu0 %v2891
      %3783 = vmatprep.subr.bf16.mxu0 %v2886
      %3784 = vmatpush2.bf16.msra.mxu0 %v2885
      %3785 = vmatprep.subr.bf16.mxu0 %v2880
      %3786 = vmatpush2.bf16.msra.mxu0 %v2879
      %3787 = vmatprep.subr.bf16.mxu0 %v2874
      %3788 = vmatpush2.bf16.msra.mxu0 %v2873
      %3789 = vmatprep.subr.bf16.mxu0 %v2868
      %3790 = vmatpush2.bf16.msra.mxu0 %v2867
      %3791 = vmatprep.subr.bf16.mxu0 %v2862
      %3792 = vmatpush2.bf16.msra.mxu0 %v2861
      %3793 = vmatprep.mubr.bf16.mxu0 %v3587
      %3794 = vmatmul.mubr.bf16.gmra.mxu0 %v3586
      %v3795 = vpop.f32.mrf.mxu0
      %v3796 = vadd.f32 %v3683, %v3795
      %v3797 = vpop.f32.mrf.mxu0
      %v3798 = vadd.f32 %v3685, %v3797
      %v3799 = vpop.f32.mrf.mxu0
      %v3800 = vadd.f32 %v3687, %v3799
      %v3801 = vpop.f32.mrf.mxu0
      %v3802 = vadd.f32 %v3689, %v3801
      %3803 = vmatprep.mubr.bf16.mxu0 %v3591
      %3804 = vmatmul.mubr.bf16.gmra.mxu0 %v3590
      %v3805 = vpop.f32.mrf.mxu0
      %v3806 = vadd.f32 %v3693, %v3805
      %v3807 = vpop.f32.mrf.mxu0
      %v3808 = vadd.f32 %v3695, %v3807
      %v3809 = vpop.f32.mrf.mxu0
      %v3810 = vadd.f32 %v3697, %v3809
      %v3811 = vpop.f32.mrf.mxu0
      %v3812 = vadd.f32 %v3699, %v3811
      %3813 = vmatprep.mubr.bf16.mxu0 %v3595
      %3814 = vmatmul.mubr.bf16.gmra.mxu0 %v3594
      %v3815 = vpop.f32.mrf.mxu0
      %v3816 = vadd.f32 %v3703, %v3815
      %v3817 = vpop.f32.mrf.mxu0
      %v3818 = vadd.f32 %v3705, %v3817
      %v3819 = vpop.f32.mrf.mxu0
      %v3820 = vadd.f32 %v3707, %v3819
      %v3821 = vpop.f32.mrf.mxu0
      %v3822 = vadd.f32 %v3709, %v3821
      %3823 = vmatprep.mubr.bf16.mxu0 %v3599
      %3824 = vmatmul.mubr.bf16.gmra.mxu0 %v3598
      %v3825 = vpop.f32.mrf.mxu0
      %v3826 = vadd.f32 %v3713, %v3825
      %v3827 = vpop.f32.mrf.mxu0
      %v3828 = vadd.f32 %v3715, %v3827
      %v3829 = vpop.f32.mrf.mxu0
      %v3830 = vadd.f32 %v3717, %v3829
      %v3831 = vpop.f32.mrf.mxu0
      %v3832 = vadd.f32 %v3719, %v3831
      %3833 = vmatprep.mubr.bf16.mxu0 %v3603
      %3834 = vmatmul.mubr.bf16.gmra.mxu0 %v3602
      %v3835 = vpop.f32.mrf.mxu0
      %v3836 = vadd.f32 %v3723, %v3835
      %v3837 = vpop.f32.mrf.mxu0
      %v3838 = vadd.f32 %v3725, %v3837
      %v3839 = vpop.f32.mrf.mxu0
      %v3840 = vadd.f32 %v3727, %v3839
      %v3841 = vpop.f32.mrf.mxu0
      %v3842 = vadd.f32 %v3729, %v3841
      %3843 = vmatprep.mubr.bf16.mxu0 %v3607
      %3844 = vmatmul.mubr.bf16.gmra.mxu0 %v3606
      %v3845 = vpop.f32.mrf.mxu0
      %v3846 = vadd.f32 %v3733, %v3845
      %v3847 = vpop.f32.mrf.mxu0
      %v3848 = vadd.f32 %v3735, %v3847
      %v3849 = vpop.f32.mrf.mxu0
      %v3850 = vadd.f32 %v3737, %v3849
      %v3851 = vpop.f32.mrf.mxu0
      %v3852 = vadd.f32 %v3739, %v3851
      %3853 = vmatprep.mubr.bf16.mxu0 %v3611
      %3854 = vmatmul.mubr.bf16.gmra.mxu0 %v3610
      %v3855 = vpop.f32.mrf.mxu0
      %v3856 = vadd.f32 %v3743, %v3855
      %v3857 = vpop.f32.mrf.mxu0
      %v3858 = vadd.f32 %v3745, %v3857
      %v3859 = vpop.f32.mrf.mxu0
      %v3860 = vadd.f32 %v3747, %v3859
      %v3861 = vpop.f32.mrf.mxu0
      %v3862 = vadd.f32 %v3749, %v3861
      %3863 = vmatprep.mubr.bf16.mxu0 %v3615
      %3864 = vmatmul.mubr.bf16.gmra.mxu0 %v3614
      %v3865 = vpop.f32.mrf.mxu0
      %v3866 = vadd.f32 %v3753, %v3865
      %v3867 = vpop.f32.mrf.mxu0
      %v3868 = vadd.f32 %v3755, %v3867
      %v3869 = vpop.f32.mrf.mxu0
      %v3870 = vadd.f32 %v3757, %v3869
      %v3871 = vpop.f32.mrf.mxu0
      %v3872 = vadd.f32 %v3759, %v3871
      %3873 = vdwg.mxu0
      %3874 = vmatprep.subr.bf16.mxu0 %v2762
      %3875 = vmatpush1.bf16.msra.mxu0 %v2761
      %3876 = vmatprep.subr.bf16.mxu0 %v2756
      %3877 = vmatpush1.bf16.msra.mxu0 %v2755
      %3878 = vmatprep.subr.bf16.mxu0 %v2750
      %3879 = vmatpush1.bf16.msra.mxu0 %v2749
      %3880 = vmatprep.subr.bf16.mxu0 %v2744
      %3881 = vmatpush1.bf16.msra.mxu0 %v2743
      %3882 = vmatprep.subr.bf16.mxu0 %v2738
      %3883 = vmatpush1.bf16.msra.mxu0 %v2737
      %3884 = vmatprep.subr.bf16.mxu0 %v2732
      %3885 = vmatpush1.bf16.msra.mxu0 %v2731
      %3886 = vmatprep.subr.bf16.mxu0 %v2726
      %3887 = vmatpush1.bf16.msra.mxu0 %v2725
      %3888 = vmatprep.subr.bf16.mxu0 %v2720
      %3889 = vmatpush1.bf16.msra.mxu0 %v2719
      %3890 = vmatprep.subr.bf16.mxu0 %v2810
      %3891 = vmatpush2.bf16.msra.mxu0 %v2809
      %3892 = vmatprep.subr.bf16.mxu0 %v2804
      %3893 = vmatpush2.bf16.msra.mxu0 %v2803
      %3894 = vmatprep.subr.bf16.mxu0 %v2798
      %3895 = vmatpush2.bf16.msra.mxu0 %v2797
      %3896 = vmatprep.subr.bf16.mxu0 %v2792
      %3897 = vmatpush2.bf16.msra.mxu0 %v2791
      %3898 = vmatprep.subr.bf16.mxu0 %v2786
      %3899 = vmatpush2.bf16.msra.mxu0 %v2785
      %3900 = vmatprep.subr.bf16.mxu0 %v2780
      %3901 = vmatpush2.bf16.msra.mxu0 %v2779
      %3902 = vmatprep.subr.bf16.mxu0 %v2774
      %3903 = vmatpush2.bf16.msra.mxu0 %v2773
      %3904 = vmatprep.subr.bf16.mxu0 %v2768
      %3905 = vmatpush2.bf16.msra.mxu0 %v2767
      %3906 = vmatprep.mubr.bf16.mxu0 %v3585
      %3907 = vmatmul.mubr.bf16.gmra.mxu0 %v3584
      %v3908 = vpop.f32.mrf.mxu0
      %v3909 = vadd.f32 %v3233, %v3908
      %v3910 = vpop.f32.mrf.mxu0
      %v3911 = vadd.f32 %v3235, %v3910
      %v3912 = vpop.f32.mrf.mxu0
      %v3913 = vadd.f32 %v3239, %v3912
      %v3914 = vpop.f32.mrf.mxu0
      %v3915 = vadd.f32 %v3241, %v3914
      %3916 = vmatprep.mubr.bf16.mxu0 %v3589
      %3917 = vmatmul.mubr.bf16.gmra.mxu0 %v3588
      %v3918 = vpop.f32.mrf.mxu0
      %v3919 = vadd.f32 %v3245, %v3918
      %v3920 = vpop.f32.mrf.mxu0
      %v3921 = vadd.f32 %v3247, %v3920
      %v3922 = vpop.f32.mrf.mxu0
      %v3923 = vadd.f32 %v3251, %v3922
      %v3924 = vpop.f32.mrf.mxu0
      %v3925 = vadd.f32 %v3253, %v3924
      %3926 = vmatprep.mubr.bf16.mxu0 %v3593
      %3927 = vmatmul.mubr.bf16.gmra.mxu0 %v3592
      %v3928 = vpop.f32.mrf.mxu0
      %v3929 = vadd.f32 %v3257, %v3928
      %v3930 = vpop.f32.mrf.mxu0
      %v3931 = vadd.f32 %v3259, %v3930
      %v3932 = vpop.f32.mrf.mxu0
      %v3933 = vadd.f32 %v3263, %v3932
      %v3934 = vpop.f32.mrf.mxu0
      %v3935 = vadd.f32 %v3265, %v3934
      %3936 = vmatprep.mubr.bf16.mxu0 %v3597
      %3937 = vmatmul.mubr.bf16.gmra.mxu0 %v3596
      %v3938 = vpop.f32.mrf.mxu0
      %v3939 = vadd.f32 %v3269, %v3938
      %v3940 = vpop.f32.mrf.mxu0
      %v3941 = vadd.f32 %v3271, %v3940
      %v3942 = vpop.f32.mrf.mxu0
      %v3943 = vadd.f32 %v3275, %v3942
      %v3944 = vpop.f32.mrf.mxu0
      %v3945 = vadd.f32 %v3277, %v3944
      %3946 = vmatprep.mubr.bf16.mxu0 %v3601
      %3947 = vmatmul.mubr.bf16.gmra.mxu0 %v3600
      %v3948 = vpop.f32.mrf.mxu0
      %v3949 = vadd.f32 %v3281, %v3948
      %v3950 = vpop.f32.mrf.mxu0
      %v3951 = vadd.f32 %v3283, %v3950
      %v3952 = vpop.f32.mrf.mxu0
      %v3953 = vadd.f32 %v3287, %v3952
      %v3954 = vpop.f32.mrf.mxu0
      %v3955 = vadd.f32 %v3289, %v3954
      %3956 = vmatprep.mubr.bf16.mxu0 %v3605
      %3957 = vmatmul.mubr.bf16.gmra.mxu0 %v3604
      %v3958 = vpop.f32.mrf.mxu0
      %v3959 = vadd.f32 %v3293, %v3958
      %v3960 = vpop.f32.mrf.mxu0
      %v3961 = vadd.f32 %v3295, %v3960
      %v3962 = vpop.f32.mrf.mxu0
      %v3963 = vadd.f32 %v3299, %v3962
      %v3964 = vpop.f32.mrf.mxu0
      %v3965 = vadd.f32 %v3301, %v3964
      %3966 = vmatprep.mubr.bf16.mxu0 %v3609
      %3967 = vmatmul.mubr.bf16.gmra.mxu0 %v3608
      %v3968 = vpop.f32.mrf.mxu0
      %v3969 = vadd.f32 %v3305, %v3968
      %v3970 = vpop.f32.mrf.mxu0
      %v3971 = vadd.f32 %v3307, %v3970
      %v3972 = vpop.f32.mrf.mxu0
      %v3973 = vadd.f32 %v3311, %v3972
      %v3974 = vpop.f32.mrf.mxu0
      %v3975 = vadd.f32 %v3313, %v3974
      %3976 = vmatprep.mubr.bf16.mxu0 %v3613
      %3977 = vmatmul.mubr.bf16.gmra.mxu0 %v3612
      %v3978 = vpop.f32.mrf.mxu0
      %v3979 = vadd.f32 %v3317, %v3978
      %v3980 = vpop.f32.mrf.mxu0
      %v3981 = vadd.f32 %v3319, %v3980
      %v3982 = vpop.f32.mrf.mxu0
      %v3983 = vadd.f32 %v3323, %v3982
      %v3984 = vpop.f32.mrf.mxu0
      %v3985 = vadd.f32 %v3325, %v3984
      %3986 = vdwg.mxu0
      %3987 = vmatprep.subr.bf16.mxu0 %v2858
      %3988 = vmatpush1.bf16.msra.mxu0 %v2857
      %3989 = vmatprep.subr.bf16.mxu0 %v2852
      %3990 = vmatpush1.bf16.msra.mxu0 %v2851
      %3991 = vmatprep.subr.bf16.mxu0 %v2846
      %3992 = vmatpush1.bf16.msra.mxu0 %v2845
      %3993 = vmatprep.subr.bf16.mxu0 %v2840
      %3994 = vmatpush1.bf16.msra.mxu0 %v2839
      %3995 = vmatprep.subr.bf16.mxu0 %v2834
      %3996 = vmatpush1.bf16.msra.mxu0 %v2833
      %3997 = vmatprep.subr.bf16.mxu0 %v2828
      %3998 = vmatpush1.bf16.msra.mxu0 %v2827
      %3999 = vmatprep.subr.bf16.mxu0 %v2822
      %4000 = vmatpush1.bf16.msra.mxu0 %v2821
      %4001 = vmatprep.subr.bf16.mxu0 %v2816
      %4002 = vmatpush1.bf16.msra.mxu0 %v2815
      %4003 = vmatprep.subr.bf16.mxu0 %v2906
      %4004 = vmatpush2.bf16.msra.mxu0 %v2905
      %4005 = vmatprep.subr.bf16.mxu0 %v2900
      %4006 = vmatpush2.bf16.msra.mxu0 %v2899
      %4007 = vmatprep.subr.bf16.mxu0 %v2894
      %4008 = vmatpush2.bf16.msra.mxu0 %v2893
      %4009 = vmatprep.subr.bf16.mxu0 %v2888
      %4010 = vmatpush2.bf16.msra.mxu0 %v2887
      %4011 = vmatprep.subr.bf16.mxu0 %v2882
      %4012 = vmatpush2.bf16.msra.mxu0 %v2881
      %4013 = vmatprep.subr.bf16.mxu0 %v2876
      %4014 = vmatpush2.bf16.msra.mxu0 %v2875
      %4015 = vmatprep.subr.bf16.mxu0 %v2870
      %4016 = vmatpush2.bf16.msra.mxu0 %v2869
      %4017 = vmatprep.subr.bf16.mxu0 %v2864
      %4018 = vmatpush2.bf16.msra.mxu0 %v2863
      %4019 = vmatprep.mubr.bf16.mxu0 %v3587
      %4020 = vmatmul.mubr.bf16.gmra.mxu0 %v3586
      %v4021 = vpop.f32.mrf.mxu0
      %v4022 = vadd.f32 %v3909, %v4021
      %v4023 = vpop.f32.mrf.mxu0
      %v4024 = vadd.f32 %v3911, %v4023
      %v4025 = vpop.f32.mrf.mxu0
      %v4026 = vadd.f32 %v3913, %v4025
      %v4027 = vpop.f32.mrf.mxu0
      %v4028 = vadd.f32 %v3915, %v4027
      %4029 = vmatprep.mubr.bf16.mxu0 %v3591
      %4030 = vmatmul.mubr.bf16.gmra.mxu0 %v3590
      %v4031 = vpop.f32.mrf.mxu0
      %v4032 = vadd.f32 %v3919, %v4031
      %v4033 = vpop.f32.mrf.mxu0
      %v4034 = vadd.f32 %v3921, %v4033
      %v4035 = vpop.f32.mrf.mxu0
      %v4036 = vadd.f32 %v3923, %v4035
      %v4037 = vpop.f32.mrf.mxu0
      %v4038 = vadd.f32 %v3925, %v4037
      %4039 = vmatprep.mubr.bf16.mxu0 %v3595
      %4040 = vmatmul.mubr.bf16.gmra.mxu0 %v3594
      %v4041 = vpop.f32.mrf.mxu0
      %v4042 = vadd.f32 %v3929, %v4041
      %v4043 = vpop.f32.mrf.mxu0
      %v4044 = vadd.f32 %v3931, %v4043
      %v4045 = vpop.f32.mrf.mxu0
      %v4046 = vadd.f32 %v3933, %v4045
      %v4047 = vpop.f32.mrf.mxu0
      %v4048 = vadd.f32 %v3935, %v4047
      %4049 = vmatprep.mubr.bf16.mxu0 %v3599
      %4050 = vmatmul.mubr.bf16.gmra.mxu0 %v3598
      %v4051 = vpop.f32.mrf.mxu0
      %v4052 = vadd.f32 %v3939, %v4051
      %v4053 = vpop.f32.mrf.mxu0
      %v4054 = vadd.f32 %v3941, %v4053
      %v4055 = vpop.f32.mrf.mxu0
      %v4056 = vadd.f32 %v3943, %v4055
      %v4057 = vpop.f32.mrf.mxu0
      %v4058 = vadd.f32 %v3945, %v4057
      %4059 = vmatprep.mubr.bf16.mxu0 %v3603
      %4060 = vmatmul.mubr.bf16.gmra.mxu0 %v3602
      %v4061 = vpop.f32.mrf.mxu0
      %v4062 = vadd.f32 %v3949, %v4061
      %v4063 = vpop.f32.mrf.mxu0
      %v4064 = vadd.f32 %v3951, %v4063
      %v4065 = vpop.f32.mrf.mxu0
      %v4066 = vadd.f32 %v3953, %v4065
      %v4067 = vpop.f32.mrf.mxu0
      %v4068 = vadd.f32 %v3955, %v4067
      %4069 = vmatprep.mubr.bf16.mxu0 %v3607
      %4070 = vmatmul.mubr.bf16.gmra.mxu0 %v3606
      %v4071 = vpop.f32.mrf.mxu0
      %v4072 = vadd.f32 %v3959, %v4071
      %v4073 = vpop.f32.mrf.mxu0
      %v4074 = vadd.f32 %v3961, %v4073
      %v4075 = vpop.f32.mrf.mxu0
      %v4076 = vadd.f32 %v3963, %v4075
      %v4077 = vpop.f32.mrf.mxu0
      %v4078 = vadd.f32 %v3965, %v4077
      %4079 = vmatprep.mubr.bf16.mxu0 %v3611
      %4080 = vmatmul.mubr.bf16.gmra.mxu0 %v3610
      %v4081 = vpop.f32.mrf.mxu0
      %v4082 = vadd.f32 %v3969, %v4081
      %v4083 = vpop.f32.mrf.mxu0
      %v4084 = vadd.f32 %v3971, %v4083
      %v4085 = vpop.f32.mrf.mxu0
      %v4086 = vadd.f32 %v3973, %v4085
      %v4087 = vpop.f32.mrf.mxu0
      %v4088 = vadd.f32 %v3975, %v4087
      %4089 = vmatprep.mubr.bf16.mxu0 %v3615
      %4090 = vmatmul.mubr.bf16.gmra.mxu0 %v3614
      %v4091 = vpop.f32.mrf.mxu0
      %v4092 = vadd.f32 %v3979, %v4091
      %v4093 = vpop.f32.mrf.mxu0
      %v4094 = vadd.f32 %v3981, %v4093
      %v4095 = vpop.f32.mrf.mxu0
      %v4096 = vadd.f32 %v3983, %v4095
      %v4097 = vpop.f32.mrf.mxu0
      %v4098 = vadd.f32 %v3985, %v4097
      %4099 = vdwg.mxu0
      %4100 = vmatprep.subr.bf16.mxu0 %v2764
      %4101 = vmatpush1.bf16.msra.mxu0 %v2763
      %4102 = vmatprep.subr.bf16.mxu0 %v2758
      %4103 = vmatpush1.bf16.msra.mxu0 %v2757
      %4104 = vmatprep.subr.bf16.mxu0 %v2752
      %4105 = vmatpush1.bf16.msra.mxu0 %v2751
      %4106 = vmatprep.subr.bf16.mxu0 %v2746
      %4107 = vmatpush1.bf16.msra.mxu0 %v2745
      %4108 = vmatprep.subr.bf16.mxu0 %v2740
      %4109 = vmatpush1.bf16.msra.mxu0 %v2739
      %4110 = vmatprep.subr.bf16.mxu0 %v2734
      %4111 = vmatpush1.bf16.msra.mxu0 %v2733
      %4112 = vmatprep.subr.bf16.mxu0 %v2728
      %4113 = vmatpush1.bf16.msra.mxu0 %v2727
      %4114 = vmatprep.subr.bf16.mxu0 %v2722
      %4115 = vmatpush1.bf16.msra.mxu0 %v2721
      %4116 = vmatprep.subr.bf16.mxu0 %v2812
      %4117 = vmatpush2.bf16.msra.mxu0 %v2811
      %4118 = vmatprep.subr.bf16.mxu0 %v2806
      %4119 = vmatpush2.bf16.msra.mxu0 %v2805
      %4120 = vmatprep.subr.bf16.mxu0 %v2800
      %4121 = vmatpush2.bf16.msra.mxu0 %v2799
      %4122 = vmatprep.subr.bf16.mxu0 %v2794
      %4123 = vmatpush2.bf16.msra.mxu0 %v2793
      %4124 = vmatprep.subr.bf16.mxu0 %v2788
      %4125 = vmatpush2.bf16.msra.mxu0 %v2787
      %4126 = vmatprep.subr.bf16.mxu0 %v2782
      %4127 = vmatpush2.bf16.msra.mxu0 %v2781
      %4128 = vmatprep.subr.bf16.mxu0 %v2776
      %4129 = vmatpush2.bf16.msra.mxu0 %v2775
      %4130 = vmatprep.subr.bf16.mxu0 %v2770
      %4131 = vmatpush2.bf16.msra.mxu0 %v2769
      %4132 = vmatprep.mubr.bf16.mxu0 %v3585
      %4133 = vmatmul.mubr.bf16.gmra.mxu0 %v3584
      %v4134 = vpop.f32.mrf.mxu0
      %v4135 = vadd.f32 %v3394, %v4134
      %v4136 = vpop.f32.mrf.mxu0
      %v4137 = vadd.f32 %v3396, %v4136
      %v4138 = vpop.f32.mrf.mxu0
      %v4139 = vadd.f32 %v3400, %v4138
      %v4140 = vpop.f32.mrf.mxu0
      %v4141 = vadd.f32 %v3402, %v4140
      %4142 = vmatprep.mubr.bf16.mxu0 %v3589
      %4143 = vmatmul.mubr.bf16.gmra.mxu0 %v3588
      %v4144 = vpop.f32.mrf.mxu0
      %v4145 = vadd.f32 %v3406, %v4144
      %v4146 = vpop.f32.mrf.mxu0
      %v4147 = vadd.f32 %v3408, %v4146
      %v4148 = vpop.f32.mrf.mxu0
      %v4149 = vadd.f32 %v3412, %v4148
      %v4150 = vpop.f32.mrf.mxu0
      %v4151 = vadd.f32 %v3414, %v4150
      %4152 = vmatprep.mubr.bf16.mxu0 %v3593
      %4153 = vmatmul.mubr.bf16.gmra.mxu0 %v3592
      %v4154 = vpop.f32.mrf.mxu0
      %v4155 = vadd.f32 %v3418, %v4154
      %v4156 = vpop.f32.mrf.mxu0
      %v4157 = vadd.f32 %v3420, %v4156
      %v4158 = vpop.f32.mrf.mxu0
      %v4159 = vadd.f32 %v3424, %v4158
      %v4160 = vpop.f32.mrf.mxu0
      %v4161 = vadd.f32 %v3426, %v4160
      %4162 = vmatprep.mubr.bf16.mxu0 %v3597
      %4163 = vmatmul.mubr.bf16.gmra.mxu0 %v3596
      %v4164 = vpop.f32.mrf.mxu0
      %v4165 = vadd.f32 %v3430, %v4164
      %v4166 = vpop.f32.mrf.mxu0
      %v4167 = vadd.f32 %v3432, %v4166
      %v4168 = vpop.f32.mrf.mxu0
      %v4169 = vadd.f32 %v3436, %v4168
      %v4170 = vpop.f32.mrf.mxu0
      %v4171 = vadd.f32 %v3438, %v4170
      %4172 = vmatprep.mubr.bf16.mxu0 %v3601
      %4173 = vmatmul.mubr.bf16.gmra.mxu0 %v3600
      %v4174 = vpop.f32.mrf.mxu0
      %v4175 = vadd.f32 %v3442, %v4174
      %v4176 = vpop.f32.mrf.mxu0
      %v4177 = vadd.f32 %v3444, %v4176
      %v4178 = vpop.f32.mrf.mxu0
      %v4179 = vadd.f32 %v3448, %v4178
      %v4180 = vpop.f32.mrf.mxu0
      %v4181 = vadd.f32 %v3450, %v4180
      %4182 = vmatprep.mubr.bf16.mxu0 %v3605
      %4183 = vmatmul.mubr.bf16.gmra.mxu0 %v3604
      %v4184 = vpop.f32.mrf.mxu0
      %v4185 = vadd.f32 %v3454, %v4184
      %v4186 = vpop.f32.mrf.mxu0
      %v4187 = vadd.f32 %v3456, %v4186
      %v4188 = vpop.f32.mrf.mxu0
      %v4189 = vadd.f32 %v3460, %v4188
      %v4190 = vpop.f32.mrf.mxu0
      %v4191 = vadd.f32 %v3462, %v4190
      %4192 = vmatprep.mubr.bf16.mxu0 %v3609
      %4193 = vmatmul.mubr.bf16.gmra.mxu0 %v3608
      %v4194 = vpop.f32.mrf.mxu0
      %v4195 = vadd.f32 %v3466, %v4194
      %v4196 = vpop.f32.mrf.mxu0
      %v4197 = vadd.f32 %v3468, %v4196
      %v4198 = vpop.f32.mrf.mxu0
      %v4199 = vadd.f32 %v3472, %v4198
      %v4200 = vpop.f32.mrf.mxu0
      %v4201 = vadd.f32 %v3474, %v4200
      %4202 = vmatprep.mubr.bf16.mxu0 %v3613
      %4203 = vmatmul.mubr.bf16.gmra.mxu0 %v3612
      %v4204 = vpop.f32.mrf.mxu0
      %v4205 = vadd.f32 %v3478, %v4204
      %v4206 = vpop.f32.mrf.mxu0
      %v4207 = vadd.f32 %v3480, %v4206
      %v4208 = vpop.f32.mrf.mxu0
      %v4209 = vadd.f32 %v3484, %v4208
      %v4210 = vpop.f32.mrf.mxu0
      %v4211 = vadd.f32 %v3486, %v4210
      %4212 = vdwg.mxu0
      %4213 = vmatprep.subr.bf16.mxu0 %v2860
      %4214 = vmatpush1.bf16.msra.mxu0 %v2859
      %4215 = vmatprep.subr.bf16.mxu0 %v2854
      %4216 = vmatpush1.bf16.msra.mxu0 %v2853
      %4217 = vmatprep.subr.bf16.mxu0 %v2848
      %4218 = vmatpush1.bf16.msra.mxu0 %v2847
      %4219 = vmatprep.subr.bf16.mxu0 %v2842
      %4220 = vmatpush1.bf16.msra.mxu0 %v2841
      %4221 = vmatprep.subr.bf16.mxu0 %v2836
      %4222 = vmatpush1.bf16.msra.mxu0 %v2835
      %4223 = vmatprep.subr.bf16.mxu0 %v2830
      %4224 = vmatpush1.bf16.msra.mxu0 %v2829
      %4225 = vmatprep.subr.bf16.mxu0 %v2824
      %4226 = vmatpush1.bf16.msra.mxu0 %v2823
      %4227 = vmatprep.subr.bf16.mxu0 %v2818
      %4228 = vmatpush1.bf16.msra.mxu0 %v2817
      %4229 = vmatprep.subr.bf16.mxu0 %v2908
      %4230 = vmatpush2.bf16.msra.mxu0 %v2907
      %4231 = vmatprep.subr.bf16.mxu0 %v2902
      %4232 = vmatpush2.bf16.msra.mxu0 %v2901
      %4233 = vmatprep.subr.bf16.mxu0 %v2896
      %4234 = vmatpush2.bf16.msra.mxu0 %v2895
      %4235 = vmatprep.subr.bf16.mxu0 %v2890
      %4236 = vmatpush2.bf16.msra.mxu0 %v2889
      %4237 = vmatprep.subr.bf16.mxu0 %v2884
      %4238 = vmatpush2.bf16.msra.mxu0 %v2883
      %4239 = vmatprep.subr.bf16.mxu0 %v2878
      %4240 = vmatpush2.bf16.msra.mxu0 %v2877
      %4241 = vmatprep.subr.bf16.mxu0 %v2872
      %4242 = vmatpush2.bf16.msra.mxu0 %v2871
      %4243 = vmatprep.subr.bf16.mxu0 %v2866
      %4244 = vmatpush2.bf16.msra.mxu0 %v2865
      %4245 = vmatprep.mubr.bf16.mxu0 %v3587
      %4246 = vmatmul.mubr.bf16.gmra.mxu0 %v3586
      %v4247 = vpop.f32.mrf.mxu0
      %v4248 = vadd.f32 %v4135, %v4247
      %v4249 = vpop.f32.mrf.mxu0
      %v4250 = vadd.f32 %v4137, %v4249
      %v4251 = vpop.f32.mrf.mxu0
      %v4252 = vadd.f32 %v4139, %v4251
      %v4253 = vpop.f32.mrf.mxu0
      %v4254 = vadd.f32 %v4141, %v4253
      %4255 = vmatprep.mubr.bf16.mxu0 %v3591
      %4256 = vmatmul.mubr.bf16.gmra.mxu0 %v3590
      %v4257 = vpop.f32.mrf.mxu0
      %v4258 = vadd.f32 %v4145, %v4257
      %v4259 = vpop.f32.mrf.mxu0
      %v4260 = vadd.f32 %v4147, %v4259
      %v4261 = vpop.f32.mrf.mxu0
      %v4262 = vadd.f32 %v4149, %v4261
      %v4263 = vpop.f32.mrf.mxu0
      %v4264 = vadd.f32 %v4151, %v4263
      %4265 = vmatprep.mubr.bf16.mxu0 %v3595
      %4266 = vmatmul.mubr.bf16.gmra.mxu0 %v3594
      %v4267 = vpop.f32.mrf.mxu0
      %v4268 = vadd.f32 %v4155, %v4267
      %v4269 = vpop.f32.mrf.mxu0
      %v4270 = vadd.f32 %v4157, %v4269
      %v4271 = vpop.f32.mrf.mxu0
      %v4272 = vadd.f32 %v4159, %v4271
      %v4273 = vpop.f32.mrf.mxu0
      %v4274 = vadd.f32 %v4161, %v4273
      %4275 = vmatprep.mubr.bf16.mxu0 %v3599
      %4276 = vmatmul.mubr.bf16.gmra.mxu0 %v3598
      %v4277 = vpop.f32.mrf.mxu0
      %v4278 = vadd.f32 %v4165, %v4277
      %v4279 = vpop.f32.mrf.mxu0
      %v4280 = vadd.f32 %v4167, %v4279
      %v4281 = vpop.f32.mrf.mxu0
      %v4282 = vadd.f32 %v4169, %v4281
      %v4283 = vpop.f32.mrf.mxu0
      %v4284 = vadd.f32 %v4171, %v4283
      %4285 = vmatprep.mubr.bf16.mxu0 %v3603
      %4286 = vmatmul.mubr.bf16.gmra.mxu0 %v3602
      %v4287 = vpop.f32.mrf.mxu0
      %v4288 = vadd.f32 %v4175, %v4287
      %v4289 = vpop.f32.mrf.mxu0
      %v4290 = vadd.f32 %v4177, %v4289
      %v4291 = vpop.f32.mrf.mxu0
      %v4292 = vadd.f32 %v4179, %v4291
      %v4293 = vpop.f32.mrf.mxu0
      %v4294 = vadd.f32 %v4181, %v4293
      %4295 = vmatprep.mubr.bf16.mxu0 %v3607
      %4296 = vmatmul.mubr.bf16.gmra.mxu0 %v3606
      %v4297 = vpop.f32.mrf.mxu0
      %v4298 = vadd.f32 %v4185, %v4297
      %v4299 = vpop.f32.mrf.mxu0
      %v4300 = vadd.f32 %v4187, %v4299
      %v4301 = vpop.f32.mrf.mxu0
      %v4302 = vadd.f32 %v4189, %v4301
      %v4303 = vpop.f32.mrf.mxu0
      %v4304 = vadd.f32 %v4191, %v4303
      %4305 = vmatprep.mubr.bf16.mxu0 %v3611
      %4306 = vmatmul.mubr.bf16.gmra.mxu0 %v3610
      %v4307 = vpop.f32.mrf.mxu0
      %v4308 = vadd.f32 %v4195, %v4307
      %v4309 = vpop.f32.mrf.mxu0
      %v4310 = vadd.f32 %v4197, %v4309
      %v4311 = vpop.f32.mrf.mxu0
      %v4312 = vadd.f32 %v4199, %v4311
      %v4313 = vpop.f32.mrf.mxu0
      %v4314 = vadd.f32 %v4201, %v4313
      %4315 = vmatprep.mubr.bf16.mxu0 %v3615
      %4316 = vmatmul.mubr.bf16.gmra.mxu0 %v3614
      %v4317 = vpop.f32.mrf.mxu0
      %v4318 = vadd.f32 %v4205, %v4317
      %v4319 = vpop.f32.mrf.mxu0
      %v4320 = vadd.f32 %v4207, %v4319
      %v4321 = vpop.f32.mrf.mxu0
      %v4322 = vadd.f32 %v4209, %v4321
      %v4323 = vpop.f32.mrf.mxu0
      %v4324 = vadd.f32 %v4211, %v4323
      %4325 = vdwg.mxu0
      %v4326 = vmul.f32 %v3796, 0.02
      %v4327 = vmul.f32 %v3798, 0.02
      %v4328 = vmul.f32 %v4022, 0.02
      %v4329 = vmul.f32 %v4024, 0.02
      %v4330 = vmul.f32 %v4248, 0.02
      %v4331 = vmul.f32 %v4250, 0.02
      %v4332 = vmul.f32 %v3800, 0.02
      %v4333 = vmul.f32 %v3802, 0.02
      %v4334 = vmul.f32 %v4026, 0.02
      %v4335 = vmul.f32 %v4028, 0.02
      %v4336 = vmul.f32 %v4252, 0.02
      %v4337 = vmul.f32 %v4254, 0.02
      %v4338 = vmul.f32 %v3806, 0.02
      %v4339 = vmul.f32 %v3808, 0.02
      %v4340 = vmul.f32 %v4032, 0.02
      %v4341 = vmul.f32 %v4034, 0.02
      %v4342 = vmul.f32 %v4258, 0.02
      %v4343 = vmul.f32 %v4260, 0.02
      %v4344 = vmul.f32 %v3810, 0.02
      %v4345 = vmul.f32 %v3812, 0.02
      %v4346 = vmul.f32 %v4036, 0.02
      %v4347 = vmul.f32 %v4038, 0.02
      %v4348 = vmul.f32 %v4262, 0.02
      %v4349 = vmul.f32 %v4264, 0.02
      %v4350 = vmul.f32 %v3816, 0.02
      %v4351 = vmul.f32 %v3818, 0.02
      %v4352 = vmul.f32 %v4042, 0.02
      %v4353 = vmul.f32 %v4044, 0.02
      %v4354 = vmul.f32 %v4268, 0.02
      %v4355 = vmul.f32 %v4270, 0.02
      %v4356 = vmul.f32 %v3820, 0.02
      %v4357 = vmul.f32 %v3822, 0.02
      %v4358 = vmul.f32 %v4046, 0.02
      %v4359 = vmul.f32 %v4048, 0.02
      %v4360 = vmul.f32 %v4272, 0.02
      %v4361 = vmul.f32 %v4274, 0.02
      %v4362 = vmul.f32 %v3826, 0.02
      %v4363 = vmul.f32 %v3828, 0.02
      %v4364 = vmul.f32 %v4052, 0.02
      %v4365 = vmul.f32 %v4054, 0.02
      %v4366 = vmul.f32 %v4278, 0.02
      %v4367 = vmul.f32 %v4280, 0.02
      %v4368 = vmul.f32 %v3830, 0.02
      %v4369 = vmul.f32 %v3832, 0.02
      %v4370 = vmul.f32 %v4056, 0.02
      %v4371 = vmul.f32 %v4058, 0.02
      %v4372 = vmul.f32 %v4282, 0.02
      %v4373 = vmul.f32 %v4284, 0.02
      %v4374 = vmul.f32 %v3836, 0.02
      %v4375 = vmul.f32 %v3838, 0.02
      %v4376 = vmul.f32 %v4062, 0.02
      %v4377 = vmul.f32 %v4064, 0.02
      %v4378 = vmul.f32 %v4288, 0.02
      %v4379 = vmul.f32 %v4290, 0.02
      %v4380 = vmul.f32 %v3840, 0.02
      %v4381 = vmul.f32 %v3842, 0.02
      %v4382 = vmul.f32 %v4066, 0.02
      %v4383 = vmul.f32 %v4068, 0.02
      %v4384 = vmul.f32 %v4292, 0.02
      %v4385 = vmul.f32 %v4294, 0.02
      %v4386 = vmul.f32 %v3846, 0.02
      %v4387 = vmul.f32 %v3848, 0.02
      %v4388 = vmul.f32 %v4072, 0.02
      %v4389 = vmul.f32 %v4074, 0.02
      %v4390 = vmul.f32 %v4298, 0.02
      %v4391 = vmul.f32 %v4300, 0.02
      %v4392 = vmul.f32 %v3850, 0.02
      %v4393 = vmul.f32 %v3852, 0.02
      %v4394 = vmul.f32 %v4076, 0.02
      %v4395 = vmul.f32 %v4078, 0.02
      %v4396 = vmul.f32 %v4302, 0.02
      %v4397 = vmul.f32 %v4304, 0.02
      %v4398 = vmul.f32 %v3856, 0.02
      %v4399 = vmul.f32 %v3858, 0.02
      %v4400 = vmul.f32 %v4082, 0.02
      %v4401 = vmul.f32 %v4084, 0.02
      %v4402 = vmul.f32 %v4308, 0.02
      %v4403 = vmul.f32 %v4310, 0.02
      %v4404 = vmul.f32 %v3860, 0.02
      %v4405 = vmul.f32 %v3862, 0.02
      %v4406 = vmul.f32 %v4086, 0.02
      %v4407 = vmul.f32 %v4088, 0.02
      %v4408 = vmul.f32 %v4312, 0.02
      %v4409 = vmul.f32 %v4314, 0.02
      %v4410 = vmul.f32 %v3866, 0.02
      %v4411 = vmul.f32 %v3868, 0.02
      %v4412 = vmul.f32 %v4092, 0.02
      %v4413 = vmul.f32 %v4094, 0.02
      %v4414 = vmul.f32 %v4318, 0.02
      %v4415 = vmul.f32 %v4320, 0.02
      %v4416 = vmul.f32 %v3870, 0.02
      %v4417 = vmul.f32 %v3872, 0.02
      %v4418 = vmul.f32 %v4096, 0.02
      %v4419 = vmul.f32 %v4098, 0.02
      %v4420 = vmul.f32 %v4322, 0.02
      %v4421 = vmul.f32 %v4324, 0.02
      %v4422 = vmax.f32 %v3796, %v4326
      %v4423 = vmax.f32 %v3798, %v4327
      %v4424 = vmax.f32 %v4022, %v4328
      %v4425 = vmax.f32 %v4024, %v4329
      %v4426 = vmax.f32 %v4248, %v4330
      %v4427 = vmax.f32 %v4250, %v4331
      %v4428 = vmax.f32 %v3800, %v4332
      %v4429 = vmax.f32 %v3802, %v4333
      %v4430 = vmax.f32 %v4026, %v4334
      %v4431 = vmax.f32 %v4028, %v4335
      %v4432 = vmax.f32 %v4252, %v4336
      %v4433 = vmax.f32 %v4254, %v4337
      %v4434 = vmax.f32 %v3806, %v4338
      %v4435 = vmax.f32 %v3808, %v4339
      %v4436 = vmax.f32 %v4032, %v4340
      %v4437 = vmax.f32 %v4034, %v4341
      %v4438 = vmax.f32 %v4258, %v4342
      %v4439 = vmax.f32 %v4260, %v4343
      %v4440 = vmax.f32 %v3810, %v4344
      %v4441 = vmax.f32 %v3812, %v4345
      %v4442 = vmax.f32 %v4036, %v4346
      %v4443 = vmax.f32 %v4038, %v4347
      %v4444 = vmax.f32 %v4262, %v4348
      %v4445 = vmax.f32 %v4264, %v4349
      %v4446 = vmax.f32 %v3816, %v4350
      %v4447 = vmax.f32 %v3818, %v4351
      %v4448 = vmax.f32 %v4042, %v4352
      %v4449 = vmax.f32 %v4044, %v4353
      %v4450 = vmax.f32 %v4268, %v4354
      %v4451 = vmax.f32 %v4270, %v4355
      %v4452 = vmax.f32 %v3820, %v4356
      %v4453 = vmax.f32 %v3822, %v4357
      %v4454 = vmax.f32 %v4046, %v4358
      %v4455 = vmax.f32 %v4048, %v4359
      %v4456 = vmax.f32 %v4272, %v4360
      %v4457 = vmax.f32 %v4274, %v4361
      %v4458 = vmax.f32 %v3826, %v4362
      %v4459 = vmax.f32 %v3828, %v4363
      %v4460 = vmax.f32 %v4052, %v4364
      %v4461 = vmax.f32 %v4054, %v4365
      %v4462 = vmax.f32 %v4278, %v4366
      %v4463 = vmax.f32 %v4280, %v4367
      %v4464 = vmax.f32 %v3830, %v4368
      %v4465 = vmax.f32 %v3832, %v4369
      %v4466 = vmax.f32 %v4056, %v4370
      %v4467 = vmax.f32 %v4058, %v4371
      %v4468 = vmax.f32 %v4282, %v4372
      %v4469 = vmax.f32 %v4284, %v4373
      %v4470 = vmax.f32 %v3836, %v4374
      %v4471 = vmax.f32 %v3838, %v4375
      %v4472 = vmax.f32 %v4062, %v4376
      %v4473 = vmax.f32 %v4064, %v4377
      %v4474 = vmax.f32 %v4288, %v4378
      %v4475 = vmax.f32 %v4290, %v4379
      %v4476 = vmax.f32 %v3840, %v4380
      %v4477 = vmax.f32 %v3842, %v4381
      %v4478 = vmax.f32 %v4066, %v4382
      %v4479 = vmax.f32 %v4068, %v4383
      %v4480 = vmax.f32 %v4292, %v4384
      %v4481 = vmax.f32 %v4294, %v4385
      %v4482 = vmax.f32 %v3846, %v4386
      %v4483 = vmax.f32 %v3848, %v4387
      %v4484 = vmax.f32 %v4072, %v4388
      %v4485 = vmax.f32 %v4074, %v4389
      %v4486 = vmax.f32 %v4298, %v4390
      %v4487 = vmax.f32 %v4300, %v4391
      %v4488 = vmax.f32 %v3850, %v4392
      %v4489 = vmax.f32 %v3852, %v4393
      %v4490 = vmax.f32 %v4076, %v4394
      %v4491 = vmax.f32 %v4078, %v4395
      %v4492 = vmax.f32 %v4302, %v4396
      %v4493 = vmax.f32 %v4304, %v4397
      %v4494 = vmax.f32 %v3856, %v4398
      %v4495 = vmax.f32 %v3858, %v4399
      %v4496 = vmax.f32 %v4082, %v4400
      %v4497 = vmax.f32 %v4084, %v4401
      %v4498 = vmax.f32 %v4308, %v4402
      %v4499 = vmax.f32 %v4310, %v4403
      %v4500 = vmax.f32 %v3860, %v4404
      %v4501 = vmax.f32 %v3862, %v4405
      %v4502 = vmax.f32 %v4086, %v4406
      %v4503 = vmax.f32 %v4088, %v4407
      %v4504 = vmax.f32 %v4312, %v4408
      %v4505 = vmax.f32 %v4314, %v4409
      %v4506 = vmax.f32 %v3866, %v4410
      %v4507 = vmax.f32 %v3868, %v4411
      %v4508 = vmax.f32 %v4092, %v4412
      %v4509 = vmax.f32 %v4094, %v4413
      %v4510 = vmax.f32 %v4318, %v4414
      %v4511 = vmax.f32 %v4320, %v4415
      %v4512 = vmax.f32 %v3870, %v4416
      %v4513 = vmax.f32 %v3872, %v4417
      %v4514 = vmax.f32 %v4096, %v4418
      %v4515 = vmax.f32 %v4098, %v4419
      %v4516 = vmax.f32 %v4322, %v4420
      %v4517 = vmax.f32 %v4324, %v4421
      %v4518 = vpack.c.bf16 %v4428, %v4422
      %v4519 = vpack.c.bf16 %v4429, %v4423
      %v4520 = vpack.c.bf16 %v4430, %v4424
      %v4521 = vpack.c.bf16 %v4431, %v4425
      %v4522 = vpack.c.bf16 %v4432, %v4426
      %v4523 = vpack.c.bf16 %v4433, %v4427
      %v4524 = vpack.c.bf16 %v4440, %v4434
      %v4525 = vpack.c.bf16 %v4441, %v4435
      %v4526 = vpack.c.bf16 %v4442, %v4436
      %v4527 = vpack.c.bf16 %v4443, %v4437
      %v4528 = vpack.c.bf16 %v4444, %v4438
      %v4529 = vpack.c.bf16 %v4445, %v4439
      %v4530 = vpack.c.bf16 %v4452, %v4446
      %v4531 = vpack.c.bf16 %v4453, %v4447
      %v4532 = vpack.c.bf16 %v4454, %v4448
      %v4533 = vpack.c.bf16 %v4455, %v4449
      %v4534 = vpack.c.bf16 %v4456, %v4450
      %v4535 = vpack.c.bf16 %v4457, %v4451
      %v4536 = vpack.c.bf16 %v4464, %v4458
      %v4537 = vpack.c.bf16 %v4465, %v4459
      %v4538 = vpack.c.bf16 %v4466, %v4460
      %v4539 = vpack.c.bf16 %v4467, %v4461
      %v4540 = vpack.c.bf16 %v4468, %v4462
      %v4541 = vpack.c.bf16 %v4469, %v4463
      %v4542 = vpack.c.bf16 %v4476, %v4470
      %v4543 = vpack.c.bf16 %v4477, %v4471
      %v4544 = vpack.c.bf16 %v4478, %v4472
      %v4545 = vpack.c.bf16 %v4479, %v4473
      %v4546 = vpack.c.bf16 %v4480, %v4474
      %v4547 = vpack.c.bf16 %v4481, %v4475
      %v4548 = vpack.c.bf16 %v4488, %v4482
      %v4549 = vpack.c.bf16 %v4489, %v4483
      %v4550 = vpack.c.bf16 %v4490, %v4484
      %v4551 = vpack.c.bf16 %v4491, %v4485
      %v4552 = vpack.c.bf16 %v4492, %v4486
      %v4553 = vpack.c.bf16 %v4493, %v4487
      %v4554 = vpack.c.bf16 %v4500, %v4494
      %v4555 = vpack.c.bf16 %v4501, %v4495
      %v4556 = vpack.c.bf16 %v4502, %v4496
      %v4557 = vpack.c.bf16 %v4503, %v4497
      %v4558 = vpack.c.bf16 %v4504, %v4498
      %v4559 = vpack.c.bf16 %v4505, %v4499
      %v4560 = vpack.c.bf16 %v4512, %v4506
      %v4561 = vpack.c.bf16 %v4513, %v4507
      %v4562 = vpack.c.bf16 %v4514, %v4508
      %v4563 = vpack.c.bf16 %v4515, %v4509
      %v4564 = vpack.c.bf16 %v4516, %v4510
      %v4565 = vpack.c.bf16 %v4517, %v4511
      %v4566 = vld [vmem:[%s3] sm:$0xf]
      %v4567 = vld [vmem:[%s3 + $0x4] sm:$0xf]
      %v4568 = vld [vmem:[%s3 + $0x8] sm:$0xf]
      %v4569 = vld [vmem:[%s3 + $0xc] sm:$0xf]
      %v4570 = vld [vmem:[%s3 + $0x10] sm:$0xf]
      %v4571 = vld [vmem:[%s3 + $0x14] sm:$0xf]
      %v4572 = vld [vmem:[%s3 + $0x18] sm:$0xf]
      %v4573 = vld [vmem:[%s3 + $0x1c] sm:$0xf]
      %v4574 = vld [vmem:[%s328 + $0x280] sm:$0xff]
      %v4575 = vld [vmem:[%s328 + $0x288] sm:$0xff]
      %v4576 = vld [vmem:[%s328 + $0x290] sm:$0xff]
      %v4577 = vld [vmem:[%s328 + $0x298] sm:$0xff]
      %v4578 = vld [vmem:[%s328 + $0x2a0] sm:$0xff]
      %v4579 = vld [vmem:[%s328 + $0x2a8] sm:$0xff]
      %v4580 = vld [vmem:[%s328 + $0x2b0] sm:$0xff]
      %v4581 = vld [vmem:[%s328 + $0x2b8] sm:$0xff]
      %v4583 = vsel %vm409, %v4574, 0
      %v4586 = vsel %vm409, %v4575, 0
      %v4589 = vsel %vm409, %v4576, 0
      %v4592 = vsel %vm409, %v4577, 0
      %v4595 = vsel %vm409, %v4578, 0
      %v4598 = vsel %vm409, %v4579, 0
      %v4601 = vsel %vm409, %v4580, 0
      %v4604 = vsel %vm409, %v4581, 0
      %4606 = vmatprep.subr.mxu0 0.0
      %4607 = vmatpush1.msra.mxu0 0.0
      %4608 = vmatprep.subr.mxu0 0.0
      %4609 = vmatpush1.msra.mxu0 0.0
      %4610 = vmatprep.subr.mxu0 0.0
      %4611 = vmatpush1.msra.mxu0 0.0
      %4612 = vmatprep.subr.mxu0 0.0
      %4613 = vmatpush1.msra.mxu0 0.0
      %4614 = vmatprep.subr.mxu0 0.0
      %4615 = vmatpush1.msra.mxu0 0.0
      %4616 = vmatprep.subr.mxu0 0.0
      %4617 = vmatpush1.msra.mxu0 0.0
      %4618 = vmatprep.subr.mxu0 0.0
      %4619 = vmatpush1.msra.mxu0 0.0
      %4620 = vmatprep.subr.mxu0 0.0
      %4621 = vmatpush1.msra.mxu0 0.0
      %4622 = vmatprep.subr.mxu0 0.0
      %4623 = vmatpush1.msra.mxu0 0.0
      %4624 = vmatprep.subr.mxu0 0.0
      %4625 = vmatpush1.msra.mxu0 0.0
      %4626 = vmatprep.subr.mxu0 0.0
      %4627 = vmatpush1.msra.mxu0 0.0
      %4628 = vmatprep.subr.mxu0 0.0
      %4629 = vmatpush1.msra.mxu0 0.0
      %4630 = vmatprep.subr.mxu0 0.0
      %4631 = vmatpush1.msra.mxu0 0.0
      %4632 = vmatprep.subr.mxu0 0.0
      %4633 = vmatpush1.msra.mxu0 0.0
      %4634 = vmatprep.subr.mxu0 0.0
      %4635 = vmatpush1.msra.mxu0 0.0
      %4636 = vmatprep.subr.mxu0 %v340
      %4637 = vmatpush1.msra.mxu0 %v339
      %4638 = vmatprep.subr.mxu0 0.0
      %4639 = vmatpush2.msra.mxu0 0.0
      %4640 = vmatprep.subr.mxu0 0.0
      %4641 = vmatpush2.msra.mxu0 0.0
      %4642 = vmatprep.subr.mxu0 0.0
      %4643 = vmatpush2.msra.mxu0 0.0
      %4644 = vmatprep.subr.mxu0 0.0
      %4645 = vmatpush2.msra.mxu0 0.0
      %4646 = vmatprep.subr.mxu0 0.0
      %4647 = vmatpush2.msra.mxu0 0.0
      %4648 = vmatprep.subr.mxu0 0.0
      %4649 = vmatpush2.msra.mxu0 0.0
      %4650 = vmatprep.subr.mxu0 0.0
      %4651 = vmatpush2.msra.mxu0 0.0
      %4652 = vmatprep.subr.mxu0 0.0
      %4653 = vmatpush2.msra.mxu0 0.0
      %4654 = vmatprep.subr.mxu0 0.0
      %4655 = vmatpush2.msra.mxu0 0.0
      %4656 = vmatprep.subr.mxu0 0.0
      %4657 = vmatpush2.msra.mxu0 0.0
      %4658 = vmatprep.subr.mxu0 0.0
      %4659 = vmatpush2.msra.mxu0 0.0
      %4660 = vmatprep.subr.mxu0 0.0
      %4661 = vmatpush2.msra.mxu0 0.0
      %4662 = vmatprep.subr.mxu0 0.0
      %4663 = vmatpush2.msra.mxu0 0.0
      %4664 = vmatprep.subr.mxu0 0.0
      %4665 = vmatpush2.msra.mxu0 0.0
      %4666 = vmatprep.subr.mxu0 0.0
      %4667 = vmatpush2.msra.mxu0 0.0
      %4668 = vmatprep.subr.mxu0 0.0
      %4669 = vmatpush2.msra.mxu0 0.0
      %4670 = vmatprep.mubr.f32.mxu0 0.0
      %4671 = vmatmul.mubr.f32.gmra.mxu0 %v4583
      %v4672 = vpop.f32.mrf.mxu0
      %v4673 = vadd.f32 0.0, %v4672
      %v4674 = vpop.f32.mrf.mxu0
      %v4675 = vadd.f32 0.0, %v4674
      %4676 = vmatprep.mubr.f32.mxu0 0.0
      %4677 = vmatmul.mubr.f32.gmra.mxu0 %v4586
      %v4678 = vpop.f32.mrf.mxu0
      %v4679 = vadd.f32 0.0, %v4678
      %v4680 = vpop.f32.mrf.mxu0
      %v4681 = vadd.f32 0.0, %v4680
      %4682 = vmatprep.mubr.f32.mxu0 0.0
      %4683 = vmatmul.mubr.f32.gmra.mxu0 %v4589
      %v4684 = vpop.f32.mrf.mxu0
      %v4685 = vadd.f32 0.0, %v4684
      %v4686 = vpop.f32.mrf.mxu0
      %v4687 = vadd.f32 0.0, %v4686
      %4688 = vmatprep.mubr.f32.mxu0 0.0
      %4689 = vmatmul.mubr.f32.gmra.mxu0 %v4592
      %v4690 = vpop.f32.mrf.mxu0
      %v4691 = vadd.f32 0.0, %v4690
      %v4692 = vpop.f32.mrf.mxu0
      %v4693 = vadd.f32 0.0, %v4692
      %4694 = vmatprep.mubr.f32.mxu0 0.0
      %4695 = vmatmul.mubr.f32.gmra.mxu0 %v4595
      %v4696 = vpop.f32.mrf.mxu0
      %v4697 = vadd.f32 0.0, %v4696
      %v4698 = vpop.f32.mrf.mxu0
      %v4699 = vadd.f32 0.0, %v4698
      %4700 = vmatprep.mubr.f32.mxu0 0.0
      %4701 = vmatmul.mubr.f32.gmra.mxu0 %v4598
      %v4702 = vpop.f32.mrf.mxu0
      %v4703 = vadd.f32 0.0, %v4702
      %v4704 = vpop.f32.mrf.mxu0
      %v4705 = vadd.f32 0.0, %v4704
      %4706 = vmatprep.mubr.f32.mxu0 0.0
      %4707 = vmatmul.mubr.f32.gmra.mxu0 %v4601
      %v4708 = vpop.f32.mrf.mxu0
      %v4709 = vadd.f32 0.0, %v4708
      %v4710 = vpop.f32.mrf.mxu0
      %v4711 = vadd.f32 0.0, %v4710
      %4712 = vmatprep.mubr.f32.mxu0 0.0
      %4713 = vmatmul.mubr.f32.gmra.mxu0 %v4604
      %v4714 = vpop.f32.mrf.mxu0
      %v4715 = vadd.f32 0.0, %v4714
      %v4716 = vpop.f32.mrf.mxu0
      %v4717 = vadd.f32 0.0, %v4716
      %4718 = vdwg.mxu0
      %4719 = vmatprep.subr.mxu0 0.0
      %4720 = vmatpush1.msra.mxu0 0.0
      %4721 = vmatprep.subr.mxu0 0.0
      %4722 = vmatpush1.msra.mxu0 0.0
      %4723 = vmatprep.subr.mxu0 0.0
      %4724 = vmatpush1.msra.mxu0 0.0
      %4725 = vmatprep.subr.mxu0 0.0
      %4726 = vmatpush1.msra.mxu0 0.0
      %4727 = vmatprep.subr.mxu0 0.0
      %4728 = vmatpush1.msra.mxu0 0.0
      %4729 = vmatprep.subr.mxu0 0.0
      %4730 = vmatpush1.msra.mxu0 0.0
      %4731 = vmatprep.subr.mxu0 0.0
      %4732 = vmatpush1.msra.mxu0 0.0
      %4733 = vmatprep.subr.mxu0 0.0
      %4734 = vmatpush1.msra.mxu0 0.0
      %4735 = vmatprep.subr.mxu0 0.0
      %4736 = vmatpush1.msra.mxu0 0.0
      %4737 = vmatprep.subr.mxu0 0.0
      %4738 = vmatpush1.msra.mxu0 0.0
      %4739 = vmatprep.subr.mxu0 0.0
      %4740 = vmatpush1.msra.mxu0 0.0
      %4741 = vmatprep.subr.mxu0 0.0
      %4742 = vmatpush1.msra.mxu0 0.0
      %4743 = vmatprep.subr.mxu0 0.0
      %4744 = vmatpush1.msra.mxu0 0.0
      %4745 = vmatprep.subr.mxu0 0.0
      %4746 = vmatpush1.msra.mxu0 0.0
      %4747 = vmatprep.subr.mxu0 0.0
      %4748 = vmatpush1.msra.mxu0 0.0
      %4749 = vmatprep.subr.mxu0 %v342
      %4750 = vmatpush1.msra.mxu0 %v341
      %4751 = vmatprep.subr.mxu0 0.0
      %4752 = vmatpush2.msra.mxu0 0.0
      %4753 = vmatprep.subr.mxu0 0.0
      %4754 = vmatpush2.msra.mxu0 0.0
      %4755 = vmatprep.subr.mxu0 0.0
      %4756 = vmatpush2.msra.mxu0 0.0
      %4757 = vmatprep.subr.mxu0 0.0
      %4758 = vmatpush2.msra.mxu0 0.0
      %4759 = vmatprep.subr.mxu0 0.0
      %4760 = vmatpush2.msra.mxu0 0.0
      %4761 = vmatprep.subr.mxu0 0.0
      %4762 = vmatpush2.msra.mxu0 0.0
      %4763 = vmatprep.subr.mxu0 0.0
      %4764 = vmatpush2.msra.mxu0 0.0
      %4765 = vmatprep.subr.mxu0 0.0
      %4766 = vmatpush2.msra.mxu0 0.0
      %4767 = vmatprep.subr.mxu0 0.0
      %4768 = vmatpush2.msra.mxu0 0.0
      %4769 = vmatprep.subr.mxu0 0.0
      %4770 = vmatpush2.msra.mxu0 0.0
      %4771 = vmatprep.subr.mxu0 0.0
      %4772 = vmatpush2.msra.mxu0 0.0
      %4773 = vmatprep.subr.mxu0 0.0
      %4774 = vmatpush2.msra.mxu0 0.0
      %4775 = vmatprep.subr.mxu0 0.0
      %4776 = vmatpush2.msra.mxu0 0.0
      %4777 = vmatprep.subr.mxu0 0.0
      %4778 = vmatpush2.msra.mxu0 0.0
      %4779 = vmatprep.subr.mxu0 0.0
      %4780 = vmatpush2.msra.mxu0 0.0
      %4781 = vmatprep.subr.mxu0 0.0
      %4782 = vmatpush2.msra.mxu0 0.0
      %4783 = vmatprep.mubr.f32.mxu0 0.0
      %4784 = vmatmul.mubr.f32.gmra.mxu0 %v4583
      %v4785 = vpop.f32.mrf.mxu0
      %v4786 = vadd.f32 0.0, %v4785
      %v4787 = vpop.f32.mrf.mxu0
      %v4788 = vadd.f32 0.0, %v4787
      %4789 = vmatprep.mubr.f32.mxu0 0.0
      %4790 = vmatmul.mubr.f32.gmra.mxu0 %v4586
      %v4791 = vpop.f32.mrf.mxu0
      %v4792 = vadd.f32 0.0, %v4791
      %v4793 = vpop.f32.mrf.mxu0
      %v4794 = vadd.f32 0.0, %v4793
      %4795 = vmatprep.mubr.f32.mxu0 0.0
      %4796 = vmatmul.mubr.f32.gmra.mxu0 %v4589
      %v4797 = vpop.f32.mrf.mxu0
      %v4798 = vadd.f32 0.0, %v4797
      %v4799 = vpop.f32.mrf.mxu0
      %v4800 = vadd.f32 0.0, %v4799
      %4801 = vmatprep.mubr.f32.mxu0 0.0
      %4802 = vmatmul.mubr.f32.gmra.mxu0 %v4592
      %v4803 = vpop.f32.mrf.mxu0
      %v4804 = vadd.f32 0.0, %v4803
      %v4805 = vpop.f32.mrf.mxu0
      %v4806 = vadd.f32 0.0, %v4805
      %4807 = vmatprep.mubr.f32.mxu0 0.0
      %4808 = vmatmul.mubr.f32.gmra.mxu0 %v4595
      %v4809 = vpop.f32.mrf.mxu0
      %v4810 = vadd.f32 0.0, %v4809
      %v4811 = vpop.f32.mrf.mxu0
      %v4812 = vadd.f32 0.0, %v4811
      %4813 = vmatprep.mubr.f32.mxu0 0.0
      %4814 = vmatmul.mubr.f32.gmra.mxu0 %v4598
      %v4815 = vpop.f32.mrf.mxu0
      %v4816 = vadd.f32 0.0, %v4815
      %v4817 = vpop.f32.mrf.mxu0
      %v4818 = vadd.f32 0.0, %v4817
      %4819 = vmatprep.mubr.f32.mxu0 0.0
      %4820 = vmatmul.mubr.f32.gmra.mxu0 %v4601
      %v4821 = vpop.f32.mrf.mxu0
      %v4822 = vadd.f32 0.0, %v4821
      %v4823 = vpop.f32.mrf.mxu0
      %v4824 = vadd.f32 0.0, %v4823
      %4825 = vmatprep.mubr.f32.mxu0 0.0
      %4826 = vmatmul.mubr.f32.gmra.mxu0 %v4604
      %v4827 = vpop.f32.mrf.mxu0
      %v4828 = vadd.f32 0.0, %v4827
      %v4829 = vpop.f32.mrf.mxu0
      %v4830 = vadd.f32 0.0, %v4829
      %4831 = vdwg.mxu0
      %4832 = vmatprep.subr.mxu0 0.0
      %4833 = vmatpush1.msra.mxu0 0.0
      %4834 = vmatprep.subr.mxu0 0.0
      %4835 = vmatpush1.msra.mxu0 0.0
      %4836 = vmatprep.subr.mxu0 0.0
      %4837 = vmatpush1.msra.mxu0 0.0
      %4838 = vmatprep.subr.mxu0 0.0
      %4839 = vmatpush1.msra.mxu0 0.0
      %4840 = vmatprep.subr.mxu0 0.0
      %4841 = vmatpush1.msra.mxu0 0.0
      %4842 = vmatprep.subr.mxu0 0.0
      %4843 = vmatpush1.msra.mxu0 0.0
      %4844 = vmatprep.subr.mxu0 0.0
      %4845 = vmatpush1.msra.mxu0 0.0
      %4846 = vmatprep.subr.mxu0 0.0
      %4847 = vmatpush1.msra.mxu0 0.0
      %4848 = vmatprep.subr.mxu0 0.0
      %4849 = vmatpush1.msra.mxu0 0.0
      %4850 = vmatprep.subr.mxu0 0.0
      %4851 = vmatpush1.msra.mxu0 0.0
      %4852 = vmatprep.subr.mxu0 0.0
      %4853 = vmatpush1.msra.mxu0 0.0
      %4854 = vmatprep.subr.mxu0 0.0
      %4855 = vmatpush1.msra.mxu0 0.0
      %4856 = vmatprep.subr.mxu0 0.0
      %4857 = vmatpush1.msra.mxu0 0.0
      %4858 = vmatprep.subr.mxu0 0.0
      %4859 = vmatpush1.msra.mxu0 0.0
      %4860 = vmatprep.subr.mxu0 0.0
      %4861 = vmatpush1.msra.mxu0 0.0
      %4862 = vmatprep.subr.mxu0 %v344
      %4863 = vmatpush1.msra.mxu0 %v343
      %4864 = vmatprep.subr.mxu0 0.0
      %4865 = vmatpush2.msra.mxu0 0.0
      %4866 = vmatprep.subr.mxu0 0.0
      %4867 = vmatpush2.msra.mxu0 0.0
      %4868 = vmatprep.subr.mxu0 0.0
      %4869 = vmatpush2.msra.mxu0 0.0
      %4870 = vmatprep.subr.mxu0 0.0
      %4871 = vmatpush2.msra.mxu0 0.0
      %4872 = vmatprep.subr.mxu0 0.0
      %4873 = vmatpush2.msra.mxu0 0.0
      %4874 = vmatprep.subr.mxu0 0.0
      %4875 = vmatpush2.msra.mxu0 0.0
      %4876 = vmatprep.subr.mxu0 0.0
      %4877 = vmatpush2.msra.mxu0 0.0
      %4878 = vmatprep.subr.mxu0 0.0
      %4879 = vmatpush2.msra.mxu0 0.0
      %4880 = vmatprep.subr.mxu0 0.0
      %4881 = vmatpush2.msra.mxu0 0.0
      %4882 = vmatprep.subr.mxu0 0.0
      %4883 = vmatpush2.msra.mxu0 0.0
      %4884 = vmatprep.subr.mxu0 0.0
      %4885 = vmatpush2.msra.mxu0 0.0
      %4886 = vmatprep.subr.mxu0 0.0
      %4887 = vmatpush2.msra.mxu0 0.0
      %4888 = vmatprep.subr.mxu0 0.0
      %4889 = vmatpush2.msra.mxu0 0.0
      %4890 = vmatprep.subr.mxu0 0.0
      %4891 = vmatpush2.msra.mxu0 0.0
      %4892 = vmatprep.subr.mxu0 0.0
      %4893 = vmatpush2.msra.mxu0 0.0
      %4894 = vmatprep.subr.mxu0 0.0
      %4895 = vmatpush2.msra.mxu0 0.0
      %4896 = vmatprep.mubr.f32.mxu0 0.0
      %4897 = vmatmul.mubr.f32.gmra.mxu0 %v4583
      %v4898 = vpop.f32.mrf.mxu0
      %v4899 = vadd.f32 0.0, %v4898
      %v4900 = vpop.f32.mrf.mxu0
      %v4901 = vadd.f32 0.0, %v4900
      %4902 = vmatprep.mubr.f32.mxu0 0.0
      %4903 = vmatmul.mubr.f32.gmra.mxu0 %v4586
      %v4904 = vpop.f32.mrf.mxu0
      %v4905 = vadd.f32 0.0, %v4904
      %v4906 = vpop.f32.mrf.mxu0
      %v4907 = vadd.f32 0.0, %v4906
      %4908 = vmatprep.mubr.f32.mxu0 0.0
      %4909 = vmatmul.mubr.f32.gmra.mxu0 %v4589
      %v4910 = vpop.f32.mrf.mxu0
      %v4911 = vadd.f32 0.0, %v4910
      %v4912 = vpop.f32.mrf.mxu0
      %v4913 = vadd.f32 0.0, %v4912
      %4914 = vmatprep.mubr.f32.mxu0 0.0
      %4915 = vmatmul.mubr.f32.gmra.mxu0 %v4592
      %v4916 = vpop.f32.mrf.mxu0
      %v4917 = vadd.f32 0.0, %v4916
      %v4918 = vpop.f32.mrf.mxu0
      %v4919 = vadd.f32 0.0, %v4918
      %4920 = vmatprep.mubr.f32.mxu0 0.0
      %4921 = vmatmul.mubr.f32.gmra.mxu0 %v4595
      %v4922 = vpop.f32.mrf.mxu0
      %v4923 = vadd.f32 0.0, %v4922
      %v4924 = vpop.f32.mrf.mxu0
      %v4925 = vadd.f32 0.0, %v4924
      %4926 = vmatprep.mubr.f32.mxu0 0.0
      %4927 = vmatmul.mubr.f32.gmra.mxu0 %v4598
      %v4928 = vpop.f32.mrf.mxu0
      %v4929 = vadd.f32 0.0, %v4928
      %v4930 = vpop.f32.mrf.mxu0
      %v4931 = vadd.f32 0.0, %v4930
      %4932 = vmatprep.mubr.f32.mxu0 0.0
      %4933 = vmatmul.mubr.f32.gmra.mxu0 %v4601
      %v4934 = vpop.f32.mrf.mxu0
      %v4935 = vadd.f32 0.0, %v4934
      %v4936 = vpop.f32.mrf.mxu0
      %v4937 = vadd.f32 0.0, %v4936
      %4938 = vmatprep.mubr.f32.mxu0 0.0
      %4939 = vmatmul.mubr.f32.gmra.mxu0 %v4604
      %v4940 = vpop.f32.mrf.mxu0
      %v4941 = vadd.f32 0.0, %v4940
      %v4942 = vpop.f32.mrf.mxu0
      %v4943 = vadd.f32 0.0, %v4942
      %4944 = vdwg.mxu0
      %v4953 = vunpack.c.l.b16 %v4566
      %v4954 = vunpack.c.l.b16 %v4567
      %v4955 = vunpack.c.l.b16 %v4568
      %v4956 = vunpack.c.l.b16 %v4569
      %v4957 = vunpack.c.l.b16 %v4570
      %v4958 = vunpack.c.l.b16 %v4571
      %v4959 = vunpack.c.l.b16 %v4572
      %v4960 = vunpack.c.l.b16 %v4573
      %v4961 = vpack.c.b16 %v4954, %v4953
      %v4962 = vpack.c.b16 %v4956, %v4955
      %v4963 = vpack.c.b16 %v4958, %v4957
      %v4964 = vpack.c.b16 %v4960, %v4959
      %4969 = vmatprep.subr.bf16.mxu0 %v4561
      %4970 = vmatpush1.bf16.msra.mxu0 %v4560
      %4971 = vmatprep.subr.bf16.mxu0 %v4555
      %4972 = vmatpush1.bf16.msra.mxu0 %v4554
      %4973 = vmatprep.subr.bf16.mxu0 %v4549
      %4974 = vmatpush1.bf16.msra.mxu0 %v4548
      %4975 = vmatprep.subr.bf16.mxu0 %v4543
      %4976 = vmatpush1.bf16.msra.mxu0 %v4542
      %4977 = vmatprep.subr.bf16.mxu0 %v4537
      %4978 = vmatpush1.bf16.msra.mxu0 %v4536
      %4979 = vmatprep.subr.bf16.mxu0 %v4531
      %4980 = vmatpush1.bf16.msra.mxu0 %v4530
      %4981 = vmatprep.subr.bf16.mxu0 %v4525
      %4982 = vmatpush1.bf16.msra.mxu0 %v4524
      %4983 = vmatprep.subr.bf16.mxu0 %v4519
      %4984 = vmatpush1.bf16.msra.mxu0 %v4518
      %4985 = vmatprep.subr.bf16.mxu0 0
      %4986 = vmatpush2.bf16.msra.mxu0 0
      %4987 = vmatprep.subr.bf16.mxu0 0
      %4988 = vmatpush2.bf16.msra.mxu0 0
      %4989 = vmatprep.subr.bf16.mxu0 0
      %4990 = vmatpush2.bf16.msra.mxu0 0
      %4991 = vmatprep.subr.bf16.mxu0 0
      %4992 = vmatpush2.bf16.msra.mxu0 0
      %4993 = vmatprep.subr.bf16.mxu0 0
      %4994 = vmatpush2.bf16.msra.mxu0 0
      %4995 = vmatprep.subr.bf16.mxu0 0
      %4996 = vmatpush2.bf16.msra.mxu0 0
      %4997 = vmatprep.subr.bf16.mxu0 0
      %4998 = vmatpush2.bf16.msra.mxu0 0
      %4999 = vmatprep.subr.bf16.mxu0 0
      %5000 = vmatpush2.bf16.msra.mxu0 0
      %5001 = vmatprep.mubr.bf16.mxu0 0
      %5002 = vmatmul.mubr.bf16.gmra.mxu0 %v4961
      %v5003 = vpop.f32.mrf.mxu0
      %v5004 = vadd.f32 %v4673, %v5003
      %v5005 = vpop.f32.mrf.mxu0
      %v5006 = vadd.f32 %v4675, %v5005
      %v5007 = vpop.f32.mrf.mxu0
      %v5008 = vadd.f32 %v4679, %v5007
      %v5009 = vpop.f32.mrf.mxu0
      %v5010 = vadd.f32 %v4681, %v5009
      %5011 = vmatprep.mubr.bf16.mxu0 0
      %5012 = vmatmul.mubr.bf16.gmra.mxu0 %v4962
      %v5013 = vpop.f32.mrf.mxu0
      %v5014 = vadd.f32 %v4685, %v5013
      %v5015 = vpop.f32.mrf.mxu0
      %v5016 = vadd.f32 %v4687, %v5015
      %v5017 = vpop.f32.mrf.mxu0
      %v5018 = vadd.f32 %v4691, %v5017
      %v5019 = vpop.f32.mrf.mxu0
      %v5020 = vadd.f32 %v4693, %v5019
      %5021 = vmatprep.mubr.bf16.mxu0 0
      %5022 = vmatmul.mubr.bf16.gmra.mxu0 %v4963
      %v5023 = vpop.f32.mrf.mxu0
      %v5024 = vadd.f32 %v4697, %v5023
      %v5025 = vpop.f32.mrf.mxu0
      %v5026 = vadd.f32 %v4699, %v5025
      %v5027 = vpop.f32.mrf.mxu0
      %v5028 = vadd.f32 %v4703, %v5027
      %v5029 = vpop.f32.mrf.mxu0
      %v5030 = vadd.f32 %v4705, %v5029
      %5031 = vmatprep.mubr.bf16.mxu0 0
      %5032 = vmatmul.mubr.bf16.gmra.mxu0 %v4964
      %v5033 = vpop.f32.mrf.mxu0
      %v5034 = vadd.f32 %v4709, %v5033
      %v5035 = vpop.f32.mrf.mxu0
      %v5036 = vadd.f32 %v4711, %v5035
      %v5037 = vpop.f32.mrf.mxu0
      %v5038 = vadd.f32 %v4715, %v5037
      %v5039 = vpop.f32.mrf.mxu0
      %v5040 = vadd.f32 %v4717, %v5039
      %5041 = vdwg.mxu0
      %5042 = vmatprep.subr.bf16.mxu0 %v4563
      %5043 = vmatpush1.bf16.msra.mxu0 %v4562
      %5044 = vmatprep.subr.bf16.mxu0 %v4557
      %5045 = vmatpush1.bf16.msra.mxu0 %v4556
      %5046 = vmatprep.subr.bf16.mxu0 %v4551
      %5047 = vmatpush1.bf16.msra.mxu0 %v4550
      %5048 = vmatprep.subr.bf16.mxu0 %v4545
      %5049 = vmatpush1.bf16.msra.mxu0 %v4544
      %5050 = vmatprep.subr.bf16.mxu0 %v4539
      %5051 = vmatpush1.bf16.msra.mxu0 %v4538
      %5052 = vmatprep.subr.bf16.mxu0 %v4533
      %5053 = vmatpush1.bf16.msra.mxu0 %v4532
      %5054 = vmatprep.subr.bf16.mxu0 %v4527
      %5055 = vmatpush1.bf16.msra.mxu0 %v4526
      %5056 = vmatprep.subr.bf16.mxu0 %v4521
      %5057 = vmatpush1.bf16.msra.mxu0 %v4520
      %5058 = vmatprep.subr.bf16.mxu0 0
      %5059 = vmatpush2.bf16.msra.mxu0 0
      %5060 = vmatprep.subr.bf16.mxu0 0
      %5061 = vmatpush2.bf16.msra.mxu0 0
      %5062 = vmatprep.subr.bf16.mxu0 0
      %5063 = vmatpush2.bf16.msra.mxu0 0
      %5064 = vmatprep.subr.bf16.mxu0 0
      %5065 = vmatpush2.bf16.msra.mxu0 0
      %5066 = vmatprep.subr.bf16.mxu0 0
      %5067 = vmatpush2.bf16.msra.mxu0 0
      %5068 = vmatprep.subr.bf16.mxu0 0
      %5069 = vmatpush2.bf16.msra.mxu0 0
      %5070 = vmatprep.subr.bf16.mxu0 0
      %5071 = vmatpush2.bf16.msra.mxu0 0
      %5072 = vmatprep.subr.bf16.mxu0 0
      %5073 = vmatpush2.bf16.msra.mxu0 0
      %5074 = vmatprep.mubr.bf16.mxu0 0
      %5075 = vmatmul.mubr.bf16.gmra.mxu0 %v4961
      %v5076 = vpop.f32.mrf.mxu0
      %v5077 = vadd.f32 %v4786, %v5076
      %v5078 = vpop.f32.mrf.mxu0
      %v5079 = vadd.f32 %v4788, %v5078
      %v5080 = vpop.f32.mrf.mxu0
      %v5081 = vadd.f32 %v4792, %v5080
      %v5082 = vpop.f32.mrf.mxu0
      %v5083 = vadd.f32 %v4794, %v5082
      %5084 = vmatprep.mubr.bf16.mxu0 0
      %5085 = vmatmul.mubr.bf16.gmra.mxu0 %v4962
      %v5086 = vpop.f32.mrf.mxu0
      %v5087 = vadd.f32 %v4798, %v5086
      %v5088 = vpop.f32.mrf.mxu0
      %v5089 = vadd.f32 %v4800, %v5088
      %v5090 = vpop.f32.mrf.mxu0
      %v5091 = vadd.f32 %v4804, %v5090
      %v5092 = vpop.f32.mrf.mxu0
      %v5093 = vadd.f32 %v4806, %v5092
      %5094 = vmatprep.mubr.bf16.mxu0 0
      %5095 = vmatmul.mubr.bf16.gmra.mxu0 %v4963
      %v5096 = vpop.f32.mrf.mxu0
      %v5097 = vadd.f32 %v4810, %v5096
      %v5098 = vpop.f32.mrf.mxu0
      %v5099 = vadd.f32 %v4812, %v5098
      %v5100 = vpop.f32.mrf.mxu0
      %v5101 = vadd.f32 %v4816, %v5100
      %v5102 = vpop.f32.mrf.mxu0
      %v5103 = vadd.f32 %v4818, %v5102
      %5104 = vmatprep.mubr.bf16.mxu0 0
      %5105 = vmatmul.mubr.bf16.gmra.mxu0 %v4964
      %v5106 = vpop.f32.mrf.mxu0
      %v5107 = vadd.f32 %v4822, %v5106
      %v5108 = vpop.f32.mrf.mxu0
      %v5109 = vadd.f32 %v4824, %v5108
      %v5110 = vpop.f32.mrf.mxu0
      %v5111 = vadd.f32 %v4828, %v5110
      %v5112 = vpop.f32.mrf.mxu0
      %v5113 = vadd.f32 %v4830, %v5112
      %5114 = vdwg.mxu0
      %5115 = vmatprep.subr.bf16.mxu0 %v4565
      %5116 = vmatpush1.bf16.msra.mxu0 %v4564
      %5117 = vmatprep.subr.bf16.mxu0 %v4559
      %5118 = vmatpush1.bf16.msra.mxu0 %v4558
      %5119 = vmatprep.subr.bf16.mxu0 %v4553
      %5120 = vmatpush1.bf16.msra.mxu0 %v4552
      %5121 = vmatprep.subr.bf16.mxu0 %v4547
      %5122 = vmatpush1.bf16.msra.mxu0 %v4546
      %5123 = vmatprep.subr.bf16.mxu0 %v4541
      %5124 = vmatpush1.bf16.msra.mxu0 %v4540
      %5125 = vmatprep.subr.bf16.mxu0 %v4535
      %5126 = vmatpush1.bf16.msra.mxu0 %v4534
      %5127 = vmatprep.subr.bf16.mxu0 %v4529
      %5128 = vmatpush1.bf16.msra.mxu0 %v4528
      %5129 = vmatprep.subr.bf16.mxu0 %v4523
      %5130 = vmatpush1.bf16.msra.mxu0 %v4522
      %5131 = vmatprep.subr.bf16.mxu0 0
      %5132 = vmatpush2.bf16.msra.mxu0 0
      %5133 = vmatprep.subr.bf16.mxu0 0
      %5134 = vmatpush2.bf16.msra.mxu0 0
      %5135 = vmatprep.subr.bf16.mxu0 0
      %5136 = vmatpush2.bf16.msra.mxu0 0
      %5137 = vmatprep.subr.bf16.mxu0 0
      %5138 = vmatpush2.bf16.msra.mxu0 0
      %5139 = vmatprep.subr.bf16.mxu0 0
      %5140 = vmatpush2.bf16.msra.mxu0 0
      %5141 = vmatprep.subr.bf16.mxu0 0
      %5142 = vmatpush2.bf16.msra.mxu0 0
      %5143 = vmatprep.subr.bf16.mxu0 0
      %5144 = vmatpush2.bf16.msra.mxu0 0
      %5145 = vmatprep.subr.bf16.mxu0 0
      %5146 = vmatpush2.bf16.msra.mxu0 0
      %5147 = vmatprep.mubr.bf16.mxu0 0
      %5148 = vmatmul.mubr.bf16.gmra.mxu0 %v4961
      %v5149 = vpop.f32.mrf.mxu0
      %v5150 = vadd.f32 %v4899, %v5149
      %v5151 = vpop.f32.mrf.mxu0
      %v5152 = vadd.f32 %v4901, %v5151
      %v5153 = vpop.f32.mrf.mxu0
      %v5154 = vadd.f32 %v4905, %v5153
      %v5155 = vpop.f32.mrf.mxu0
      %v5156 = vadd.f32 %v4907, %v5155
      %5157 = vmatprep.mubr.bf16.mxu0 0
      %5158 = vmatmul.mubr.bf16.gmra.mxu0 %v4962
      %v5159 = vpop.f32.mrf.mxu0
      %v5160 = vadd.f32 %v4911, %v5159
      %v5161 = vpop.f32.mrf.mxu0
      %v5162 = vadd.f32 %v4913, %v5161
      %v5163 = vpop.f32.mrf.mxu0
      %v5164 = vadd.f32 %v4917, %v5163
      %v5165 = vpop.f32.mrf.mxu0
      %v5166 = vadd.f32 %v4919, %v5165
      %5167 = vmatprep.mubr.bf16.mxu0 0
      %5168 = vmatmul.mubr.bf16.gmra.mxu0 %v4963
      %v5169 = vpop.f32.mrf.mxu0
      %v5170 = vadd.f32 %v4923, %v5169
      %v5171 = vpop.f32.mrf.mxu0
      %v5172 = vadd.f32 %v4925, %v5171
      %v5173 = vpop.f32.mrf.mxu0
      %v5174 = vadd.f32 %v4929, %v5173
      %v5175 = vpop.f32.mrf.mxu0
      %v5176 = vadd.f32 %v4931, %v5175
      %5177 = vmatprep.mubr.bf16.mxu0 0
      %5178 = vmatmul.mubr.bf16.gmra.mxu0 %v4964
      %v5179 = vpop.f32.mrf.mxu0
      %v5180 = vadd.f32 %v4935, %v5179
      %v5181 = vpop.f32.mrf.mxu0
      %v5182 = vadd.f32 %v4937, %v5181
      %v5183 = vpop.f32.mrf.mxu0
      %v5184 = vadd.f32 %v4941, %v5183
      %v5185 = vpop.f32.mrf.mxu0
      %v5186 = vadd.f32 %v4943, %v5185
      %5187 = vdwg.mxu0
      %v5188 = vmul.f32 %v5004, 0.02
      %v5189 = vmul.f32 %v5006, 0.02
      %v5190 = vmul.f32 %v5077, 0.02
      %v5191 = vmul.f32 %v5079, 0.02
      %v5192 = vmul.f32 %v5150, 0.02
      %v5193 = vmul.f32 %v5152, 0.02
      %v5194 = vmul.f32 %v5008, 0.02
      %v5195 = vmul.f32 %v5010, 0.02
      %v5196 = vmul.f32 %v5081, 0.02
      %v5197 = vmul.f32 %v5083, 0.02
      %v5198 = vmul.f32 %v5154, 0.02
      %v5199 = vmul.f32 %v5156, 0.02
      %v5200 = vmul.f32 %v5014, 0.02
      %v5201 = vmul.f32 %v5016, 0.02
      %v5202 = vmul.f32 %v5087, 0.02
      %v5203 = vmul.f32 %v5089, 0.02
      %v5204 = vmul.f32 %v5160, 0.02
      %v5205 = vmul.f32 %v5162, 0.02
      %v5206 = vmul.f32 %v5018, 0.02
      %v5207 = vmul.f32 %v5020, 0.02
      %v5208 = vmul.f32 %v5091, 0.02
      %v5209 = vmul.f32 %v5093, 0.02
      %v5210 = vmul.f32 %v5164, 0.02
      %v5211 = vmul.f32 %v5166, 0.02
      %v5212 = vmul.f32 %v5024, 0.02
      %v5213 = vmul.f32 %v5026, 0.02
      %v5214 = vmul.f32 %v5097, 0.02
      %v5215 = vmul.f32 %v5099, 0.02
      %v5216 = vmul.f32 %v5170, 0.02
      %v5217 = vmul.f32 %v5172, 0.02
      %v5218 = vmul.f32 %v5028, 0.02
      %v5219 = vmul.f32 %v5030, 0.02
      %v5220 = vmul.f32 %v5101, 0.02
      %v5221 = vmul.f32 %v5103, 0.02
      %v5222 = vmul.f32 %v5174, 0.02
      %v5223 = vmul.f32 %v5176, 0.02
      %v5224 = vmul.f32 %v5034, 0.02
      %v5225 = vmul.f32 %v5036, 0.02
      %v5226 = vmul.f32 %v5107, 0.02
      %v5227 = vmul.f32 %v5109, 0.02
      %v5228 = vmul.f32 %v5180, 0.02
      %v5229 = vmul.f32 %v5182, 0.02
      %v5230 = vmul.f32 %v5038, 0.02
      %v5231 = vmul.f32 %v5040, 0.02
      %v5232 = vmul.f32 %v5111, 0.02
      %v5233 = vmul.f32 %v5113, 0.02
      %v5234 = vmul.f32 %v5184, 0.02
      %v5235 = vmul.f32 %v5186, 0.02
      %v5236 = vmax.f32 %v5004, %v5188
      %v5237 = vmax.f32 %v5006, %v5189
      %v5238 = vmax.f32 %v5077, %v5190
      %v5239 = vmax.f32 %v5079, %v5191
      %v5240 = vmax.f32 %v5150, %v5192
      %v5241 = vmax.f32 %v5152, %v5193
      %v5242 = vmax.f32 %v5008, %v5194
      %v5243 = vmax.f32 %v5010, %v5195
      %v5244 = vmax.f32 %v5081, %v5196
      %v5245 = vmax.f32 %v5083, %v5197
      %v5246 = vmax.f32 %v5154, %v5198
      %v5247 = vmax.f32 %v5156, %v5199
      %v5248 = vmax.f32 %v5014, %v5200
      %v5249 = vmax.f32 %v5016, %v5201
      %v5250 = vmax.f32 %v5087, %v5202
      %v5251 = vmax.f32 %v5089, %v5203
      %v5252 = vmax.f32 %v5160, %v5204
      %v5253 = vmax.f32 %v5162, %v5205
      %v5254 = vmax.f32 %v5018, %v5206
      %v5255 = vmax.f32 %v5020, %v5207
      %v5256 = vmax.f32 %v5091, %v5208
      %v5257 = vmax.f32 %v5093, %v5209
      %v5258 = vmax.f32 %v5164, %v5210
      %v5259 = vmax.f32 %v5166, %v5211
      %v5260 = vmax.f32 %v5024, %v5212
      %v5261 = vmax.f32 %v5026, %v5213
      %v5262 = vmax.f32 %v5097, %v5214
      %v5263 = vmax.f32 %v5099, %v5215
      %v5264 = vmax.f32 %v5170, %v5216
      %v5265 = vmax.f32 %v5172, %v5217
      %v5266 = vmax.f32 %v5028, %v5218
      %v5267 = vmax.f32 %v5030, %v5219
      %v5268 = vmax.f32 %v5101, %v5220
      %v5269 = vmax.f32 %v5103, %v5221
      %v5270 = vmax.f32 %v5174, %v5222
      %v5271 = vmax.f32 %v5176, %v5223
      %v5272 = vmax.f32 %v5034, %v5224
      %v5273 = vmax.f32 %v5036, %v5225
      %v5274 = vmax.f32 %v5107, %v5226
      %v5275 = vmax.f32 %v5109, %v5227
      %v5276 = vmax.f32 %v5180, %v5228
      %v5277 = vmax.f32 %v5182, %v5229
      %v5278 = vmax.f32 %v5038, %v5230
      %v5279 = vmax.f32 %v5040, %v5231
      %v5280 = vmax.f32 %v5111, %v5232
      %v5281 = vmax.f32 %v5113, %v5233
      %v5282 = vmax.f32 %v5184, %v5234
      %v5283 = vmax.f32 %v5186, %v5235
      %v5284 = vpack.c.bf16 %v5242, %v5236
      %v5285 = vpack.c.bf16 %v5243, %v5237
      %v5286 = vpack.c.bf16 %v5244, %v5238
      %v5287 = vpack.c.bf16 %v5245, %v5239
      %v5288 = vpack.c.bf16 %v5246, %v5240
      %v5289 = vpack.c.bf16 %v5247, %v5241
      %v5290 = vpack.c.bf16 %v5254, %v5248
      %v5291 = vpack.c.bf16 %v5255, %v5249
      %v5292 = vpack.c.bf16 %v5256, %v5250
      %v5293 = vpack.c.bf16 %v5257, %v5251
      %v5294 = vpack.c.bf16 %v5258, %v5252
      %v5295 = vpack.c.bf16 %v5259, %v5253
      %v5296 = vpack.c.bf16 %v5266, %v5260
      %v5297 = vpack.c.bf16 %v5267, %v5261
      %v5298 = vpack.c.bf16 %v5268, %v5262
      %v5299 = vpack.c.bf16 %v5269, %v5263
      %v5300 = vpack.c.bf16 %v5270, %v5264
      %v5301 = vpack.c.bf16 %v5271, %v5265
      %v5302 = vpack.c.bf16 %v5278, %v5272
      %v5303 = vpack.c.bf16 %v5279, %v5273
      %v5304 = vpack.c.bf16 %v5280, %v5274
      %v5305 = vpack.c.bf16 %v5281, %v5275
      %v5306 = vpack.c.bf16 %v5282, %v5276
      %v5307 = vpack.c.bf16 %v5283, %v5277
      %v5308 = vld [vmem:[%s4] sm:$0xf]
      %v5309 = vld [vmem:[%s4 + $0x4] sm:$0xf]
      %v5310 = vld [vmem:[%s4 + $0x8] sm:$0xf]
      %v5311 = vld [vmem:[%s4 + $0xc] sm:$0xf]
      %v5312 = vld [vmem:[%s328 + $0x2c0] sm:$0xff]
      %v5313 = vld [vmem:[%s328 + $0x2c8] sm:$0xff]
      %v5314 = vld [vmem:[%s328 + $0x2d0] sm:$0xff]
      %v5315 = vld [vmem:[%s328 + $0x2d8] sm:$0xff]
      %v5317 = vsel %vm409, %v5312, 0
      %v5320 = vsel %vm409, %v5313, 0
      %v5323 = vsel %vm409, %v5314, 0
      %v5326 = vsel %vm409, %v5315, 0
      %5328 = vmatprep.subr.mxu0 0.0
      %5329 = vmatpush1.msra.mxu0 0.0
      %5330 = vmatprep.subr.mxu0 0.0
      %5331 = vmatpush1.msra.mxu0 0.0
      %5332 = vmatprep.subr.mxu0 0.0
      %5333 = vmatpush1.msra.mxu0 0.0
      %5334 = vmatprep.subr.mxu0 0.0
      %5335 = vmatpush1.msra.mxu0 0.0
      %5336 = vmatprep.subr.mxu0 0.0
      %5337 = vmatpush1.msra.mxu0 0.0
      %5338 = vmatprep.subr.mxu0 0.0
      %5339 = vmatpush1.msra.mxu0 0.0
      %5340 = vmatprep.subr.mxu0 0.0
      %5341 = vmatpush1.msra.mxu0 0.0
      %5342 = vmatprep.subr.mxu0 0.0
      %5343 = vmatpush1.msra.mxu0 0.0
      %5344 = vmatprep.subr.mxu0 0.0
      %5345 = vmatpush1.msra.mxu0 0.0
      %5346 = vmatprep.subr.mxu0 0.0
      %5347 = vmatpush1.msra.mxu0 0.0
      %5348 = vmatprep.subr.mxu0 0.0
      %5349 = vmatpush1.msra.mxu0 0.0
      %5350 = vmatprep.subr.mxu0 0.0
      %5351 = vmatpush1.msra.mxu0 0.0
      %5352 = vmatprep.subr.mxu0 0.0
      %5353 = vmatpush1.msra.mxu0 0.0
      %5354 = vmatprep.subr.mxu0 0.0
      %5355 = vmatpush1.msra.mxu0 0.0
      %5356 = vmatprep.subr.mxu0 0.0
      %5357 = vmatpush1.msra.mxu0 0.0
      %5358 = vmatprep.subr.mxu0 %v340
      %5359 = vmatpush1.msra.mxu0 %v339
      %5360 = vmatprep.subr.mxu0 0.0
      %5361 = vmatpush2.msra.mxu0 0.0
      %5362 = vmatprep.subr.mxu0 0.0
      %5363 = vmatpush2.msra.mxu0 0.0
      %5364 = vmatprep.subr.mxu0 0.0
      %5365 = vmatpush2.msra.mxu0 0.0
      %5366 = vmatprep.subr.mxu0 0.0
      %5367 = vmatpush2.msra.mxu0 0.0
      %5368 = vmatprep.subr.mxu0 0.0
      %5369 = vmatpush2.msra.mxu0 0.0
      %5370 = vmatprep.subr.mxu0 0.0
      %5371 = vmatpush2.msra.mxu0 0.0
      %5372 = vmatprep.subr.mxu0 0.0
      %5373 = vmatpush2.msra.mxu0 0.0
      %5374 = vmatprep.subr.mxu0 0.0
      %5375 = vmatpush2.msra.mxu0 0.0
      %5376 = vmatprep.subr.mxu0 0.0
      %5377 = vmatpush2.msra.mxu0 0.0
      %5378 = vmatprep.subr.mxu0 0.0
      %5379 = vmatpush2.msra.mxu0 0.0
      %5380 = vmatprep.subr.mxu0 0.0
      %5381 = vmatpush2.msra.mxu0 0.0
      %5382 = vmatprep.subr.mxu0 0.0
      %5383 = vmatpush2.msra.mxu0 0.0
      %5384 = vmatprep.subr.mxu0 0.0
      %5385 = vmatpush2.msra.mxu0 0.0
      %5386 = vmatprep.subr.mxu0 0.0
      %5387 = vmatpush2.msra.mxu0 0.0
      %5388 = vmatprep.subr.mxu0 0.0
      %5389 = vmatpush2.msra.mxu0 0.0
      %5390 = vmatprep.subr.mxu0 0.0
      %5391 = vmatpush2.msra.mxu0 0.0
      %5392 = vmatprep.mubr.f32.mxu0 0.0
      %5393 = vmatmul.mubr.f32.gmra.mxu0 %v5317
      %v5394 = vpop.f32.mrf.mxu0
      %v5395 = vadd.f32 0.0, %v5394
      %v5396 = vpop.f32.mrf.mxu0
      %v5397 = vadd.f32 0.0, %v5396
      %5398 = vmatprep.mubr.f32.mxu0 0.0
      %5399 = vmatmul.mubr.f32.gmra.mxu0 %v5320
      %v5400 = vpop.f32.mrf.mxu0
      %v5401 = vadd.f32 0.0, %v5400
      %v5402 = vpop.f32.mrf.mxu0
      %v5403 = vadd.f32 0.0, %v5402
      %5404 = vmatprep.mubr.f32.mxu0 0.0
      %5405 = vmatmul.mubr.f32.gmra.mxu0 %v5323
      %v5406 = vpop.f32.mrf.mxu0
      %v5407 = vadd.f32 0.0, %v5406
      %v5408 = vpop.f32.mrf.mxu0
      %v5409 = vadd.f32 0.0, %v5408
      %5410 = vmatprep.mubr.f32.mxu0 0.0
      %5411 = vmatmul.mubr.f32.gmra.mxu0 %v5326
      %v5412 = vpop.f32.mrf.mxu0
      %v5413 = vadd.f32 0.0, %v5412
      %v5414 = vpop.f32.mrf.mxu0
      %v5415 = vadd.f32 0.0, %v5414
      %5416 = vdwg.mxu0
      %5417 = vmatprep.subr.mxu0 0.0
      %5418 = vmatpush1.msra.mxu0 0.0
      %5419 = vmatprep.subr.mxu0 0.0
      %5420 = vmatpush1.msra.mxu0 0.0
      %5421 = vmatprep.subr.mxu0 0.0
      %5422 = vmatpush1.msra.mxu0 0.0
      %5423 = vmatprep.subr.mxu0 0.0
      %5424 = vmatpush1.msra.mxu0 0.0
      %5425 = vmatprep.subr.mxu0 0.0
      %5426 = vmatpush1.msra.mxu0 0.0
      %5427 = vmatprep.subr.mxu0 0.0
      %5428 = vmatpush1.msra.mxu0 0.0
      %5429 = vmatprep.subr.mxu0 0.0
      %5430 = vmatpush1.msra.mxu0 0.0
      %5431 = vmatprep.subr.mxu0 0.0
      %5432 = vmatpush1.msra.mxu0 0.0
      %5433 = vmatprep.subr.mxu0 0.0
      %5434 = vmatpush1.msra.mxu0 0.0
      %5435 = vmatprep.subr.mxu0 0.0
      %5436 = vmatpush1.msra.mxu0 0.0
      %5437 = vmatprep.subr.mxu0 0.0
      %5438 = vmatpush1.msra.mxu0 0.0
      %5439 = vmatprep.subr.mxu0 0.0
      %5440 = vmatpush1.msra.mxu0 0.0
      %5441 = vmatprep.subr.mxu0 0.0
      %5442 = vmatpush1.msra.mxu0 0.0
      %5443 = vmatprep.subr.mxu0 0.0
      %5444 = vmatpush1.msra.mxu0 0.0
      %5445 = vmatprep.subr.mxu0 0.0
      %5446 = vmatpush1.msra.mxu0 0.0
      %5447 = vmatprep.subr.mxu0 %v342
      %5448 = vmatpush1.msra.mxu0 %v341
      %5449 = vmatprep.subr.mxu0 0.0
      %5450 = vmatpush2.msra.mxu0 0.0
      %5451 = vmatprep.subr.mxu0 0.0
      %5452 = vmatpush2.msra.mxu0 0.0
      %5453 = vmatprep.subr.mxu0 0.0
      %5454 = vmatpush2.msra.mxu0 0.0
      %5455 = vmatprep.subr.mxu0 0.0
      %5456 = vmatpush2.msra.mxu0 0.0
      %5457 = vmatprep.subr.mxu0 0.0
      %5458 = vmatpush2.msra.mxu0 0.0
      %5459 = vmatprep.subr.mxu0 0.0
      %5460 = vmatpush2.msra.mxu0 0.0
      %5461 = vmatprep.subr.mxu0 0.0
      %5462 = vmatpush2.msra.mxu0 0.0
      %5463 = vmatprep.subr.mxu0 0.0
      %5464 = vmatpush2.msra.mxu0 0.0
      %5465 = vmatprep.subr.mxu0 0.0
      %5466 = vmatpush2.msra.mxu0 0.0
      %5467 = vmatprep.subr.mxu0 0.0
      %5468 = vmatpush2.msra.mxu0 0.0
      %5469 = vmatprep.subr.mxu0 0.0
      %5470 = vmatpush2.msra.mxu0 0.0
      %5471 = vmatprep.subr.mxu0 0.0
      %5472 = vmatpush2.msra.mxu0 0.0
      %5473 = vmatprep.subr.mxu0 0.0
      %5474 = vmatpush2.msra.mxu0 0.0
      %5475 = vmatprep.subr.mxu0 0.0
      %5476 = vmatpush2.msra.mxu0 0.0
      %5477 = vmatprep.subr.mxu0 0.0
      %5478 = vmatpush2.msra.mxu0 0.0
      %5479 = vmatprep.subr.mxu0 0.0
      %5480 = vmatpush2.msra.mxu0 0.0
      %5481 = vmatprep.mubr.f32.mxu0 0.0
      %5482 = vmatmul.mubr.f32.gmra.mxu0 %v5317
      %v5483 = vpop.f32.mrf.mxu0
      %v5484 = vadd.f32 0.0, %v5483
      %v5485 = vpop.f32.mrf.mxu0
      %v5486 = vadd.f32 0.0, %v5485
      %5487 = vmatprep.mubr.f32.mxu0 0.0
      %5488 = vmatmul.mubr.f32.gmra.mxu0 %v5320
      %v5489 = vpop.f32.mrf.mxu0
      %v5490 = vadd.f32 0.0, %v5489
      %v5491 = vpop.f32.mrf.mxu0
      %v5492 = vadd.f32 0.0, %v5491
      %5493 = vmatprep.mubr.f32.mxu0 0.0
      %5494 = vmatmul.mubr.f32.gmra.mxu0 %v5323
      %v5495 = vpop.f32.mrf.mxu0
      %v5496 = vadd.f32 0.0, %v5495
      %v5497 = vpop.f32.mrf.mxu0
      %v5498 = vadd.f32 0.0, %v5497
      %5499 = vmatprep.mubr.f32.mxu0 0.0
      %5500 = vmatmul.mubr.f32.gmra.mxu0 %v5326
      %v5501 = vpop.f32.mrf.mxu0
      %v5502 = vadd.f32 0.0, %v5501
      %v5503 = vpop.f32.mrf.mxu0
      %v5504 = vadd.f32 0.0, %v5503
      %5505 = vdwg.mxu0
      %5506 = vmatprep.subr.mxu0 0.0
      %5507 = vmatpush1.msra.mxu0 0.0
      %5508 = vmatprep.subr.mxu0 0.0
      %5509 = vmatpush1.msra.mxu0 0.0
      %5510 = vmatprep.subr.mxu0 0.0
      %5511 = vmatpush1.msra.mxu0 0.0
      %5512 = vmatprep.subr.mxu0 0.0
      %5513 = vmatpush1.msra.mxu0 0.0
      %5514 = vmatprep.subr.mxu0 0.0
      %5515 = vmatpush1.msra.mxu0 0.0
      %5516 = vmatprep.subr.mxu0 0.0
      %5517 = vmatpush1.msra.mxu0 0.0
      %5518 = vmatprep.subr.mxu0 0.0
      %5519 = vmatpush1.msra.mxu0 0.0
      %5520 = vmatprep.subr.mxu0 0.0
      %5521 = vmatpush1.msra.mxu0 0.0
      %5522 = vmatprep.subr.mxu0 0.0
      %5523 = vmatpush1.msra.mxu0 0.0
      %5524 = vmatprep.subr.mxu0 0.0
      %5525 = vmatpush1.msra.mxu0 0.0
      %5526 = vmatprep.subr.mxu0 0.0
      %5527 = vmatpush1.msra.mxu0 0.0
      %5528 = vmatprep.subr.mxu0 0.0
      %5529 = vmatpush1.msra.mxu0 0.0
      %5530 = vmatprep.subr.mxu0 0.0
      %5531 = vmatpush1.msra.mxu0 0.0
      %5532 = vmatprep.subr.mxu0 0.0
      %5533 = vmatpush1.msra.mxu0 0.0
      %5534 = vmatprep.subr.mxu0 0.0
      %5535 = vmatpush1.msra.mxu0 0.0
      %5536 = vmatprep.subr.mxu0 %v344
      %5537 = vmatpush1.msra.mxu0 %v343
      %5538 = vmatprep.subr.mxu0 0.0
      %5539 = vmatpush2.msra.mxu0 0.0
      %5540 = vmatprep.subr.mxu0 0.0
      %5541 = vmatpush2.msra.mxu0 0.0
      %5542 = vmatprep.subr.mxu0 0.0
      %5543 = vmatpush2.msra.mxu0 0.0
      %5544 = vmatprep.subr.mxu0 0.0
      %5545 = vmatpush2.msra.mxu0 0.0
      %5546 = vmatprep.subr.mxu0 0.0
      %5547 = vmatpush2.msra.mxu0 0.0
      %5548 = vmatprep.subr.mxu0 0.0
      %5549 = vmatpush2.msra.mxu0 0.0
      %5550 = vmatprep.subr.mxu0 0.0
      %5551 = vmatpush2.msra.mxu0 0.0
      %5552 = vmatprep.subr.mxu0 0.0
      %5553 = vmatpush2.msra.mxu0 0.0
      %5554 = vmatprep.subr.mxu0 0.0
      %5555 = vmatpush2.msra.mxu0 0.0
      %5556 = vmatprep.subr.mxu0 0.0
      %5557 = vmatpush2.msra.mxu0 0.0
      %5558 = vmatprep.subr.mxu0 0.0
      %5559 = vmatpush2.msra.mxu0 0.0
      %5560 = vmatprep.subr.mxu0 0.0
      %5561 = vmatpush2.msra.mxu0 0.0
      %5562 = vmatprep.subr.mxu0 0.0
      %5563 = vmatpush2.msra.mxu0 0.0
      %5564 = vmatprep.subr.mxu0 0.0
      %5565 = vmatpush2.msra.mxu0 0.0
      %5566 = vmatprep.subr.mxu0 0.0
      %5567 = vmatpush2.msra.mxu0 0.0
      %5568 = vmatprep.subr.mxu0 0.0
      %5569 = vmatpush2.msra.mxu0 0.0
      %5570 = vmatprep.mubr.f32.mxu0 0.0
      %5571 = vmatmul.mubr.f32.gmra.mxu0 %v5317
      %v5572 = vpop.f32.mrf.mxu0
      %v5573 = vadd.f32 0.0, %v5572
      %v5574 = vpop.f32.mrf.mxu0
      %v5575 = vadd.f32 0.0, %v5574
      %5576 = vmatprep.mubr.f32.mxu0 0.0
      %5577 = vmatmul.mubr.f32.gmra.mxu0 %v5320
      %v5578 = vpop.f32.mrf.mxu0
      %v5579 = vadd.f32 0.0, %v5578
      %v5580 = vpop.f32.mrf.mxu0
      %v5581 = vadd.f32 0.0, %v5580
      %5582 = vmatprep.mubr.f32.mxu0 0.0
      %5583 = vmatmul.mubr.f32.gmra.mxu0 %v5323
      %v5584 = vpop.f32.mrf.mxu0
      %v5585 = vadd.f32 0.0, %v5584
      %v5586 = vpop.f32.mrf.mxu0
      %v5587 = vadd.f32 0.0, %v5586
      %5588 = vmatprep.mubr.f32.mxu0 0.0
      %5589 = vmatmul.mubr.f32.gmra.mxu0 %v5326
      %v5590 = vpop.f32.mrf.mxu0
      %v5591 = vadd.f32 0.0, %v5590
      %v5592 = vpop.f32.mrf.mxu0
      %v5593 = vadd.f32 0.0, %v5592
      %5594 = vdwg.mxu0
      %v5599 = vunpack.c.l.b16 %v5308
      %v5600 = vunpack.c.l.b16 %v5309
      %v5601 = vunpack.c.l.b16 %v5310
      %v5602 = vunpack.c.l.b16 %v5311
      %v5603 = vpack.c.b16 %v5600, %v5599
      %v5604 = vpack.c.b16 %v5602, %v5601
      %vm5605 = vcmask 523264
      %v5607 = vsel %vm5605, %v5603, 0
      %v5610 = vsel %vm5605, %v5604, 0
      %5612 = vmatprep.subr.bf16.mxu0 0
      %5613 = vmatpush1.bf16.msra.mxu0 0
      %5614 = vmatprep.subr.bf16.mxu0 0
      %5615 = vmatpush1.bf16.msra.mxu0 0
      %5616 = vmatprep.subr.bf16.mxu0 0
      %5617 = vmatpush1.bf16.msra.mxu0 0
      %5618 = vmatprep.subr.bf16.mxu0 0
      %5619 = vmatpush1.bf16.msra.mxu0 0
      %5620 = vmatprep.subr.bf16.mxu0 %v5303
      %5621 = vmatpush1.bf16.msra.mxu0 %v5302
      %5622 = vmatprep.subr.bf16.mxu0 %v5297
      %5623 = vmatpush1.bf16.msra.mxu0 %v5296
      %5624 = vmatprep.subr.bf16.mxu0 %v5291
      %5625 = vmatpush1.bf16.msra.mxu0 %v5290
      %5626 = vmatprep.subr.bf16.mxu0 %v5285
      %5627 = vmatpush1.bf16.msra.mxu0 %v5284
      %5628 = vmatprep.subr.bf16.mxu0 0
      %5629 = vmatpush2.bf16.msra.mxu0 0
      %5630 = vmatprep.subr.bf16.mxu0 0
      %5631 = vmatpush2.bf16.msra.mxu0 0
      %5632 = vmatprep.subr.bf16.mxu0 0
      %5633 = vmatpush2.bf16.msra.mxu0 0
      %5634 = vmatprep.subr.bf16.mxu0 0
      %5635 = vmatpush2.bf16.msra.mxu0 0
      %5636 = vmatprep.subr.bf16.mxu0 0
      %5637 = vmatpush2.bf16.msra.mxu0 0
      %5638 = vmatprep.subr.bf16.mxu0 0
      %5639 = vmatpush2.bf16.msra.mxu0 0
      %5640 = vmatprep.subr.bf16.mxu0 0
      %5641 = vmatpush2.bf16.msra.mxu0 0
      %5642 = vmatprep.subr.bf16.mxu0 0
      %5643 = vmatpush2.bf16.msra.mxu0 0
      %5644 = vmatprep.mubr.bf16.mxu0 0
      %5645 = vmatmul.mubr.bf16.gmra.mxu0 %v5607
      %v5646 = vpop.f32.mrf.mxu0
      %v5647 = vadd.f32 %v5395, %v5646
      %v5648 = vpop.f32.mrf.mxu0
      %v5649 = vadd.f32 %v5397, %v5648
      %v5650 = vpop.f32.mrf.mxu0
      %v5651 = vadd.f32 %v5401, %v5650
      %v5652 = vpop.f32.mrf.mxu0
      %v5653 = vadd.f32 %v5403, %v5652
      %5654 = vmatprep.mubr.bf16.mxu0 0
      %5655 = vmatmul.mubr.bf16.gmra.mxu0 %v5610
      %v5656 = vpop.f32.mrf.mxu0
      %v5657 = vadd.f32 %v5407, %v5656
      %v5658 = vpop.f32.mrf.mxu0
      %v5659 = vadd.f32 %v5409, %v5658
      %v5660 = vpop.f32.mrf.mxu0
      %v5661 = vadd.f32 %v5413, %v5660
      %v5662 = vpop.f32.mrf.mxu0
      %v5663 = vadd.f32 %v5415, %v5662
      %5664 = vdwg.mxu0
      %5665 = vmatprep.subr.bf16.mxu0 0
      %5666 = vmatpush1.bf16.msra.mxu0 0
      %5667 = vmatprep.subr.bf16.mxu0 0
      %5668 = vmatpush1.bf16.msra.mxu0 0
      %5669 = vmatprep.subr.bf16.mxu0 0
      %5670 = vmatpush1.bf16.msra.mxu0 0
      %5671 = vmatprep.subr.bf16.mxu0 0
      %5672 = vmatpush1.bf16.msra.mxu0 0
      %5673 = vmatprep.subr.bf16.mxu0 %v5305
      %5674 = vmatpush1.bf16.msra.mxu0 %v5304
      %5675 = vmatprep.subr.bf16.mxu0 %v5299
      %5676 = vmatpush1.bf16.msra.mxu0 %v5298
      %5677 = vmatprep.subr.bf16.mxu0 %v5293
      %5678 = vmatpush1.bf16.msra.mxu0 %v5292
      %5679 = vmatprep.subr.bf16.mxu0 %v5287
      %5680 = vmatpush1.bf16.msra.mxu0 %v5286
      %5681 = vmatprep.subr.bf16.mxu0 0
      %5682 = vmatpush2.bf16.msra.mxu0 0
      %5683 = vmatprep.subr.bf16.mxu0 0
      %5684 = vmatpush2.bf16.msra.mxu0 0
      %5685 = vmatprep.subr.bf16.mxu0 0
      %5686 = vmatpush2.bf16.msra.mxu0 0
      %5687 = vmatprep.subr.bf16.mxu0 0
      %5688 = vmatpush2.bf16.msra.mxu0 0
      %5689 = vmatprep.subr.bf16.mxu0 0
      %5690 = vmatpush2.bf16.msra.mxu0 0
      %5691 = vmatprep.subr.bf16.mxu0 0
      %5692 = vmatpush2.bf16.msra.mxu0 0
      %5693 = vmatprep.subr.bf16.mxu0 0
      %5694 = vmatpush2.bf16.msra.mxu0 0
      %5695 = vmatprep.subr.bf16.mxu0 0
      %5696 = vmatpush2.bf16.msra.mxu0 0
      %5697 = vmatprep.mubr.bf16.mxu0 0
      %5698 = vmatmul.mubr.bf16.gmra.mxu0 %v5607
      %v5699 = vpop.f32.mrf.mxu0
      %v5700 = vadd.f32 %v5484, %v5699
      %v5701 = vpop.f32.mrf.mxu0
      %v5702 = vadd.f32 %v5486, %v5701
      %v5703 = vpop.f32.mrf.mxu0
      %v5704 = vadd.f32 %v5490, %v5703
      %v5705 = vpop.f32.mrf.mxu0
      %v5706 = vadd.f32 %v5492, %v5705
      %5707 = vmatprep.mubr.bf16.mxu0 0
      %5708 = vmatmul.mubr.bf16.gmra.mxu0 %v5610
      %v5709 = vpop.f32.mrf.mxu0
      %v5710 = vadd.f32 %v5496, %v5709
      %v5711 = vpop.f32.mrf.mxu0
      %v5712 = vadd.f32 %v5498, %v5711
      %v5713 = vpop.f32.mrf.mxu0
      %v5714 = vadd.f32 %v5502, %v5713
      %v5715 = vpop.f32.mrf.mxu0
      %v5716 = vadd.f32 %v5504, %v5715
      %5717 = vdwg.mxu0
      %5718 = vmatprep.subr.bf16.mxu0 0
      %5719 = vmatpush1.bf16.msra.mxu0 0
      %5720 = vmatprep.subr.bf16.mxu0 0
      %5721 = vmatpush1.bf16.msra.mxu0 0
      %5722 = vmatprep.subr.bf16.mxu0 0
      %5723 = vmatpush1.bf16.msra.mxu0 0
      %5724 = vmatprep.subr.bf16.mxu0 0
      %5725 = vmatpush1.bf16.msra.mxu0 0
      %5726 = vmatprep.subr.bf16.mxu0 %v5307
      %5727 = vmatpush1.bf16.msra.mxu0 %v5306
      %5728 = vmatprep.subr.bf16.mxu0 %v5301
      %5729 = vmatpush1.bf16.msra.mxu0 %v5300
      %5730 = vmatprep.subr.bf16.mxu0 %v5295
      %5731 = vmatpush1.bf16.msra.mxu0 %v5294
      %5732 = vmatprep.subr.bf16.mxu0 %v5289
      %5733 = vmatpush1.bf16.msra.mxu0 %v5288
      %5734 = vmatprep.subr.bf16.mxu0 0
      %5735 = vmatpush2.bf16.msra.mxu0 0
      %5736 = vmatprep.subr.bf16.mxu0 0
      %5737 = vmatpush2.bf16.msra.mxu0 0
      %5738 = vmatprep.subr.bf16.mxu0 0
      %5739 = vmatpush2.bf16.msra.mxu0 0
      %5740 = vmatprep.subr.bf16.mxu0 0
      %5741 = vmatpush2.bf16.msra.mxu0 0
      %5742 = vmatprep.subr.bf16.mxu0 0
      %5743 = vmatpush2.bf16.msra.mxu0 0
      %5744 = vmatprep.subr.bf16.mxu0 0
      %5745 = vmatpush2.bf16.msra.mxu0 0
      %5746 = vmatprep.subr.bf16.mxu0 0
      %5747 = vmatpush2.bf16.msra.mxu0 0
      %5748 = vmatprep.subr.bf16.mxu0 0
      %5749 = vmatpush2.bf16.msra.mxu0 0
      %5750 = vmatprep.mubr.bf16.mxu0 0
      %5751 = vmatmul.mubr.bf16.gmra.mxu0 %v5607
      %v5752 = vpop.f32.mrf.mxu0
      %v5753 = vadd.f32 %v5573, %v5752
      %v5754 = vpop.f32.mrf.mxu0
      %v5755 = vadd.f32 %v5575, %v5754
      %v5756 = vpop.f32.mrf.mxu0
      %v5757 = vadd.f32 %v5579, %v5756
      %v5758 = vpop.f32.mrf.mxu0
      %v5759 = vadd.f32 %v5581, %v5758
      %5760 = vmatprep.mubr.bf16.mxu0 0
      %5761 = vmatmul.mubr.bf16.gmra.mxu0 %v5610
      %v5762 = vpop.f32.mrf.mxu0
      %v5763 = vadd.f32 %v5585, %v5762
      %v5764 = vpop.f32.mrf.mxu0
      %v5765 = vadd.f32 %v5587, %v5764
      %v5766 = vpop.f32.mrf.mxu0
      %v5767 = vadd.f32 %v5591, %v5766
      %v5768 = vpop.f32.mrf.mxu0
      %v5769 = vadd.f32 %v5593, %v5768
      %5770 = vdwg.mxu0
      %v5771 = vmul.f32 %v5647, 0.02
      %v5772 = vmul.f32 %v5649, 0.02
      %v5773 = vmul.f32 %v5700, 0.02
      %v5774 = vmul.f32 %v5702, 0.02
      %v5775 = vmul.f32 %v5753, 0.02
      %v5776 = vmul.f32 %v5755, 0.02
      %v5777 = vmul.f32 %v5651, 0.02
      %v5778 = vmul.f32 %v5653, 0.02
      %v5779 = vmul.f32 %v5704, 0.02
      %v5780 = vmul.f32 %v5706, 0.02
      %v5781 = vmul.f32 %v5757, 0.02
      %v5782 = vmul.f32 %v5759, 0.02
      %v5783 = vmul.f32 %v5657, 0.02
      %v5784 = vmul.f32 %v5659, 0.02
      %v5785 = vmul.f32 %v5710, 0.02
      %v5786 = vmul.f32 %v5712, 0.02
      %v5787 = vmul.f32 %v5763, 0.02
      %v5788 = vmul.f32 %v5765, 0.02
      %v5789 = vmul.f32 %v5661, 0.02
      %v5790 = vmul.f32 %v5663, 0.02
      %v5791 = vmul.f32 %v5714, 0.02
      %v5792 = vmul.f32 %v5716, 0.02
      %v5793 = vmul.f32 %v5767, 0.02
      %v5794 = vmul.f32 %v5769, 0.02
      %v5795 = vmax.f32 %v5647, %v5771
      %v5796 = vmax.f32 %v5649, %v5772
      %v5797 = vmax.f32 %v5700, %v5773
      %v5798 = vmax.f32 %v5702, %v5774
      %v5799 = vmax.f32 %v5753, %v5775
      %v5800 = vmax.f32 %v5755, %v5776
      %v5801 = vmax.f32 %v5651, %v5777
      %v5802 = vmax.f32 %v5653, %v5778
      %v5803 = vmax.f32 %v5704, %v5779
      %v5804 = vmax.f32 %v5706, %v5780
      %v5805 = vmax.f32 %v5757, %v5781
      %v5806 = vmax.f32 %v5759, %v5782
      %v5807 = vmax.f32 %v5657, %v5783
      %v5808 = vmax.f32 %v5659, %v5784
      %v5809 = vmax.f32 %v5710, %v5785
      %v5810 = vmax.f32 %v5712, %v5786
      %v5811 = vmax.f32 %v5763, %v5787
      %v5812 = vmax.f32 %v5765, %v5788
      %v5813 = vmax.f32 %v5661, %v5789
      %v5814 = vmax.f32 %v5663, %v5790
      %v5815 = vmax.f32 %v5714, %v5791
      %v5816 = vmax.f32 %v5716, %v5792
      %v5817 = vmax.f32 %v5767, %v5793
      %v5818 = vmax.f32 %v5769, %v5794
      %v5819 = vld [vmem:[%s5] sm:$0xff]
      %v5820 = vld [vmem:[%s5 + $0x8] sm:$0xff]
      %v5821 = vld [vmem:[%s5 + $0x10] sm:$0xff]
      %v5822 = vld [vmem:[%s5 + $0x18] sm:$0xff]
      %5824 = vset.pattern.permute.xlu0 0
      %5825 = vperm.xlu0 %5824, %v5819
      %v5826 = vpop.permute.xlu0 %5825
      %5829 = vset.pattern.permute.xlu0 0
      %5830 = vperm.xlu0 %5829, %v5820
      %v5831 = vpop.permute.xlu0 %5830
      %5834 = vset.pattern.permute.xlu0 0
      %5835 = vperm.xlu0 %5834, %v5821
      %v5836 = vpop.permute.xlu0 %5835
      %5839 = vset.pattern.permute.xlu0 0
      %5840 = vperm.xlu0 %5839, %v5822
      %v5841 = vpop.permute.xlu0 %5840
      %v5843 = vmul.f32 %v5795, %v5826
      %v5844 = vmul.f32 %v5796, %v5826
      %v5845 = vmul.f32 %v5797, %v5826
      %v5846 = vmul.f32 %v5798, %v5826
      %v5847 = vmul.f32 %v5799, %v5826
      %v5848 = vmul.f32 %v5800, %v5826
      %v5849 = vmul.f32 %v5801, %v5831
      %v5850 = vmul.f32 %v5802, %v5831
      %v5851 = vmul.f32 %v5803, %v5831
      %v5852 = vmul.f32 %v5804, %v5831
      %v5853 = vmul.f32 %v5805, %v5831
      %v5854 = vmul.f32 %v5806, %v5831
      %v5855 = vmul.f32 %v5807, %v5836
      %v5856 = vmul.f32 %v5808, %v5836
      %v5857 = vmul.f32 %v5809, %v5836
      %v5858 = vmul.f32 %v5810, %v5836
      %v5859 = vmul.f32 %v5811, %v5836
      %v5860 = vmul.f32 %v5812, %v5836
      %v5861 = vmul.f32 %v5813, %v5841
      %v5862 = vmul.f32 %v5814, %v5841
      %v5863 = vmul.f32 %v5815, %v5841
      %v5864 = vmul.f32 %v5816, %v5841
      %v5865 = vmul.f32 %v5817, %v5841
      %v5866 = vmul.f32 %v5818, %v5841
      %v5867 = vadd.f32 %v5843, %v5849
      %v5868 = vadd.f32 %v5867, %v5855
      %v5869 = vadd.f32 %v5868, %v5861
      %v5870 = vrot.slane %v5869, 4
      %v5871 = vadd.f32 %v5869, %v5870
      %v5872 = vrot.slane %v5871, 2
      %v5873 = vadd.f32 %v5871, %v5872
      %v5874 = vrot.slane %v5873, 1
      %v5875 = vadd.f32 %v5873, %v5874
      %v5876 = vadd.f32 %v5844, %v5850
      %v5877 = vadd.f32 %v5876, %v5856
      %v5878 = vadd.f32 %v5877, %v5862
      %v5879 = vrot.slane %v5878, 4
      %v5880 = vadd.f32 %v5878, %v5879
      %v5881 = vrot.slane %v5880, 2
      %v5882 = vadd.f32 %v5880, %v5881
      %v5883 = vrot.slane %v5882, 1
      %v5884 = vadd.f32 %v5882, %v5883
      %v5885 = vadd.f32 %v5845, %v5851
      %v5886 = vadd.f32 %v5885, %v5857
      %v5887 = vadd.f32 %v5886, %v5863
      %v5888 = vrot.slane %v5887, 4
      %v5889 = vadd.f32 %v5887, %v5888
      %v5890 = vrot.slane %v5889, 2
      %v5891 = vadd.f32 %v5889, %v5890
      %v5892 = vrot.slane %v5891, 1
      %v5893 = vadd.f32 %v5891, %v5892
      %v5894 = vadd.f32 %v5846, %v5852
      %v5895 = vadd.f32 %v5894, %v5858
      %v5896 = vadd.f32 %v5895, %v5864
      %v5897 = vrot.slane %v5896, 4
      %v5898 = vadd.f32 %v5896, %v5897
      %v5899 = vrot.slane %v5898, 2
      %v5900 = vadd.f32 %v5898, %v5899
      %v5901 = vrot.slane %v5900, 1
      %v5902 = vadd.f32 %v5900, %v5901
      %v5903 = vadd.f32 %v5847, %v5853
      %v5904 = vadd.f32 %v5903, %v5859
      %v5905 = vadd.f32 %v5904, %v5865
      %v5906 = vrot.slane %v5905, 4
      %v5907 = vadd.f32 %v5905, %v5906
      %v5908 = vrot.slane %v5907, 2
      %v5909 = vadd.f32 %v5907, %v5908
      %v5910 = vrot.slane %v5909, 1
      %v5911 = vadd.f32 %v5909, %v5910
      %v5912 = vadd.f32 %v5848, %v5854
      %v5913 = vadd.f32 %v5912, %v5860
      %v5914 = vadd.f32 %v5913, %v5866
      %v5915 = vrot.slane %v5914, 4
      %v5916 = vadd.f32 %v5914, %v5915
      %v5917 = vrot.slane %v5916, 2
      %v5918 = vadd.f32 %v5916, %v5917
      %v5919 = vrot.slane %v5918, 1
      %v5920 = vadd.f32 %v5918, %v5919
      %v5921 = vld [vmem:[#allocation2] sm:$0x1]
      %5923 = vset.pattern.permute.xlu0 0
      %5924 = vperm.xlu0 %5923, %v5921
      %v5925 = vpop.permute.xlu0 %5924
      %v5927 = vlaneseq
      %v5928 = vshrl.u32 %v5927, 7
      %v5929 = vsub.s32 0, %v5928
      %v5930 = vrot.slane %v5925, %v5929
      %v5931 = vadd.f32 %v5875, %v5930
      %v5932 = vadd.f32 %v5884, %v5930
      %v5933 = vadd.f32 %v5893, %v5930
      %v5934 = vadd.f32 %v5902, %v5930
      %v5935 = vadd.f32 %v5911, %v5930
      %v5936 = vadd.f32 %v5920, %v5930
      %v5937 = vxor.u32 %v5931, 2147483648
      %v5938 = vxor.u32 %v5932, 2147483648
      %v5939 = vxor.u32 %v5933, 2147483648
      %v5940 = vxor.u32 %v5934, 2147483648
      %v5941 = vxor.u32 %v5935, 2147483648
      %v5942 = vxor.u32 %v5936, 2147483648
      %v5943 = vmul.f32 %v5937, 1.442695
      %v5944 = vpow.pop %v5943
      %v5945 = vmul.f32 %v5938, 1.442695
      %v5946 = vpow.pop %v5945
      %v5947 = vmul.f32 %v5939, 1.442695
      %v5948 = vpow.pop %v5947
      %v5949 = vmul.f32 %v5940, 1.442695
      %v5950 = vpow.pop %v5949
      %v5951 = vmul.f32 %v5941, 1.442695
      %v5952 = vpow.pop %v5951
      %v5953 = vmul.f32 %v5942, 1.442695
      %v5954 = vpow.pop %v5953
      %v5955 = vadd.f32 %v5944, 1.0
      %v5956 = vadd.f32 %v5946, 1.0
      %v5957 = vadd.f32 %v5948, 1.0
      %v5958 = vadd.f32 %v5950, 1.0
      %v5959 = vadd.f32 %v5952, 1.0
      %v5960 = vadd.f32 %v5954, 1.0
      %v5961 = vrcp.pop %v5955
      %v5962 = vmul.f32 1.0, %v5961
      %v5963 = vrcp.pop %v5956
      %v5964 = vmul.f32 1.0, %v5963
      %v5965 = vrcp.pop %v5957
      %v5966 = vmul.f32 1.0, %v5965
      %v5967 = vrcp.pop %v5958
      %v5968 = vmul.f32 1.0, %v5967
      %v5969 = vrcp.pop %v5959
      %v5970 = vmul.f32 1.0, %v5969
      %v5971 = vrcp.pop %v5960
      %v5972 = vmul.f32 1.0, %v5971
      %v5979 = vcombine.low %v5962, %v5964
      %v5980 = vcombine.low %v5966, %v5968
      %v5981 = vcombine.low %v5970, %v5972
      %v5983 = vunpack.c.l.s4 1966171168
      %v5984 = vunpack.c.0.s8 %v5983
      %v5985 = vlaneseq
      %v5986 = vshrl.u32 %v5985, 7
      %v5987 = vsub.s32 %v5984, %v5986
      %v5988 = vrot.slane %v5979, %v5987
      %v5990 = vunpack.c.l.s4 1966171168
      %v5991 = vunpack.c.0.s8 %v5990
      %v5992 = vlaneseq
      %v5993 = vshrl.u32 %v5992, 7
      %v5994 = vsub.s32 %v5991, %v5993
      %v5995 = vrot.slane %v5980, %v5994
      %v5997 = vunpack.c.l.s4 1966171168
      %v5998 = vunpack.c.0.s8 %v5997
      %v5999 = vlaneseq
      %v6000 = vshrl.u32 %v5999, 7
      %v6001 = vsub.s32 %v5998, %v6000
      %v6002 = vrot.slane %v5981, %v6001
      %v6003 = vcombine.low %v5988, %v5995
      %v6005 = vunpack.c.l.s4 1966171168
      %v6006 = vunpack.c.0.s8 %v6005
      %v6007 = vlaneseq
      %v6008 = vshrl.u32 %v6007, 7
      %v6009 = vsub.s32 %v6006, %v6008
      %v6010 = vrot.slane %v6003, %v6009
      %v6012 = vunpack.c.l.s4 1966171168
      %v6013 = vunpack.c.0.s8 %v6012
      %v6014 = vlaneseq
      %v6015 = vshrl.u32 %v6014, 7
      %v6016 = vsub.s32 %v6013, %v6015
      %v6017 = vrot.slane %v6002, %v6016
      %v6018 = vcombine.low %v6010, %v6017
      %v6020 = vlaneseq
      %vm6021 = vcmp.ge.s32.totalorder %v6020, 0
      %vm6022 = vcmp.lt.s32.totalorder %v6020, 768
      %vm6023 = vmand %vm6021, %vm6022
      %6024 = vst.msk [vmem:[%s336] sm:$0x3f] %vm6023, %v6018
      %s6025 = smul.u32 6, %s25
      %p6026 = scmp.lt.s32.totalorder %s24, 1
      %s6027 = scalar_select %p6026, %s24, 1
      %p6028 = scmp.lt.s32.totalorder %s6025, 5
      %s6029 = scalar_select %p6028, %s6025, 5
      %s6030 = smul.addr %s6027, 6
      %s6031 = sadd.s32 %s6029, %s6030
      %s6032 = scalar_lea.vmem %s7, %s6031
      // Predicated region
      $region49: #{imdecoder_forward.1} parent=47 // pred_check
        %p6033 = pneg %p211
      $region50: #{imdecoder_forward.1} parent=47 // pred_check_branch
        %6035 = sbr.rel (%p6033) target = $region52
      $region51: #{imdecoder_forward.1} parent=47 // pred_region
        %s6036 = smul.u32 6, %s25
      $region52: #{imdecoder_forward.1} parent=47 // pred_fallthru
        _
    $region48: #{imdecoder_forward.1} parent=5 // pred_fallthru
      _
    %p6037 = scmp.le.s32.totalorder 2, %s15
    // Predicated region
    $region53: #{imdecoder_forward.1} parent=5 // pred_check
      %p6038 = pneg %p6037
    $region54: #{imdecoder_forward.1} parent=5 // pred_check_branch
      %6040 = sbr.rel (%p6038) target = $region56
    $region55: #{imdecoder_forward.1} parent=5 // pred_region
      %s6041 = ssub.s32 %s15, 2
      // Predicated region
      $region57: #{imdecoder_forward.1} parent=55 // pred_check
        %p6042 = pneg %p217
      $region58: #{imdecoder_forward.1} parent=55 // pred_check_branch
        %6044 = sbr.rel (%p6042) target = $region60
      $region59: #{imdecoder_forward.1} parent=55 // pred_region
        %s6045 = smul.u32 6, %s27
        %p6046 = scmp.lt.s32.totalorder %s26, 1
        %s6047 = scalar_select %p6046, %s26, 1
        %p6048 = scmp.lt.s32.totalorder %s6045, 5
        %s6049 = scalar_select %p6048, %s6045, 5
        %s6050 = smul.addr %s6047, 6
        %s6051 = sadd.s32 %s6049, %s6050
        %s6052 = scalar_lea.vmem %s7, %s6051
      $region60: #{imdecoder_forward.1} parent=55 // pred_fallthru
        _
    $region56: #{imdecoder_forward.1} parent=5 // pred_fallthru
      _
  $region6: #{imdecoder_forward.1} parent=0 // loop_footer
    %s19 = sadd.s32 1, %s15
  $region7: #{imdecoder_forward.1} parent=0 // loop_footer_branch
    %14 = sbr.rel target = $region3
  $region8: #{imdecoder_forward.1} parent=0 // loop_exit
    _

</llo_original>
